<compile_context>
chip_gen: v7x
topology: tpu7x:2x2x1
jax: 0.10.0
libtpu: 0.0.40
codegen_flags: <defaults>
</compile_context>

<pallas_src>
import functools
import math

import jax
import jax.numpy as jnp
from jax.experimental import pallas as pl
from jax.experimental.pallas import tpu as pltpu

EPS = 1e-5                  # nn.LayerNorm default eps
MXU_DTYPE = jnp.bfloat16    # MXU input dtype (accumulation stays f32)


def _default_vmem_limit():
    cap = 128 * 1024 * 1024
    try:
        info = pltpu.get_tpu_info()
        cap = int(getattr(info, "vmem_capacity_bytes", cap))
    except Exception:
        pass
    return max(32 * 1024 * 1024, min(96 * 1024 * 1024, (cap * 3) // 4))


VMEM_LIMIT = _default_vmem_limit()


def _round_up(x, m):
    return ((x + m - 1) // m) * m


def _pick_tile(dim, target, align):
    """Largest tile <= target that divides dim and is a multiple of align; else full dim."""
    if dim <= target:
        return dim
    t = (target // align) * align
    while t >= align:
        if dim % t == 0:
            return t
        t -= align
    return dim


def _pad_rows(x, target_tm, align):
    """Pick a row tile; if nothing divides, pad rows so we never emit one giant block."""
    M = x.shape[0]
    tm = _pick_tile(M, target_tm, align)
    if tm == M and M > target_tm:
        Mp = _round_up(M, target_tm)
        x = jnp.pad(x, ((0, Mp - M), (0, 0)))
        tm = target_tm
    return x, tm, M


def _row_align(dtype):
    return 16 if dtype == jnp.bfloat16 else 8


# ---------------------------- tiled linear (+ optional ReLU) ----------------------------

def _linear_kernel(x_ref, w_ref, b_ref, o_ref, acc_ref, *, activation):
    @pl.when(pl.program_id(2) == 0)
    def _():
        acc_ref[...] = jnp.zeros_like(acc_ref)

    x = x_ref[...]
    w = w_ref[...]
    if x.dtype != MXU_DTYPE:
        x = x.astype(MXU_DTYPE)
    if w.dtype != MXU_DTYPE:
        w = w.astype(MXU_DTYPE)
    acc_ref[...] += jnp.dot(x, w, preferred_element_type=jnp.float32)

    @pl.when(pl.program_id(2) == pl.num_programs(2) - 1)
    def _():
        y = acc_ref[...] + b_ref[...]
        if activation == "relu":
            y = jnp.maximum(y, 0.0)
        o_ref[...] = y.astype(o_ref.dtype)


def linear(x, w, b, activation=None, out_dtype=None, *, tm=512, tn=512, tk=512):
    # x: (M, K); w: (K, N) [bf16]; b: (N,) [f32]  ->  (M, N) in out_dtype (default x.dtype)
    M0, K = x.shape
    N = w.shape[1]
    if out_dtype is None:
        out_dtype = x.dtype
    x, tm, M0 = _pad_rows(x, tm, _row_align(x.dtype))
    M = x.shape[0]
    tn = _pick_tile(N, tn, 128)
    tk = _pick_tile(K, tk, 128)
    # TODO(synk): K / N that do not tile fall back to a single (full-dim) block.
    grid = (M // tm, N // tn, K // tk)
    out = pl.pallas_call(
        functools.partial(_linear_kernel, activation=activation),
        out_shape=jax.ShapeDtypeStruct((M, N), out_dtype),
        grid=grid,
        in_specs=[
            pl.BlockSpec((tm, tk), lambda i, j, k: (i, k)),
            pl.BlockSpec((tk, tn), lambda i, j, k: (k, j)),
            pl.BlockSpec((1, tn), lambda i, j, k: (0, j)),
        ],
        out_specs=pl.BlockSpec((tm, tn), lambda i, j, k: (i, j)),
        scratch_shapes=[pltpu.VMEM((tm, tn), jnp.float32)],
        compiler_params=pltpu.CompilerParams(
            dimension_semantics=("parallel", "parallel", "arbitrary"),
            vmem_limit_bytes=VMEM_LIMIT,
        ),
    )(x, w, b.reshape(1, N))
    if M != M0:
        out = out[:M0]
    return out


# ------------------- tiled linear fused with residual-add + LayerNorm -------------------

def _linear_add_ln_kernel(x_ref, w_ref, b_ref, r_ref, g_ref, bb_ref, o_ref, acc_ref):
    @pl.when(pl.program_id(1) == 0)
    def _():
        acc_ref[...] = jnp.zeros_like(acc_ref)

    x = x_ref[...]
    w = w_ref[...]
    if x.dtype != MXU_DTYPE:
        x = x.astype(MXU_DTYPE)
    if w.dtype != MXU_DTYPE:
        w = w.astype(MXU_DTYPE)
    acc_ref[...] += jnp.dot(x, w, preferred_element_type=jnp.float32)

    @pl.when(pl.program_id(1) == pl.num_programs(1) - 1)
    def _():
        h = acc_ref[...] + b_ref[...] + r_ref[...].astype(jnp.float32)
        mean = jnp.mean(h, axis=-1, keepdims=True)
        var = jnp.mean((h - mean) ** 2, axis=-1, keepdims=True)
        y = (h - mean) * jax.lax.rsqrt(var + EPS)
        o_ref[...] = (y * g_ref[...] + bb_ref[...]).astype(o_ref.dtype)


def linear_add_layernorm(x, w, b, res, gamma, beta, out_dtype=None, *, tm=256, tk=512):
    # out = LayerNorm(res + (x @ w + b)); full-E columns stay resident for the LN reduce.
    M0, K = x.shape
    E = w.shape[1]
    if out_dtype is None:
        out_dtype = res.dtype
    x, tm, M0 = _pad_rows(x, tm, _row_align(x.dtype))
    M = x.shape[0]
    if res.shape[0] != M:
        res = jnp.pad(res, ((0, M - res.shape[0]), (0, 0)))
    tk = _pick_tile(K, tk, 128)
    grid = (M // tm, K // tk)
    out = pl.pallas_call(
        _linear_add_ln_kernel,
        out_shape=jax.ShapeDtypeStruct((M, E), out_dtype),
        grid=grid,
        in_specs=[
            pl.BlockSpec((tm, tk), lambda i, k: (i, k)),
            pl.BlockSpec((tk, E), lambda i, k: (k, 0)),
            pl.BlockSpec((1, E), lambda i, k: (0, 0)),
            pl.BlockSpec((tm, E), lambda i, k: (i, 0)),
            pl.BlockSpec((1, E), lambda i, k: (0, 0)),
            pl.BlockSpec((1, E), lambda i, k: (0, 0)),
        ],
        out_specs=pl.BlockSpec((tm, E), lambda i, k: (i, 0)),
        scratch_shapes=[pltpu.VMEM((tm, E), jnp.float32)],
        compiler_params=pltpu.CompilerParams(
            dimension_semantics=("parallel", "arbitrary"),
            vmem_limit_bytes=VMEM_LIMIT,
        ),
    )(x, w, b.reshape(1, E), res, gamma.reshape(1, E), beta.reshape(1, E))
    if M != M0:
        out = out[:M0]
    return out


# ---------------------------- standalone LayerNorm (row-tiled) ----------------------------

def _ln_kernel(x_ref, g_ref, b_ref, o_ref):
    h = x_ref[...].astype(jnp.float32)
    mean = jnp.mean(h, axis=-1, keepdims=True)
    var = jnp.mean((h - mean) ** 2, axis=-1, keepdims=True)
    y = (h - mean) * jax.lax.rsqrt(var + EPS)
    o_ref[...] = (y * g_ref[...] + b_ref[...]).astype(o_ref.dtype)


def layernorm(x, gamma, beta, *, tm=512):
    M0, E = x.shape
    x, tm, M0 = _pad_rows(x, tm, _row_align(x.dtype))
    M = x.shape[0]
    out = pl.pallas_call(
        _ln_kernel,
        out_shape=jax.ShapeDtypeStruct((M, E), x.dtype),
        grid=(M // tm,),
        in_specs=[
            pl.BlockSpec((tm, E), lambda i: (i, 0)),
            pl.BlockSpec((1, E), lambda i: (0, 0)),
            pl.BlockSpec((1, E), lambda i: (0, 0)),
        ],
        out_specs=pl.BlockSpec((tm, E), lambda i: (i, 0)),
        compiler_params=pltpu.CompilerParams(
            dimension_semantics=("parallel",),
            vmem_limit_bytes=VMEM_LIMIT,
        ),
    )(x, gamma.reshape(1, E), beta.reshape(1, E))
    if M != M0:
        out = out[:M0]
    return out


# ------------- attention: per-batch slabs, in-VMEM head split, lane-dense output -------------

def _self_attn_kernel(qkv_ref, o_ref, *, n_head, scale):
    # qkv_ref: (1, L, 3E) bf16 laid out as [q | k | v]; o_ref: (1, L, E) (head-concat layout)
    qkv = qkv_ref[0]
    L, E3 = qkv.shape
    E = E3 // 3
    D = E // n_head
    heads = []
    for h in range(n_head):
        qh = (qkv[:, h * D:(h + 1) * D] * scale).astype(MXU_DTYPE)           # (L, D)
        kh = qkv[:, E + h * D:E + (h + 1) * D].astype(MXU_DTYPE)             # (L, D)
        vh = qkv[:, 2 * E + h * D:2 * E + (h + 1) * D].astype(MXU_DTYPE)     # (L, D)
        s = jax.lax.dot_general(qh, kh, (((1,), (1,)), ((), ())),
                                preferred_element_type=jnp.float32)          # (L, L)
        s = s - jnp.max(s, axis=-1, keepdims=True)
        p = jnp.exp(s)
        inv = pl.reciprocal(jnp.sum(p, axis=-1, keepdims=True), approx=True)
        p = (p * inv).astype(MXU_DTYPE)
        heads.append(jnp.dot(p, vh, preferred_element_type=jnp.float32))     # (L, D)
    o_ref[0] = jnp.concatenate(heads, axis=-1).astype(o_ref.dtype)


def _cross_attn_kernel(q_ref, kv_ref, o_ref, *, n_head, scale):
    # q_ref: (1, L, E); kv_ref: (1, S, 2E) laid out as [k | v]; o_ref: (1, L, E)
    q = q_ref[0]
    kv = kv_ref[0]
    L, E = q.shape
    D = E // n_head
    heads = []
    for h in range(n_head):
        qh = (q[:, h * D:(h + 1) * D] * scale).astype(MXU_DTYPE)
        kh = kv[:, h * D:(h + 1) * D].astype(MXU_DTYPE)
        vh = kv[:, E + h * D:E + (h + 1) * D].astype(MXU_DTYPE)
        s = jax.lax.dot_general(qh, kh, (((1,), (1,)), ((), ())),
                                preferred_element_type=jnp.float32)
        s = s - jnp.max(s, axis=-1, keepdims=True)
        p = jnp.exp(s)
        inv = pl.reciprocal(jnp.sum(p, axis=-1, keepdims=True), approx=True)
        p = (p * inv).astype(MXU_DTYPE)
        heads.append(jnp.dot(p, vh, preferred_element_type=jnp.float32))
    o_ref[0] = jnp.concatenate(heads, axis=-1).astype(o_ref.dtype)


def self_attention(qkv, n_head, scale):
    # qkv: (N, L, 3E)  ->  (N, L, E)
    # TODO(synk): no flash-style (L,S) tiling; one batch element per grid step is fine at
    # these sizes (slab << VMEM), revisit for very long sequences; N==1 leaves a v7x TC idle.
    N, L, E3 = qkv.shape
    E = E3 // 3
    return pl.pallas_call(
        functools.partial(_self_attn_kernel, n_head=n_head, scale=scale),
        out_shape=jax.ShapeDtypeStruct((N, L, E), qkv.dtype),
        grid=(N,),
        in_specs=[pl.BlockSpec((1, L, E3), lambda n: (n, 0, 0))],
        out_specs=pl.BlockSpec((1, L, E), lambda n: (n, 0, 0)),
        compiler_params=pltpu.CompilerParams(
            dimension_semantics=("parallel",),
            vmem_limit_bytes=VMEM_LIMIT,
        ),
    )(qkv)


def cross_attention(q, kv, n_head, scale):
    # q: (N, L, E); kv: (N, S, 2E)  ->  (N, L, E)
    N, L, E = q.shape
    S = kv.shape[1]
    return pl.pallas_call(
        functools.partial(_cross_attn_kernel, n_head=n_head, scale=scale),
        out_shape=jax.ShapeDtypeStruct((N, L, E), q.dtype),
        grid=(N,),
        in_specs=[
            pl.BlockSpec((1, L, E), lambda n: (n, 0, 0)),
            pl.BlockSpec((1, S, 2 * E), lambda n: (n, 0, 0)),
        ],
        out_specs=pl.BlockSpec((1, L, E), lambda n: (n, 0, 0)),
        compiler_params=pltpu.CompilerParams(
            dimension_semantics=("parallel",),
            vmem_limit_bytes=VMEM_LIMIT,
        ),
    )(q, kv)


# ---------------------------- model glue around the kernels ----------------------------

def self_attention_block(x, p, n_head, ln_g, ln_b):
    # returns LayerNorm(x + SelfAttn(x)); x: (N, L, E) bf16
    N, L, E = x.shape
    D = E // n_head
    xf = x.reshape(N * L, E)
    qkv = linear(xf, p["w_qkv"], p["b_qkv"])                         # fused QKV: (N*L, 3E) bf16
    o = self_attention(qkv.reshape(N, L, 3 * E), n_head, 1.0 / math.sqrt(D))
    out = linear_add_layernorm(o.reshape(N * L, E), p["wo"], p["bo"], xf, ln_g, ln_b)
    return out.reshape(N, L, E)


def cross_attention_block(x_q, memory, p, n_head, ln_g, ln_b):
    # returns LayerNorm(x_q + CrossAttn(x_q, memory)); x_q: (N, L, E); memory: (N, S, E)
    N, L, E = x_q.shape
    S = memory.shape[1]
    D = E // n_head
    xq = x_q.reshape(N * L, E)
    mem = memory.reshape(N * S, E)
    q = linear(xq, p["wq"], p["bq"])                                  # (N*L, E) bf16
    kv = linear(mem, p["w_kv"], p["b_kv"])                            # fused K/V: (N*S, 2E) bf16
    o = cross_attention(q.reshape(N, L, E), kv.reshape(N, S, 2 * E), n_head, 1.0 / math.sqrt(D))
    out = linear_add_layernorm(o.reshape(N * L, E), p["wo"], p["bo"], xq, ln_g, ln_b)
    return out.reshape(N, L, E)


def encoder_layer(x, p, n_head):
    N, S, E = x.shape
    x1 = self_attention_block(x, p["self_attn"], n_head, p["ln1_g"], p["ln1_b"])
    x1f = x1.reshape(N * S, E)
    h = linear(x1f, p["w1"], p["b1"], activation="relu")              # (N*S, F) bf16
    x2 = linear_add_layernorm(h, p["w2"], p["b2"], x1f, p["ln2_g"], p["ln2_b"])
    return x2.reshape(N, S, E)


def decoder_layer(x, memory, p, n_head):
    N, S, E = x.shape
    x1 = self_attention_block(x, p["self_attn"], n_head, p["ln1_g"], p["ln1_b"])
    x2 = cross_attention_block(x1, memory, p["cross_attn"], n_head, p["ln2_g"], p["ln2_b"])
    x2f = x2.reshape(N * S, E)
    h = linear(x2f, p["w1"], p["b1"], activation="relu")
    x3 = linear_add_layernorm(h, p["w2"], p["b2"], x2f, p["ln3_g"], p["ln3_b"])
    return x3.reshape(N, S, E)


def protein_transformer_forward(tokens, params, n_head):
    # tokens: (S, N) int32 (nn.Transformer batch_first=False); returns (S, N, V) f32 logits
    S, N = tokens.shape
    V, E = params["embedding"].shape
    # embedding gather kept as plain-JAX glue (pure indexing, no FLOPs); batch-major layout
    x = jnp.take(params["embedding"], tokens.T, axis=0)               # (N, S, E) bf16

    # encoder stack (src == embedded tokens)
    src = x
    for lp in params["enc_layers"]:
        src = encoder_layer(src, lp, n_head)
    memory = layernorm(src.reshape(N * S, E),
                       params["enc_norm_g"], params["enc_norm_b"]).reshape(N, S, E)

    # decoder stack (tgt == embedded tokens; unmasked, as in transformer(x, x))
    tgt = x
    for lp in params["dec_layers"]:
        tgt = decoder_layer(tgt, memory, lp, n_head)
    tgt = layernorm(tgt.reshape(N * S, E),
                    params["dec_norm_g"], params["dec_norm_b"])

    # output projection (fc weights pre-padded to a lane-dense vocab multiple of 128)
    logits = linear(tgt, params["fc_w"], params["fc_b"], out_dtype=jnp.float32)  # (N*S, Vp)
    logits = logits[:, :V].reshape(N, S, V).transpose(1, 0, 2)        # -> (S, N, V)
    return logits


# ---------------------------- deterministic parameter init ----------------------------

def init_params(key, cfg):
    # Matmul weights + activations are pre-cast to bf16 at prep time (halves HBM streaming);
    # biases / LayerNorm affine params stay f32. fc_out is padded to V_pad once, here.
    E, F, V = cfg["embed_dim"], cfg["ff_dim"], cfg["vocab_size"]
    V_pad = _round_up(V, 128)
    keys = iter(jax.random.split(key, 8 + cfg["n_layer"] * 64))

    def w(shape):
        return (0.02 * jax.random.normal(next(keys), shape, jnp.float32)).astype(MXU_DTYPE)

    def zeros(shape):
        return jnp.zeros(shape, jnp.float32)

    def ones(shape):
        return jnp.ones(shape, jnp.float32)

    def self_attn_p():
        # fused QKV projection: columns laid out as [q | k | v]
        return dict(w_qkv=w((E, 3 * E)), b_qkv=zeros((3 * E,)),
                    wo=w((E, E)), bo=zeros((E,)))

    def cross_attn_p():
        # fused K/V projection: columns laid out as [k | v]
        return dict(wq=w((E, E)), bq=zeros((E,)),
                    w_kv=w((E, 2 * E)), b_kv=zeros((2 * E,)),
                    wo=w((E, E)), bo=zeros((E,)))

    def enc_p():
        return dict(self_attn=self_attn_p(),
                    ln1_g=ones((E,)), ln1_b=zeros((E,)),
                    w1=w((E, F)), b1=zeros((F,)),
                    w2=w((F, E)), b2=zeros((E,)),
                    ln2_g=ones((E,)), ln2_b=zeros((E,)))

    def dec_p():
        return dict(self_attn=self_attn_p(), cross_attn=cross_attn_p(),
                    ln1_g=ones((E,)), ln1_b=zeros((E,)),
                    ln2_g=ones((E,)), ln2_b=zeros((E,)),
                    w1=w((E, F)), b1=zeros((F,)),
                    w2=w((F, E)), b2=zeros((E,)),
                    ln3_g=ones((E,)), ln3_b=zeros((E,)))

    fc_w = w((E, V))
    fc_b = zeros((V,))
    if V_pad != V:
        fc_w = jnp.pad(fc_w, ((0, 0), (0, V_pad - V)))
        fc_b = jnp.pad(fc_b, (0, V_pad - V))

    return dict(
        embedding=w((V, E)),
        enc_layers=[enc_p() for _ in range(cfg["n_layer"])],
        dec_layers=[dec_p() for _ in range(cfg["n_layer"])],
        enc_norm_g=ones((E,)), enc_norm_b=zeros((E,)),
        dec_norm_g=ones((E,)), dec_norm_b=zeros((E,)),
        fc_w=fc_w, fc_b=fc_b,
    )


if __name__ == "__main__":
    # Small config consistent with the module's forward (scaled-down ModelConfig).
    cfg = dict(vocab_size=30, embed_dim=32, n_head=4, n_layer=2, ff_dim=64)
    S, N = 8, 2  # seq-first layout (batch_first=False)

    key = jax.random.PRNGKey(0)
    pkey, tkey = jax.random.split(key)
    params = init_params(pkey, cfg)
    tokens = jax.random.randint(tkey, (S, N), 0, cfg["vocab_size"], dtype=jnp.int32)

    n_head = cfg["n_head"]
    fwd = jax.jit(lambda t, p: protein_transformer_forward(t, p, n_head))
    logits = fwd(tokens, params)
    jax.block_until_ready(logits)

    assert logits.shape == (S, N, cfg["vocab_size"])
    assert bool(jnp.all(jnp.isfinite(logits)))
    print("KERNEL_OK")
</pallas_src>

<mosaic_0001>
module attributes {stable_mosaic.version = 11 : i64} {
  func.func @_self_attn_kernel(%arg0: i32, %arg1: memref<1x8x96xbf16, #tpu.memory_space<vmem>>, %arg2: memref<1x8x32xbf16, #tpu.memory_space<vmem>>) attributes {dimension_semantics = [#tpu.dimension_semantics<parallel>], iteration_bounds = array<i64: 2>, scalar_prefetch = 0 : i64, scratch_operands = 0 : i64, tpu.core_type = #tpu.core_type<tc>, window_params = [{transform_indices = @transform_0, window_bounds = array<i64: 1, 8, 96>}, {transform_indices = @transform_1, window_bounds = array<i64: 1, 8, 32>}]} {
    %c0 = arith.constant 0 : index
    %c0_0 = arith.constant 0 : index
    %c0_1 = arith.constant 0 : index
    %0 = vector.load %arg1[%c0, %c0_0, %c0_1] : memref<1x8x96xbf16, #tpu.memory_space<vmem>>, vector<1x8x96xbf16>
    %1 = vector.shape_cast %0 : vector<1x8x96xbf16> to vector<8x96xbf16>
    %2 = vector.extract_strided_slice %1 {offsets = [0, 0], sizes = [8, 8], strides = [1, 1]} : vector<8x96xbf16> to vector<8x8xbf16>
    %cst = arith.constant 3.535160e-01 : bf16
    %3 = vector.broadcast %cst : bf16 to vector<8x8xbf16>
    %4 = arith.mulf %2, %3 : vector<8x8xbf16>
    %5 = vector.extract_strided_slice %1 {offsets = [0, 32], sizes = [8, 8], strides = [1, 1]} : vector<8x96xbf16> to vector<8x8xbf16>
    %6 = vector.extract_strided_slice %1 {offsets = [0, 64], sizes = [8, 8], strides = [1, 1]} : vector<8x96xbf16> to vector<8x8xbf16>
    %cst_2 = arith.constant dense<0.000000e+00> : vector<8x8xf32>
    %7 = tpu.matmul %4, %5, %cst_2 {dimension_numbers = #tpu.dot_dimension_numbers<[1], [1], [0], [0], [0, 0, 1, 0], [], []>} : vector<8x8xbf16>, vector<8x8xbf16>, vector<8x8xf32> -> vector<8x8xf32>
    %cst_3 = arith.constant dense<0xFF800000> : vector<8xf32>
    %8 = vector.multi_reduction <maximumf>, %7, %cst_3 [1] : vector<8x8xf32> to vector<8xf32>
    %9 = vector.shape_cast %8 : vector<8xf32> to vector<8x1xf32>
    %10 = vector.broadcast %9 : vector<8x1xf32> to vector<8x8xf32>
    %11 = arith.subf %7, %10 : vector<8x8xf32>
    %12 = math.exp %11 : vector<8x8xf32>
    %cst_4 = arith.constant dense<0.000000e+00> : vector<8xf32>
    %13 = vector.multi_reduction <add>, %12, %cst_4 [1] : vector<8x8xf32> to vector<8xf32>
    %14 = vector.shape_cast %13 : vector<8xf32> to vector<8x1xf32>
    %15 = tpu.reciprocal %14 {approx = true} : vector<8x1xf32> -> vector<8x1xf32>
    %16 = vector.broadcast %15 : vector<8x1xf32> to vector<8x8xf32>
    %17 = arith.mulf %12, %16 : vector<8x8xf32>
    %18 = arith.truncf %17 : vector<8x8xf32> to vector<8x8xbf16>
    %cst_5 = arith.constant dense<0.000000e+00> : vector<8x8xf32>
    %19 = tpu.matmul %18, %6, %cst_5 {dimension_numbers = #tpu.dot_dimension_numbers<[1], [0], [0], [1], [0, 0, 1, 1], [], []>} : vector<8x8xbf16>, vector<8x8xbf16>, vector<8x8xf32> -> vector<8x8xf32>
    %20 = vector.extract_strided_slice %1 {offsets = [0, 8], sizes = [8, 8], strides = [1, 1]} : vector<8x96xbf16> to vector<8x8xbf16>
    %cst_6 = arith.constant 3.535160e-01 : bf16
    %21 = vector.broadcast %cst_6 : bf16 to vector<8x8xbf16>
    %22 = arith.mulf %20, %21 : vector<8x8xbf16>
    %23 = vector.extract_strided_slice %1 {offsets = [0, 40], sizes = [8, 8], strides = [1, 1]} : vector<8x96xbf16> to vector<8x8xbf16>
    %24 = vector.extract_strided_slice %1 {offsets = [0, 72], sizes = [8, 8], strides = [1, 1]} : vector<8x96xbf16> to vector<8x8xbf16>
    %cst_7 = arith.constant dense<0.000000e+00> : vector<8x8xf32>
    %25 = tpu.matmul %22, %23, %cst_7 {dimension_numbers = #tpu.dot_dimension_numbers<[1], [1], [0], [0], [0, 0, 1, 0], [], []>} : vector<8x8xbf16>, vector<8x8xbf16>, vector<8x8xf32> -> vector<8x8xf32>
    %cst_8 = arith.constant dense<0xFF800000> : vector<8xf32>
    %26 = vector.multi_reduction <maximumf>, %25, %cst_8 [1] : vector<8x8xf32> to vector<8xf32>
    %27 = vector.shape_cast %26 : vector<8xf32> to vector<8x1xf32>
    %28 = vector.broadcast %27 : vector<8x1xf32> to vector<8x8xf32>
    %29 = arith.subf %25, %28 : vector<8x8xf32>
    %30 = math.exp %29 : vector<8x8xf32>
    %cst_9 = arith.constant dense<0.000000e+00> : vector<8xf32>
    %31 = vector.multi_reduction <add>, %30, %cst_9 [1] : vector<8x8xf32> to vector<8xf32>
    %32 = vector.shape_cast %31 : vector<8xf32> to vector<8x1xf32>
    %33 = tpu.reciprocal %32 {approx = true} : vector<8x1xf32> -> vector<8x1xf32>
    %34 = vector.broadcast %33 : vector<8x1xf32> to vector<8x8xf32>
    %35 = arith.mulf %30, %34 : vector<8x8xf32>
    %36 = arith.truncf %35 : vector<8x8xf32> to vector<8x8xbf16>
    %cst_10 = arith.constant dense<0.000000e+00> : vector<8x8xf32>
    %37 = tpu.matmul %36, %24, %cst_10 {dimension_numbers = #tpu.dot_dimension_numbers<[1], [0], [0], [1], [0, 0, 1, 1], [], []>} : vector<8x8xbf16>, vector<8x8xbf16>, vector<8x8xf32> -> vector<8x8xf32>
    %38 = vector.extract_strided_slice %1 {offsets = [0, 16], sizes = [8, 8], strides = [1, 1]} : vector<8x96xbf16> to vector<8x8xbf16>
    %cst_11 = arith.constant 3.535160e-01 : bf16
    %39 = vector.broadcast %cst_11 : bf16 to vector<8x8xbf16>
    %40 = arith.mulf %38, %39 : vector<8x8xbf16>
    %41 = vector.extract_strided_slice %1 {offsets = [0, 48], sizes = [8, 8], strides = [1, 1]} : vector<8x96xbf16> to vector<8x8xbf16>
    %42 = vector.extract_strided_slice %1 {offsets = [0, 80], sizes = [8, 8], strides = [1, 1]} : vector<8x96xbf16> to vector<8x8xbf16>
    %cst_12 = arith.constant dense<0.000000e+00> : vector<8x8xf32>
    %43 = tpu.matmul %40, %41, %cst_12 {dimension_numbers = #tpu.dot_dimension_numbers<[1], [1], [0], [0], [0, 0, 1, 0], [], []>} : vector<8x8xbf16>, vector<8x8xbf16>, vector<8x8xf32> -> vector<8x8xf32>
    %cst_13 = arith.constant dense<0xFF800000> : vector<8xf32>
    %44 = vector.multi_reduction <maximumf>, %43, %cst_13 [1] : vector<8x8xf32> to vector<8xf32>
    %45 = vector.shape_cast %44 : vector<8xf32> to vector<8x1xf32>
    %46 = vector.broadcast %45 : vector<8x1xf32> to vector<8x8xf32>
    %47 = arith.subf %43, %46 : vector<8x8xf32>
    %48 = math.exp %47 : vector<8x8xf32>
    %cst_14 = arith.constant dense<0.000000e+00> : vector<8xf32>
    %49 = vector.multi_reduction <add>, %48, %cst_14 [1] : vector<8x8xf32> to vector<8xf32>
    %50 = vector.shape_cast %49 : vector<8xf32> to vector<8x1xf32>
    %51 = tpu.reciprocal %50 {approx = true} : vector<8x1xf32> -> vector<8x1xf32>
    %52 = vector.broadcast %51 : vector<8x1xf32> to vector<8x8xf32>
    %53 = arith.mulf %48, %52 : vector<8x8xf32>
    %54 = arith.truncf %53 : vector<8x8xf32> to vector<8x8xbf16>
    %cst_15 = arith.constant dense<0.000000e+00> : vector<8x8xf32>
    %55 = tpu.matmul %54, %42, %cst_15 {dimension_numbers = #tpu.dot_dimension_numbers<[1], [0], [0], [1], [0, 0, 1, 1], [], []>} : vector<8x8xbf16>, vector<8x8xbf16>, vector<8x8xf32> -> vector<8x8xf32>
    %56 = vector.extract_strided_slice %1 {offsets = [0, 24], sizes = [8, 8], strides = [1, 1]} : vector<8x96xbf16> to vector<8x8xbf16>
    %cst_16 = arith.constant 3.535160e-01 : bf16
    %57 = vector.broadcast %cst_16 : bf16 to vector<8x8xbf16>
    %58 = arith.mulf %56, %57 : vector<8x8xbf16>
    %59 = vector.extract_strided_slice %1 {offsets = [0, 56], sizes = [8, 8], strides = [1, 1]} : vector<8x96xbf16> to vector<8x8xbf16>
    %60 = vector.extract_strided_slice %1 {offsets = [0, 88], sizes = [8, 8], strides = [1, 1]} : vector<8x96xbf16> to vector<8x8xbf16>
    %cst_17 = arith.constant dense<0.000000e+00> : vector<8x8xf32>
    %61 = tpu.matmul %58, %59, %cst_17 {dimension_numbers = #tpu.dot_dimension_numbers<[1], [1], [0], [0], [0, 0, 1, 0], [], []>} : vector<8x8xbf16>, vector<8x8xbf16>, vector<8x8xf32> -> vector<8x8xf32>
    %cst_18 = arith.constant dense<0xFF800000> : vector<8xf32>
    %62 = vector.multi_reduction <maximumf>, %61, %cst_18 [1] : vector<8x8xf32> to vector<8xf32>
    %63 = vector.shape_cast %62 : vector<8xf32> to vector<8x1xf32>
    %64 = vector.broadcast %63 : vector<8x1xf32> to vector<8x8xf32>
    %65 = arith.subf %61, %64 : vector<8x8xf32>
    %66 = math.exp %65 : vector<8x8xf32>
    %cst_19 = arith.constant dense<0.000000e+00> : vector<8xf32>
    %67 = vector.multi_reduction <add>, %66, %cst_19 [1] : vector<8x8xf32> to vector<8xf32>
    %68 = vector.shape_cast %67 : vector<8xf32> to vector<8x1xf32>
    %69 = tpu.reciprocal %68 {approx = true} : vector<8x1xf32> -> vector<8x1xf32>
    %70 = vector.broadcast %69 : vector<8x1xf32> to vector<8x8xf32>
    %71 = arith.mulf %66, %70 : vector<8x8xf32>
    %72 = arith.truncf %71 : vector<8x8xf32> to vector<8x8xbf16>
    %cst_20 = arith.constant dense<0.000000e+00> : vector<8x8xf32>
    %73 = tpu.matmul %72, %60, %cst_20 {dimension_numbers = #tpu.dot_dimension_numbers<[1], [0], [0], [1], [0, 0, 1, 1], [], []>} : vector<8x8xbf16>, vector<8x8xbf16>, vector<8x8xf32> -> vector<8x8xf32>
    %74 = tpu.concatenate %19, %37, %55, %73 in 1 : vector<8x8xf32>, vector<8x8xf32>, vector<8x8xf32>, vector<8x8xf32> -> vector<8x32xf32>
    %75 = arith.truncf %74 : vector<8x32xf32> to vector<8x32xbf16>
    %c0_21 = arith.constant 0 : index
    %c0_22 = arith.constant 0 : index
    %c0_23 = arith.constant 0 : index
    %76 = vector.load %arg2[%c0_21, %c0_22, %c0_23] : memref<1x8x32xbf16, #tpu.memory_space<vmem>>, vector<1x8x32xbf16>
    %77 = vector.shape_cast %76 : vector<1x8x32xbf16> to vector<8x32xbf16>
    %78 = vector.shape_cast %75 : vector<8x32xbf16> to vector<1x8x32xbf16>
    tpu.vector_store %arg2[%c0_21, %c0_22, %c0_23], %78 {strides = array<i32>} : memref<1x8x32xbf16, #tpu.memory_space<vmem>>, vector<1x8x32xbf16>,
    return
  }
  func.func @transform_0(%arg0: i32) -> (i32, i32, i32) {
    %c0_i32 = arith.constant 0 : i32
    %c0_i32_0 = arith.constant 0 : i32
    %c0_i32_1 = arith.constant 0 : i32
    return %arg0, %c0_i32, %c0_i32_0 : i32, i32, i32
  }
  func.func @transform_1(%arg0: i32) -> (i32, i32, i32) {
    %c0_i32 = arith.constant 0 : i32
    %c0_i32_0 = arith.constant 0 : i32
    %c0_i32_1 = arith.constant 0 : i32
    return %arg0, %c0_i32, %c0_i32_0 : i32, i32, i32
  }
}

module attributes {stable_mosaic.version = 11 : i64} {
  func.func @_linear_kernel(%arg0: i32, %arg1: i32, %arg2: i32, %arg3: memref<16x32xbf16, #tpu.memory_space<vmem>>, %arg4: memref<32x96xbf16, #tpu.memory_space<vmem>>, %arg5: memref<1x96xf32, #tpu.memory_space<vmem>>, %arg6: memref<16x96xbf16, #tpu.memory_space<vmem>>, %arg7: memref<16x96xf32, #tpu.memory_space<vmem>>) attributes {dimension_semantics = [#tpu.dimension_semantics<parallel>, #tpu.dimension_semantics<parallel>, #tpu.dimension_semantics<arbitrary>], iteration_bounds = array<i64: 1, 1, 1>, scalar_prefetch = 0 : i64, scratch_operands = 1 : i64, tpu.core_type = #tpu.core_type<tc>, window_params = [{transform_indices = @transform_0, window_bounds = array<i64: 16, 32>}, {transform_indices = @transform_1, window_bounds = array<i64: 32, 96>}, {transform_indices = @transform_2, window_bounds = array<i64: 1, 96>}, {transform_indices = @transform_3, window_bounds = array<i64: 16, 96>}]} {
    %c0_i32 = arith.constant 0 : i32
    %0 = arith.cmpi eq, %arg2, %c0_i32 : i32
    %1 = arith.extui %0 : i1 to i32
    %c0_i32_0 = arith.constant 0 : i32
    %2 = arith.cmpi ne, %1, %c0_i32_0 : i32
    scf.if %2 {
      %cst_10 = arith.constant 0.000000e+00 : f32
      %12 = vector.broadcast %cst_10 : f32 to vector<16x96xf32>
      %c0_11 = arith.constant 0 : index
      %c0_12 = arith.constant 0 : index
      %13 = vector.load %arg7[%c0_11, %c0_12] : memref<16x96xf32, #tpu.memory_space<vmem>>, vector<16x96xf32>
      tpu.vector_store %arg7[%c0_11, %c0_12], %12 {strides = array<i32>} : memref<16x96xf32, #tpu.memory_space<vmem>>, vector<16x96xf32>,
    } else {
    }
    %c0 = arith.constant 0 : index
    %c0_1 = arith.constant 0 : index
    %3 = vector.load %arg3[%c0, %c0_1] : memref<16x32xbf16, #tpu.memory_space<vmem>>, vector<16x32xbf16>
    %c0_2 = arith.constant 0 : index
    %c0_3 = arith.constant 0 : index
    %4 = vector.load %arg4[%c0_2, %c0_3] : memref<32x96xbf16, #tpu.memory_space<vmem>>, vector<32x96xbf16>
    %c0_4 = arith.constant 0 : index
    %c0_5 = arith.constant 0 : index
    %5 = vector.load %arg7[%c0_4, %c0_5] : memref<16x96xf32, #tpu.memory_space<vmem>>, vector<16x96xf32>
    %cst = arith.constant dense<0.000000e+00> : vector<16x96xf32>
    %6 = tpu.matmul %3, %4, %cst {dimension_numbers = #tpu.dot_dimension_numbers<[1], [0], [0], [1], [0, 0, 1, 1], [], []>} : vector<16x32xbf16>, vector<32x96xbf16>, vector<16x96xf32> -> vector<16x96xf32>
    %7 = arith.addf %5, %6 : vector<16x96xf32>
    %c0_6 = arith.constant 0 : index
    %c0_7 = arith.constant 0 : index
    %8 = vector.load %arg7[%c0_6, %c0_7] : memref<16x96xf32, #tpu.memory_space<vmem>>, vector<16x96xf32>
    tpu.vector_store %arg7[%c0_6, %c0_7], %7 {strides = array<i32>} : memref<16x96xf32, #tpu.memory_space<vmem>>, vector<16x96xf32>,
    %c0_i32_8 = arith.constant 0 : i32
    %9 = arith.cmpi eq, %arg2, %c0_i32_8 : i32
    %10 = arith.extui %9 : i1 to i32
    %c0_i32_9 = arith.constant 0 : i32
    %11 = arith.cmpi ne, %10, %c0_i32_9 : i32
    scf.if %11 {
      %c0_10 = arith.constant 0 : index
      %c0_11 = arith.constant 0 : index
      %12 = vector.load %arg7[%c0_10, %c0_11] : memref<16x96xf32, #tpu.memory_space<vmem>>, vector<16x96xf32>
      %c0_12 = arith.constant 0 : index
      %c0_13 = arith.constant 0 : index
      %13 = vector.load %arg5[%c0_12, %c0_13] : memref<1x96xf32, #tpu.memory_space<vmem>>, vector<1x96xf32>
      %14 = vector.broadcast %13 : vector<1x96xf32> to vector<16x96xf32>
      %15 = arith.addf %12, %14 : vector<16x96xf32>
      %16 = arith.truncf %15 : vector<16x96xf32> to vector<16x96xbf16>
      %c0_14 = arith.constant 0 : index
      %c0_15 = arith.constant 0 : index
      %17 = vector.load %arg6[%c0_14, %c0_15] : memref<16x96xbf16, #tpu.memory_space<vmem>>, vector<16x96xbf16>
      tpu.vector_store %arg6[%c0_14, %c0_15], %16 {strides = array<i32>} : memref<16x96xbf16, #tpu.memory_space<vmem>>, vector<16x96xbf16>,
    } else {
    }
    return
  }
  func.func @transform_0(%arg0: i32, %arg1: i32, %arg2: i32) -> (i32, i32) {
    %c0_i32 = arith.constant 0 : i32
    return %arg0, %arg2 : i32, i32
  }
  func.func @transform_1(%arg0: i32, %arg1: i32, %arg2: i32) -> (i32, i32) {
    %c0_i32 = arith.constant 0 : i32
    return %arg2, %arg1 : i32, i32
  }
  func.func @transform_2(%arg0: i32, %arg1: i32, %arg2: i32) -> (i32, i32) {
    %c0_i32 = arith.constant 0 : i32
    %c0_i32_0 = arith.constant 0 : i32
    return %c0_i32, %arg1 : i32, i32
  }
  func.func @transform_3(%arg0: i32, %arg1: i32, %arg2: i32) -> (i32, i32) {
    %c0_i32 = arith.constant 0 : i32
    return %arg0, %arg1 : i32, i32
  }
}

module attributes {stable_mosaic.version = 11 : i64} {
  func.func @_linear_add_ln_kernel(%arg0: i32, %arg1: i32, %arg2: memref<16x32xbf16, #tpu.memory_space<vmem>>, %arg3: memref<32x32xbf16, #tpu.memory_space<vmem>>, %arg4: memref<1x32xf32, #tpu.memory_space<vmem>>, %arg5: memref<16x32xbf16, #tpu.memory_space<vmem>>, %arg6: memref<1x32xf32, #tpu.memory_space<vmem>>, %arg7: memref<1x32xf32, #tpu.memory_space<vmem>>, %arg8: memref<16x32xbf16, #tpu.memory_space<vmem>>, %arg9: memref<16x32xf32, #tpu.memory_space<vmem>>) attributes {dimension_semantics = [#tpu.dimension_semantics<parallel>, #tpu.dimension_semantics<arbitrary>], iteration_bounds = array<i64: 1, 1>, scalar_prefetch = 0 : i64, scratch_operands = 1 : i64, tpu.core_type = #tpu.core_type<tc>, window_params = [{transform_indices = @transform_0, window_bounds = array<i64: 16, 32>}, {transform_indices = @transform_1, window_bounds = array<i64: 32, 32>}, {pipeline_mode = #tpu.pipeline_mode<synchronous>, transform_indices = @transform_2, window_bounds = array<i64: 1, 32>}, {transform_indices = @transform_3, window_bounds = array<i64: 16, 32>}, {pipeline_mode = #tpu.pipeline_mode<synchronous>, transform_indices = @transform_4, window_bounds = array<i64: 1, 32>}, {pipeline_mode = #tpu.pipeline_mode<synchronous>, transform_indices = @transform_5, window_bounds = array<i64: 1, 32>}, {transform_indices = @transform_6, window_bounds = array<i64: 16, 32>}]} {
    %c0_i32 = arith.constant 0 : i32
    %0 = arith.cmpi eq, %arg1, %c0_i32 : i32
    %1 = arith.extui %0 : i1 to i32
    %c0_i32_0 = arith.constant 0 : i32
    %2 = arith.cmpi ne, %1, %c0_i32_0 : i32
    scf.if %2 {
      %cst_10 = arith.constant 0.000000e+00 : f32
      %12 = vector.broadcast %cst_10 : f32 to vector<16x32xf32>
      %c0_11 = arith.constant 0 : index
      %c0_12 = arith.constant 0 : index
      %13 = vector.load %arg9[%c0_11, %c0_12] : memref<16x32xf32, #tpu.memory_space<vmem>>, vector<16x32xf32>
      tpu.vector_store %arg9[%c0_11, %c0_12], %12 {strides = array<i32>} : memref<16x32xf32, #tpu.memory_space<vmem>>, vector<16x32xf32>,
    } else {
    }
    %c0 = arith.constant 0 : index
    %c0_1 = arith.constant 0 : index
    %3 = vector.load %arg2[%c0, %c0_1] : memref<16x32xbf16, #tpu.memory_space<vmem>>, vector<16x32xbf16>
    %c0_2 = arith.constant 0 : index
    %c0_3 = arith.constant 0 : index
    %4 = vector.load %arg3[%c0_2, %c0_3] : memref<32x32xbf16, #tpu.memory_space<vmem>>, vector<32x32xbf16>
    %c0_4 = arith.constant 0 : index
    %c0_5 = arith.constant 0 : index
    %5 = vector.load %arg9[%c0_4, %c0_5] : memref<16x32xf32, #tpu.memory_space<vmem>>, vector<16x32xf32>
    %cst = arith.constant dense<0.000000e+00> : vector<16x32xf32>
    %6 = tpu.matmul %3, %4, %cst {dimension_numbers = #tpu.dot_dimension_numbers<[1], [0], [0], [1], [0, 0, 1, 1], [], []>} : vector<16x32xbf16>, vector<32x32xbf16>, vector<16x32xf32> -> vector<16x32xf32>
    %7 = arith.addf %5, %6 : vector<16x32xf32>
    %c0_6 = arith.constant 0 : index
    %c0_7 = arith.constant 0 : index
    %8 = vector.load %arg9[%c0_6, %c0_7] : memref<16x32xf32, #tpu.memory_space<vmem>>, vector<16x32xf32>
    tpu.vector_store %arg9[%c0_6, %c0_7], %7 {strides = array<i32>} : memref<16x32xf32, #tpu.memory_space<vmem>>, vector<16x32xf32>,
    %c0_i32_8 = arith.constant 0 : i32
    %9 = arith.cmpi eq, %arg1, %c0_i32_8 : i32
    %10 = arith.extui %9 : i1 to i32
    %c0_i32_9 = arith.constant 0 : i32
    %11 = arith.cmpi ne, %10, %c0_i32_9 : i32
    scf.if %11 {
      %c0_10 = arith.constant 0 : index
      %c0_11 = arith.constant 0 : index
      %12 = vector.load %arg9[%c0_10, %c0_11] : memref<16x32xf32, #tpu.memory_space<vmem>>, vector<16x32xf32>
      %c0_12 = arith.constant 0 : index
      %c0_13 = arith.constant 0 : index
      %13 = vector.load %arg4[%c0_12, %c0_13] : memref<1x32xf32, #tpu.memory_space<vmem>>, vector<1x32xf32>
      %14 = vector.broadcast %13 : vector<1x32xf32> to vector<16x32xf32>
      %15 = arith.addf %12, %14 : vector<16x32xf32>
      %c0_14 = arith.constant 0 : index
      %c0_15 = arith.constant 0 : index
      %16 = vector.load %arg5[%c0_14, %c0_15] : memref<16x32xbf16, #tpu.memory_space<vmem>>, vector<16x32xbf16>
      %17 = arith.extf %16 : vector<16x32xbf16> to vector<16x32xf32>
      %18 = arith.addf %15, %17 : vector<16x32xf32>
      %cst_16 = arith.constant dense<0.000000e+00> : vector<16xf32>
      %19 = vector.multi_reduction <add>, %18, %cst_16 [1] : vector<16x32xf32> to vector<16xf32>
      %20 = vector.shape_cast %19 : vector<16xf32> to vector<16x1xf32>
      %cst_17 = arith.constant 3.200000e+01 : f32
      %21 = vector.broadcast %cst_17 : f32 to vector<16x1xf32>
      %22 = arith.divf %20, %21 : vector<16x1xf32>
      %23 = vector.broadcast %22 : vector<16x1xf32> to vector<16x32xf32>
      %24 = arith.subf %18, %23 : vector<16x32xf32>
      %25 = arith.mulf %24, %24 : vector<16x32xf32>
      %cst_18 = arith.constant dense<0.000000e+00> : vector<16xf32>
      %26 = vector.multi_reduction <add>, %25, %cst_18 [1] : vector<16x32xf32> to vector<16xf32>
      %27 = vector.shape_cast %26 : vector<16xf32> to vector<16x1xf32>
      %cst_19 = arith.constant 3.200000e+01 : f32
      %28 = vector.broadcast %cst_19 : f32 to vector<16x1xf32>
      %29 = arith.divf %27, %28 : vector<16x1xf32>
      %30 = vector.broadcast %22 : vector<16x1xf32> to vector<16x32xf32>
      %31 = arith.subf %18, %30 : vector<16x32xf32>
      %cst_20 = arith.constant 9.99999974E-6 : f32
      %32 = vector.broadcast %cst_20 : f32 to vector<16x1xf32>
      %33 = arith.addf %29, %32 : vector<16x1xf32>
      %34 = math.rsqrt %33 : vector<16x1xf32>
      %35 = vector.broadcast %34 : vector<16x1xf32> to vector<16x32xf32>
      %36 = arith.mulf %31, %35 : vector<16x32xf32>
      %c0_21 = arith.constant 0 : index
      %c0_22 = arith.constant 0 : index
      %37 = vector.load %arg6[%c0_21, %c0_22] : memref<1x32xf32, #tpu.memory_space<vmem>>, vector<1x32xf32>
      %38 = vector.broadcast %37 : vector<1x32xf32> to vector<16x32xf32>
      %39 = arith.mulf %36, %38 : vector<16x32xf32>
      %c0_23 = arith.constant 0 : index
      %c0_24 = arith.constant 0 : index
      %40 = vector.load %arg7[%c0_23, %c0_24] : memref<1x32xf32, #tpu.memory_space<vmem>>, vector<1x32xf32>
      %41 = vector.broadcast %40 : vector<1x32xf32> to vector<16x32xf32>
      %42 = arith.addf %39, %41 : vector<16x32xf32>
      %43 = arith.truncf %42 : vector<16x32xf32> to vector<16x32xbf16>
      %c0_25 = arith.constant 0 : index
      %c0_26 = arith.constant 0 : index
      %44 = vector.load %arg8[%c0_25, %c0_26] : memref<16x32xbf16, #tpu.memory_space<vmem>>, vector<16x32xbf16>
      tpu.vector_store %arg8[%c0_25, %c0_26], %43 {strides = array<i32>} : memref<16x32xbf16, #tpu.memory_space<vmem>>, vector<16x32xbf16>,
    } else {
    }
    return
  }
  func.func @transform_0(%arg0: i32, %arg1: i32) -> (i32, i32) {
    %c0_i32 = arith.constant 0 : i32
    return %arg0, %arg1 : i32, i32
  }
  func.func @transform_1(%arg0: i32, %arg1: i32) -> (i32, i32) {
    %c0_i32 = arith.constant 0 : i32
    %c0_i32_0 = arith.constant 0 : i32
    return %arg1, %c0_i32 : i32, i32
  }
  func.func @transform_2(%arg0: i32, %arg1: i32) -> (i32, i32) {
    %c0_i32 = arith.constant 0 : i32
    %c0_i32_0 = arith.constant 0 : i32
    %c0_i32_1 = arith.constant 0 : i32
    return %c0_i32, %c0_i32_0 : i32, i32
  }
  func.func @transform_3(%arg0: i32, %arg1: i32) -> (i32, i32) {
    %c0_i32 = arith.constant 0 : i32
    %c0_i32_0 = arith.constant 0 : i32
    return %arg0, %c0_i32 : i32, i32
  }
  func.func @transform_4(%arg0: i32, %arg1: i32) -> (i32, i32) {
    %c0_i32 = arith.constant 0 : i32
    %c0_i32_0 = arith.constant 0 : i32
    %c0_i32_1 = arith.constant 0 : i32
    return %c0_i32, %c0_i32_0 : i32, i32
  }
  func.func @transform_5(%arg0: i32, %arg1: i32) -> (i32, i32) {
    %c0_i32 = arith.constant 0 : i32
    %c0_i32_0 = arith.constant 0 : i32
    %c0_i32_1 = arith.constant 0 : i32
    return %c0_i32, %c0_i32_0 : i32, i32
  }
  func.func @transform_6(%arg0: i32, %arg1: i32) -> (i32, i32) {
    %c0_i32 = arith.constant 0 : i32
    %c0_i32_0 = arith.constant 0 : i32
    return %arg0, %c0_i32 : i32, i32
  }
}

module attributes {stable_mosaic.version = 11 : i64} {
  func.func @_linear_kernel(%arg0: i32, %arg1: i32, %arg2: i32, %arg3: memref<16x32xbf16, #tpu.memory_space<vmem>>, %arg4: memref<32x64xbf16, #tpu.memory_space<vmem>>, %arg5: memref<1x64xf32, #tpu.memory_space<vmem>>, %arg6: memref<16x64xbf16, #tpu.memory_space<vmem>>, %arg7: memref<16x64xf32, #tpu.memory_space<vmem>>) attributes {dimension_semantics = [#tpu.dimension_semantics<parallel>, #tpu.dimension_semantics<parallel>, #tpu.dimension_semantics<arbitrary>], iteration_bounds = array<i64: 1, 1, 1>, scalar_prefetch = 0 : i64, scratch_operands = 1 : i64, tpu.core_type = #tpu.core_type<tc>, window_params = [{transform_indices = @transform_0, window_bounds = array<i64: 16, 32>}, {transform_indices = @transform_1, window_bounds = array<i64: 32, 64>}, {transform_indices = @transform_2, window_bounds = array<i64: 1, 64>}, {transform_indices = @transform_3, window_bounds = array<i64: 16, 64>}]} {
    %c0_i32 = arith.constant 0 : i32
    %0 = arith.cmpi eq, %arg2, %c0_i32 : i32
    %1 = arith.extui %0 : i1 to i32
    %c0_i32_0 = arith.constant 0 : i32
    %2 = arith.cmpi ne, %1, %c0_i32_0 : i32
    scf.if %2 {
      %cst_10 = arith.constant 0.000000e+00 : f32
      %12 = vector.broadcast %cst_10 : f32 to vector<16x64xf32>
      %c0_11 = arith.constant 0 : index
      %c0_12 = arith.constant 0 : index
      %13 = vector.load %arg7[%c0_11, %c0_12] : memref<16x64xf32, #tpu.memory_space<vmem>>, vector<16x64xf32>
      tpu.vector_store %arg7[%c0_11, %c0_12], %12 {strides = array<i32>} : memref<16x64xf32, #tpu.memory_space<vmem>>, vector<16x64xf32>,
    } else {
    }
    %c0 = arith.constant 0 : index
    %c0_1 = arith.constant 0 : index
    %3 = vector.load %arg3[%c0, %c0_1] : memref<16x32xbf16, #tpu.memory_space<vmem>>, vector<16x32xbf16>
    %c0_2 = arith.constant 0 : index
    %c0_3 = arith.constant 0 : index
    %4 = vector.load %arg4[%c0_2, %c0_3] : memref<32x64xbf16, #tpu.memory_space<vmem>>, vector<32x64xbf16>
    %c0_4 = arith.constant 0 : index
    %c0_5 = arith.constant 0 : index
    %5 = vector.load %arg7[%c0_4, %c0_5] : memref<16x64xf32, #tpu.memory_space<vmem>>, vector<16x64xf32>
    %cst = arith.constant dense<0.000000e+00> : vector<16x64xf32>
    %6 = tpu.matmul %3, %4, %cst {dimension_numbers = #tpu.dot_dimension_numbers<[1], [0], [0], [1], [0, 0, 1, 1], [], []>} : vector<16x32xbf16>, vector<32x64xbf16>, vector<16x64xf32> -> vector<16x64xf32>
    %7 = arith.addf %5, %6 : vector<16x64xf32>
    %c0_6 = arith.constant 0 : index
    %c0_7 = arith.constant 0 : index
    %8 = vector.load %arg7[%c0_6, %c0_7] : memref<16x64xf32, #tpu.memory_space<vmem>>, vector<16x64xf32>
    tpu.vector_store %arg7[%c0_6, %c0_7], %7 {strides = array<i32>} : memref<16x64xf32, #tpu.memory_space<vmem>>, vector<16x64xf32>,
    %c0_i32_8 = arith.constant 0 : i32
    %9 = arith.cmpi eq, %arg2, %c0_i32_8 : i32
    %10 = arith.extui %9 : i1 to i32
    %c0_i32_9 = arith.constant 0 : i32
    %11 = arith.cmpi ne, %10, %c0_i32_9 : i32
    scf.if %11 {
      %c0_10 = arith.constant 0 : index
      %c0_11 = arith.constant 0 : index
      %12 = vector.load %arg7[%c0_10, %c0_11] : memref<16x64xf32, #tpu.memory_space<vmem>>, vector<16x64xf32>
      %c0_12 = arith.constant 0 : index
      %c0_13 = arith.constant 0 : index
      %13 = vector.load %arg5[%c0_12, %c0_13] : memref<1x64xf32, #tpu.memory_space<vmem>>, vector<1x64xf32>
      %14 = vector.broadcast %13 : vector<1x64xf32> to vector<16x64xf32>
      %15 = arith.addf %12, %14 : vector<16x64xf32>
      %cst_14 = arith.constant 0.000000e+00 : f32
      %16 = vector.broadcast %cst_14 : f32 to vector<16x64xf32>
      %17 = arith.maximumf %15, %16 : vector<16x64xf32>
      %18 = arith.truncf %17 : vector<16x64xf32> to vector<16x64xbf16>
      %c0_15 = arith.constant 0 : index
      %c0_16 = arith.constant 0 : index
      %19 = vector.load %arg6[%c0_15, %c0_16] : memref<16x64xbf16, #tpu.memory_space<vmem>>, vector<16x64xbf16>
      tpu.vector_store %arg6[%c0_15, %c0_16], %18 {strides = array<i32>} : memref<16x64xbf16, #tpu.memory_space<vmem>>, vector<16x64xbf16>,
    } else {
    }
    return
  }
  func.func @transform_0(%arg0: i32, %arg1: i32, %arg2: i32) -> (i32, i32) {
    %c0_i32 = arith.constant 0 : i32
    return %arg0, %arg2 : i32, i32
  }
  func.func @transform_1(%arg0: i32, %arg1: i32, %arg2: i32) -> (i32, i32) {
    %c0_i32 = arith.constant 0 : i32
    return %arg2, %arg1 : i32, i32
  }
  func.func @transform_2(%arg0: i32, %arg1: i32, %arg2: i32) -> (i32, i32) {
    %c0_i32 = arith.constant 0 : i32
    %c0_i32_0 = arith.constant 0 : i32
    return %c0_i32, %arg1 : i32, i32
  }
  func.func @transform_3(%arg0: i32, %arg1: i32, %arg2: i32) -> (i32, i32) {
    %c0_i32 = arith.constant 0 : i32
    return %arg0, %arg1 : i32, i32
  }
}

module attributes {stable_mosaic.version = 11 : i64} {
  func.func @_linear_kernel(%arg0: i32, %arg1: i32, %arg2: i32, %arg3: memref<16x32xbf16, #tpu.memory_space<vmem>>, %arg4: memref<32x32xbf16, #tpu.memory_space<vmem>>, %arg5: memref<1x32xf32, #tpu.memory_space<vmem>>, %arg6: memref<16x32xbf16, #tpu.memory_space<vmem>>, %arg7: memref<16x32xf32, #tpu.memory_space<vmem>>) attributes {dimension_semantics = [#tpu.dimension_semantics<parallel>, #tpu.dimension_semantics<parallel>, #tpu.dimension_semantics<arbitrary>], iteration_bounds = array<i64: 1, 1, 1>, scalar_prefetch = 0 : i64, scratch_operands = 1 : i64, tpu.core_type = #tpu.core_type<tc>, window_params = [{transform_indices = @transform_0, window_bounds = array<i64: 16, 32>}, {transform_indices = @transform_1, window_bounds = array<i64: 32, 32>}, {transform_indices = @transform_2, window_bounds = array<i64: 1, 32>}, {transform_indices = @transform_3, window_bounds = array<i64: 16, 32>}]} {
    %c0_i32 = arith.constant 0 : i32
    %0 = arith.cmpi eq, %arg2, %c0_i32 : i32
    %1 = arith.extui %0 : i1 to i32
    %c0_i32_0 = arith.constant 0 : i32
    %2 = arith.cmpi ne, %1, %c0_i32_0 : i32
    scf.if %2 {
      %cst_10 = arith.constant 0.000000e+00 : f32
      %12 = vector.broadcast %cst_10 : f32 to vector<16x32xf32>
      %c0_11 = arith.constant 0 : index
      %c0_12 = arith.constant 0 : index
      %13 = vector.load %arg7[%c0_11, %c0_12] : memref<16x32xf32, #tpu.memory_space<vmem>>, vector<16x32xf32>
      tpu.vector_store %arg7[%c0_11, %c0_12], %12 {strides = array<i32>} : memref<16x32xf32, #tpu.memory_space<vmem>>, vector<16x32xf32>,
    } else {
    }
    %c0 = arith.constant 0 : index
    %c0_1 = arith.constant 0 : index
    %3 = vector.load %arg3[%c0, %c0_1] : memref<16x32xbf16, #tpu.memory_space<vmem>>, vector<16x32xbf16>
    %c0_2 = arith.constant 0 : index
    %c0_3 = arith.constant 0 : index
    %4 = vector.load %arg4[%c0_2, %c0_3] : memref<32x32xbf16, #tpu.memory_space<vmem>>, vector<32x32xbf16>
    %c0_4 = arith.constant 0 : index
    %c0_5 = arith.constant 0 : index
    %5 = vector.load %arg7[%c0_4, %c0_5] : memref<16x32xf32, #tpu.memory_space<vmem>>, vector<16x32xf32>
    %cst = arith.constant dense<0.000000e+00> : vector<16x32xf32>
    %6 = tpu.matmul %3, %4, %cst {dimension_numbers = #tpu.dot_dimension_numbers<[1], [0], [0], [1], [0, 0, 1, 1], [], []>} : vector<16x32xbf16>, vector<32x32xbf16>, vector<16x32xf32> -> vector<16x32xf32>
    %7 = arith.addf %5, %6 : vector<16x32xf32>
    %c0_6 = arith.constant 0 : index
    %c0_7 = arith.constant 0 : index
    %8 = vector.load %arg7[%c0_6, %c0_7] : memref<16x32xf32, #tpu.memory_space<vmem>>, vector<16x32xf32>
    tpu.vector_store %arg7[%c0_6, %c0_7], %7 {strides = array<i32>} : memref<16x32xf32, #tpu.memory_space<vmem>>, vector<16x32xf32>,
    %c0_i32_8 = arith.constant 0 : i32
    %9 = arith.cmpi eq, %arg2, %c0_i32_8 : i32
    %10 = arith.extui %9 : i1 to i32
    %c0_i32_9 = arith.constant 0 : i32
    %11 = arith.cmpi ne, %10, %c0_i32_9 : i32
    scf.if %11 {
      %c0_10 = arith.constant 0 : index
      %c0_11 = arith.constant 0 : index
      %12 = vector.load %arg7[%c0_10, %c0_11] : memref<16x32xf32, #tpu.memory_space<vmem>>, vector<16x32xf32>
      %c0_12 = arith.constant 0 : index
      %c0_13 = arith.constant 0 : index
      %13 = vector.load %arg5[%c0_12, %c0_13] : memref<1x32xf32, #tpu.memory_space<vmem>>, vector<1x32xf32>
      %14 = vector.broadcast %13 : vector<1x32xf32> to vector<16x32xf32>
      %15 = arith.addf %12, %14 : vector<16x32xf32>
      %16 = arith.truncf %15 : vector<16x32xf32> to vector<16x32xbf16>
      %c0_14 = arith.constant 0 : index
      %c0_15 = arith.constant 0 : index
      %17 = vector.load %arg6[%c0_14, %c0_15] : memref<16x32xbf16, #tpu.memory_space<vmem>>, vector<16x32xbf16>
      tpu.vector_store %arg6[%c0_14, %c0_15], %16 {strides = array<i32>} : memref<16x32xbf16, #tpu.memory_space<vmem>>, vector<16x32xbf16>,
    } else {
    }
    return
  }
  func.func @transform_0(%arg0: i32, %arg1: i32, %arg2: i32) -> (i32, i32) {
    %c0_i32 = arith.constant 0 : i32
    return %arg0, %arg2 : i32, i32
  }
  func.func @transform_1(%arg0: i32, %arg1: i32, %arg2: i32) -> (i32, i32) {
    %c0_i32 = arith.constant 0 : i32
    return %arg2, %arg1 : i32, i32
  }
  func.func @transform_2(%arg0: i32, %arg1: i32, %arg2: i32) -> (i32, i32) {
    %c0_i32 = arith.constant 0 : i32
    %c0_i32_0 = arith.constant 0 : i32
    return %c0_i32, %arg1 : i32, i32
  }
  func.func @transform_3(%arg0: i32, %arg1: i32, %arg2: i32) -> (i32, i32) {
    %c0_i32 = arith.constant 0 : i32
    return %arg0, %arg1 : i32, i32
  }
}

module attributes {stable_mosaic.version = 11 : i64} {
  func.func @_linear_add_ln_kernel(%arg0: i32, %arg1: i32, %arg2: memref<16x64xbf16, #tpu.memory_space<vmem>>, %arg3: memref<64x32xbf16, #tpu.memory_space<vmem>>, %arg4: memref<1x32xf32, #tpu.memory_space<vmem>>, %arg5: memref<16x32xbf16, #tpu.memory_space<vmem>>, %arg6: memref<1x32xf32, #tpu.memory_space<vmem>>, %arg7: memref<1x32xf32, #tpu.memory_space<vmem>>, %arg8: memref<16x32xbf16, #tpu.memory_space<vmem>>, %arg9: memref<16x32xf32, #tpu.memory_space<vmem>>) attributes {dimension_semantics = [#tpu.dimension_semantics<parallel>, #tpu.dimension_semantics<arbitrary>], iteration_bounds = array<i64: 1, 1>, scalar_prefetch = 0 : i64, scratch_operands = 1 : i64, tpu.core_type = #tpu.core_type<tc>, window_params = [{transform_indices = @transform_0, window_bounds = array<i64: 16, 64>}, {transform_indices = @transform_1, window_bounds = array<i64: 64, 32>}, {pipeline_mode = #tpu.pipeline_mode<synchronous>, transform_indices = @transform_2, window_bounds = array<i64: 1, 32>}, {transform_indices = @transform_3, window_bounds = array<i64: 16, 32>}, {pipeline_mode = #tpu.pipeline_mode<synchronous>, transform_indices = @transform_4, window_bounds = array<i64: 1, 32>}, {pipeline_mode = #tpu.pipeline_mode<synchronous>, transform_indices = @transform_5, window_bounds = array<i64: 1, 32>}, {transform_indices = @transform_6, window_bounds = array<i64: 16, 32>}]} {
    %c0_i32 = arith.constant 0 : i32
    %0 = arith.cmpi eq, %arg1, %c0_i32 : i32
    %1 = arith.extui %0 : i1 to i32
    %c0_i32_0 = arith.constant 0 : i32
    %2 = arith.cmpi ne, %1, %c0_i32_0 : i32
    scf.if %2 {
      %cst_10 = arith.constant 0.000000e+00 : f32
      %12 = vector.broadcast %cst_10 : f32 to vector<16x32xf32>
      %c0_11 = arith.constant 0 : index
      %c0_12 = arith.constant 0 : index
      %13 = vector.load %arg9[%c0_11, %c0_12] : memref<16x32xf32, #tpu.memory_space<vmem>>, vector<16x32xf32>
      tpu.vector_store %arg9[%c0_11, %c0_12], %12 {strides = array<i32>} : memref<16x32xf32, #tpu.memory_space<vmem>>, vector<16x32xf32>,
    } else {
    }
    %c0 = arith.constant 0 : index
    %c0_1 = arith.constant 0 : index
    %3 = vector.load %arg2[%c0, %c0_1] : memref<16x64xbf16, #tpu.memory_space<vmem>>, vector<16x64xbf16>
    %c0_2 = arith.constant 0 : index
    %c0_3 = arith.constant 0 : index
    %4 = vector.load %arg3[%c0_2, %c0_3] : memref<64x32xbf16, #tpu.memory_space<vmem>>, vector<64x32xbf16>
    %c0_4 = arith.constant 0 : index
    %c0_5 = arith.constant 0 : index
    %5 = vector.load %arg9[%c0_4, %c0_5] : memref<16x32xf32, #tpu.memory_space<vmem>>, vector<16x32xf32>
    %cst = arith.constant dense<0.000000e+00> : vector<16x32xf32>
    %6 = tpu.matmul %3, %4, %cst {dimension_numbers = #tpu.dot_dimension_numbers<[1], [0], [0], [1], [0, 0, 1, 1], [], []>} : vector<16x64xbf16>, vector<64x32xbf16>, vector<16x32xf32> -> vector<16x32xf32>
    %7 = arith.addf %5, %6 : vector<16x32xf32>
    %c0_6 = arith.constant 0 : index
    %c0_7 = arith.constant 0 : index
    %8 = vector.load %arg9[%c0_6, %c0_7] : memref<16x32xf32, #tpu.memory_space<vmem>>, vector<16x32xf32>
    tpu.vector_store %arg9[%c0_6, %c0_7], %7 {strides = array<i32>} : memref<16x32xf32, #tpu.memory_space<vmem>>, vector<16x32xf32>,
    %c0_i32_8 = arith.constant 0 : i32
    %9 = arith.cmpi eq, %arg1, %c0_i32_8 : i32
    %10 = arith.extui %9 : i1 to i32
    %c0_i32_9 = arith.constant 0 : i32
    %11 = arith.cmpi ne, %10, %c0_i32_9 : i32
    scf.if %11 {
      %c0_10 = arith.constant 0 : index
      %c0_11 = arith.constant 0 : index
      %12 = vector.load %arg9[%c0_10, %c0_11] : memref<16x32xf32, #tpu.memory_space<vmem>>, vector<16x32xf32>
      %c0_12 = arith.constant 0 : index
      %c0_13 = arith.constant 0 : index
      %13 = vector.load %arg4[%c0_12, %c0_13] : memref<1x32xf32, #tpu.memory_space<vmem>>, vector<1x32xf32>
      %14 = vector.broadcast %13 : vector<1x32xf32> to vector<16x32xf32>
      %15 = arith.addf %12, %14 : vector<16x32xf32>
      %c0_14 = arith.constant 0 : index
      %c0_15 = arith.constant 0 : index
      %16 = vector.load %arg5[%c0_14, %c0_15] : memref<16x32xbf16, #tpu.memory_space<vmem>>, vector<16x32xbf16>
      %17 = arith.extf %16 : vector<16x32xbf16> to vector<16x32xf32>
      %18 = arith.addf %15, %17 : vector<16x32xf32>
      %cst_16 = arith.constant dense<0.000000e+00> : vector<16xf32>
      %19 = vector.multi_reduction <add>, %18, %cst_16 [1] : vector<16x32xf32> to vector<16xf32>
      %20 = vector.shape_cast %19 : vector<16xf32> to vector<16x1xf32>
      %cst_17 = arith.constant 3.200000e+01 : f32
      %21 = vector.broadcast %cst_17 : f32 to vector<16x1xf32>
      %22 = arith.divf %20, %21 : vector<16x1xf32>
      %23 = vector.broadcast %22 : vector<16x1xf32> to vector<16x32xf32>
      %24 = arith.subf %18, %23 : vector<16x32xf32>
      %25 = arith.mulf %24, %24 : vector<16x32xf32>
      %cst_18 = arith.constant dense<0.000000e+00> : vector<16xf32>
      %26 = vector.multi_reduction <add>, %25, %cst_18 [1] : vector<16x32xf32> to vector<16xf32>
      %27 = vector.shape_cast %26 : vector<16xf32> to vector<16x1xf32>
      %cst_19 = arith.constant 3.200000e+01 : f32
      %28 = vector.broadcast %cst_19 : f32 to vector<16x1xf32>
      %29 = arith.divf %27, %28 : vector<16x1xf32>
      %30 = vector.broadcast %22 : vector<16x1xf32> to vector<16x32xf32>
      %31 = arith.subf %18, %30 : vector<16x32xf32>
      %cst_20 = arith.constant 9.99999974E-6 : f32
      %32 = vector.broadcast %cst_20 : f32 to vector<16x1xf32>
      %33 = arith.addf %29, %32 : vector<16x1xf32>
      %34 = math.rsqrt %33 : vector<16x1xf32>
      %35 = vector.broadcast %34 : vector<16x1xf32> to vector<16x32xf32>
      %36 = arith.mulf %31, %35 : vector<16x32xf32>
      %c0_21 = arith.constant 0 : index
      %c0_22 = arith.constant 0 : index
      %37 = vector.load %arg6[%c0_21, %c0_22] : memref<1x32xf32, #tpu.memory_space<vmem>>, vector<1x32xf32>
      %38 = vector.broadcast %37 : vector<1x32xf32> to vector<16x32xf32>
      %39 = arith.mulf %36, %38 : vector<16x32xf32>
      %c0_23 = arith.constant 0 : index
      %c0_24 = arith.constant 0 : index
      %40 = vector.load %arg7[%c0_23, %c0_24] : memref<1x32xf32, #tpu.memory_space<vmem>>, vector<1x32xf32>
      %41 = vector.broadcast %40 : vector<1x32xf32> to vector<16x32xf32>
      %42 = arith.addf %39, %41 : vector<16x32xf32>
      %43 = arith.truncf %42 : vector<16x32xf32> to vector<16x32xbf16>
      %c0_25 = arith.constant 0 : index
      %c0_26 = arith.constant 0 : index
      %44 = vector.load %arg8[%c0_25, %c0_26] : memref<16x32xbf16, #tpu.memory_space<vmem>>, vector<16x32xbf16>
      tpu.vector_store %arg8[%c0_25, %c0_26], %43 {strides = array<i32>} : memref<16x32xbf16, #tpu.memory_space<vmem>>, vector<16x32xbf16>,
    } else {
    }
    return
  }
  func.func @transform_0(%arg0: i32, %arg1: i32) -> (i32, i32) {
    %c0_i32 = arith.constant 0 : i32
    return %arg0, %arg1 : i32, i32
  }
  func.func @transform_1(%arg0: i32, %arg1: i32) -> (i32, i32) {
    %c0_i32 = arith.constant 0 : i32
    %c0_i32_0 = arith.constant 0 : i32
    return %arg1, %c0_i32 : i32, i32
  }
  func.func @transform_2(%arg0: i32, %arg1: i32) -> (i32, i32) {
    %c0_i32 = arith.constant 0 : i32
    %c0_i32_0 = arith.constant 0 : i32
    %c0_i32_1 = arith.constant 0 : i32
    return %c0_i32, %c0_i32_0 : i32, i32
  }
  func.func @transform_3(%arg0: i32, %arg1: i32) -> (i32, i32) {
    %c0_i32 = arith.constant 0 : i32
    %c0_i32_0 = arith.constant 0 : i32
    return %arg0, %c0_i32 : i32, i32
  }
  func.func @transform_4(%arg0: i32, %arg1: i32) -> (i32, i32) {
    %c0_i32 = arith.constant 0 : i32
    %c0_i32_0 = arith.constant 0 : i32
    %c0_i32_1 = arith.constant 0 : i32
    return %c0_i32, %c0_i32_0 : i32, i32
  }
  func.func @transform_5(%arg0: i32, %arg1: i32) -> (i32, i32) {
    %c0_i32 = arith.constant 0 : i32
    %c0_i32_0 = arith.constant 0 : i32
    %c0_i32_1 = arith.constant 0 : i32
    return %c0_i32, %c0_i32_0 : i32, i32
  }
  func.func @transform_6(%arg0: i32, %arg1: i32) -> (i32, i32) {
    %c0_i32 = arith.constant 0 : i32
    %c0_i32_0 = arith.constant 0 : i32
    return %arg0, %c0_i32 : i32, i32
  }
}

module attributes {stable_mosaic.version = 11 : i64} {
  func.func @_ln_kernel(%arg0: i32, %arg1: memref<16x32xbf16, #tpu.memory_space<vmem>>, %arg2: memref<1x32xf32, #tpu.memory_space<vmem>>, %arg3: memref<1x32xf32, #tpu.memory_space<vmem>>, %arg4: memref<16x32xbf16, #tpu.memory_space<vmem>>) attributes {dimension_semantics = [#tpu.dimension_semantics<parallel>], iteration_bounds = array<i64: 1>, scalar_prefetch = 0 : i64, scratch_operands = 0 : i64, tpu.core_type = #tpu.core_type<tc>, window_params = [{transform_indices = @transform_0, window_bounds = array<i64: 16, 32>}, {pipeline_mode = #tpu.pipeline_mode<synchronous>, transform_indices = @transform_1, window_bounds = array<i64: 1, 32>}, {pipeline_mode = #tpu.pipeline_mode<synchronous>, transform_indices = @transform_2, window_bounds = array<i64: 1, 32>}, {transform_indices = @transform_3, window_bounds = array<i64: 16, 32>}]} {
    %c0 = arith.constant 0 : index
    %c0_0 = arith.constant 0 : index
    %0 = vector.load %arg1[%c0, %c0_0] : memref<16x32xbf16, #tpu.memory_space<vmem>>, vector<16x32xbf16>
    %1 = arith.extf %0 : vector<16x32xbf16> to vector<16x32xf32>
    %cst = arith.constant dense<0.000000e+00> : vector<16xf32>
    %2 = vector.multi_reduction <add>, %1, %cst [1] : vector<16x32xf32> to vector<16xf32>
    %3 = vector.shape_cast %2 : vector<16xf32> to vector<16x1xf32>
    %cst_1 = arith.constant 3.200000e+01 : f32
    %4 = vector.broadcast %cst_1 : f32 to vector<16x1xf32>
    %5 = arith.divf %3, %4 : vector<16x1xf32>
    %6 = vector.broadcast %5 : vector<16x1xf32> to vector<16x32xf32>
    %7 = arith.subf %1, %6 : vector<16x32xf32>
    %8 = arith.mulf %7, %7 : vector<16x32xf32>
    %cst_2 = arith.constant dense<0.000000e+00> : vector<16xf32>
    %9 = vector.multi_reduction <add>, %8, %cst_2 [1] : vector<16x32xf32> to vector<16xf32>
    %10 = vector.shape_cast %9 : vector<16xf32> to vector<16x1xf32>
    %cst_3 = arith.constant 3.200000e+01 : f32
    %11 = vector.broadcast %cst_3 : f32 to vector<16x1xf32>
    %12 = arith.divf %10, %11 : vector<16x1xf32>
    %13 = vector.broadcast %5 : vector<16x1xf32> to vector<16x32xf32>
    %14 = arith.subf %1, %13 : vector<16x32xf32>
    %cst_4 = arith.constant 9.99999974E-6 : f32
    %15 = vector.broadcast %cst_4 : f32 to vector<16x1xf32>
    %16 = arith.addf %12, %15 : vector<16x1xf32>
    %17 = math.rsqrt %16 : vector<16x1xf32>
    %18 = vector.broadcast %17 : vector<16x1xf32> to vector<16x32xf32>
    %19 = arith.mulf %14, %18 : vector<16x32xf32>
    %c0_5 = arith.constant 0 : index
    %c0_6 = arith.constant 0 : index
    %20 = vector.load %arg2[%c0_5, %c0_6] : memref<1x32xf32, #tpu.memory_space<vmem>>, vector<1x32xf32>
    %21 = vector.broadcast %20 : vector<1x32xf32> to vector<16x32xf32>
    %22 = arith.mulf %19, %21 : vector<16x32xf32>
    %c0_7 = arith.constant 0 : index
    %c0_8 = arith.constant 0 : index
    %23 = vector.load %arg3[%c0_7, %c0_8] : memref<1x32xf32, #tpu.memory_space<vmem>>, vector<1x32xf32>
    %24 = vector.broadcast %23 : vector<1x32xf32> to vector<16x32xf32>
    %25 = arith.addf %22, %24 : vector<16x32xf32>
    %26 = arith.truncf %25 : vector<16x32xf32> to vector<16x32xbf16>
    %c0_9 = arith.constant 0 : index
    %c0_10 = arith.constant 0 : index
    %27 = vector.load %arg4[%c0_9, %c0_10] : memref<16x32xbf16, #tpu.memory_space<vmem>>, vector<16x32xbf16>
    tpu.vector_store %arg4[%c0_9, %c0_10], %26 {strides = array<i32>} : memref<16x32xbf16, #tpu.memory_space<vmem>>, vector<16x32xbf16>,
    return
  }
  func.func @transform_0(%arg0: i32) -> (i32, i32) {
    %c0_i32 = arith.constant 0 : i32
    %c0_i32_0 = arith.constant 0 : i32
    return %arg0, %c0_i32 : i32, i32
  }
  func.func @transform_1(%arg0: i32) -> (i32, i32) {
    %c0_i32 = arith.constant 0 : i32
    %c0_i32_0 = arith.constant 0 : i32
    %c0_i32_1 = arith.constant 0 : i32
    return %c0_i32, %c0_i32_0 : i32, i32
  }
  func.func @transform_2(%arg0: i32) -> (i32, i32) {
    %c0_i32 = arith.constant 0 : i32
    %c0_i32_0 = arith.constant 0 : i32
    %c0_i32_1 = arith.constant 0 : i32
    return %c0_i32, %c0_i32_0 : i32, i32
  }
  func.func @transform_3(%arg0: i32) -> (i32, i32) {
    %c0_i32 = arith.constant 0 : i32
    %c0_i32_0 = arith.constant 0 : i32
    return %arg0, %c0_i32 : i32, i32
  }
}

module attributes {stable_mosaic.version = 11 : i64} {
  func.func @_linear_kernel(%arg0: i32, %arg1: i32, %arg2: i32, %arg3: memref<16x32xbf16, #tpu.memory_space<vmem>>, %arg4: memref<32x64xbf16, #tpu.memory_space<vmem>>, %arg5: memref<1x64xf32, #tpu.memory_space<vmem>>, %arg6: memref<16x64xbf16, #tpu.memory_space<vmem>>, %arg7: memref<16x64xf32, #tpu.memory_space<vmem>>) attributes {dimension_semantics = [#tpu.dimension_semantics<parallel>, #tpu.dimension_semantics<parallel>, #tpu.dimension_semantics<arbitrary>], iteration_bounds = array<i64: 1, 1, 1>, scalar_prefetch = 0 : i64, scratch_operands = 1 : i64, tpu.core_type = #tpu.core_type<tc>, window_params = [{transform_indices = @transform_0, window_bounds = array<i64: 16, 32>}, {transform_indices = @transform_1, window_bounds = array<i64: 32, 64>}, {transform_indices = @transform_2, window_bounds = array<i64: 1, 64>}, {transform_indices = @transform_3, window_bounds = array<i64: 16, 64>}]} {
    %c0_i32 = arith.constant 0 : i32
    %0 = arith.cmpi eq, %arg2, %c0_i32 : i32
    %1 = arith.extui %0 : i1 to i32
    %c0_i32_0 = arith.constant 0 : i32
    %2 = arith.cmpi ne, %1, %c0_i32_0 : i32
    scf.if %2 {
      %cst_10 = arith.constant 0.000000e+00 : f32
      %12 = vector.broadcast %cst_10 : f32 to vector<16x64xf32>
      %c0_11 = arith.constant 0 : index
      %c0_12 = arith.constant 0 : index
      %13 = vector.load %arg7[%c0_11, %c0_12] : memref<16x64xf32, #tpu.memory_space<vmem>>, vector<16x64xf32>
      tpu.vector_store %arg7[%c0_11, %c0_12], %12 {strides = array<i32>} : memref<16x64xf32, #tpu.memory_space<vmem>>, vector<16x64xf32>,
    } else {
    }
    %c0 = arith.constant 0 : index
    %c0_1 = arith.constant 0 : index
    %3 = vector.load %arg3[%c0, %c0_1] : memref<16x32xbf16, #tpu.memory_space<vmem>>, vector<16x32xbf16>
    %c0_2 = arith.constant 0 : index
    %c0_3 = arith.constant 0 : index
    %4 = vector.load %arg4[%c0_2, %c0_3] : memref<32x64xbf16, #tpu.memory_space<vmem>>, vector<32x64xbf16>
    %c0_4 = arith.constant 0 : index
    %c0_5 = arith.constant 0 : index
    %5 = vector.load %arg7[%c0_4, %c0_5] : memref<16x64xf32, #tpu.memory_space<vmem>>, vector<16x64xf32>
    %cst = arith.constant dense<0.000000e+00> : vector<16x64xf32>
    %6 = tpu.matmul %3, %4, %cst {dimension_numbers = #tpu.dot_dimension_numbers<[1], [0], [0], [1], [0, 0, 1, 1], [], []>} : vector<16x32xbf16>, vector<32x64xbf16>, vector<16x64xf32> -> vector<16x64xf32>
    %7 = arith.addf %5, %6 : vector<16x64xf32>
    %c0_6 = arith.constant 0 : index
    %c0_7 = arith.constant 0 : index
    %8 = vector.load %arg7[%c0_6, %c0_7] : memref<16x64xf32, #tpu.memory_space<vmem>>, vector<16x64xf32>
    tpu.vector_store %arg7[%c0_6, %c0_7], %7 {strides = array<i32>} : memref<16x64xf32, #tpu.memory_space<vmem>>, vector<16x64xf32>,
    %c0_i32_8 = arith.constant 0 : i32
    %9 = arith.cmpi eq, %arg2, %c0_i32_8 : i32
    %10 = arith.extui %9 : i1 to i32
    %c0_i32_9 = arith.constant 0 : i32
    %11 = arith.cmpi ne, %10, %c0_i32_9 : i32
    scf.if %11 {
      %c0_10 = arith.constant 0 : index
      %c0_11 = arith.constant 0 : index
      %12 = vector.load %arg7[%c0_10, %c0_11] : memref<16x64xf32, #tpu.memory_space<vmem>>, vector<16x64xf32>
      %c0_12 = arith.constant 0 : index
      %c0_13 = arith.constant 0 : index
      %13 = vector.load %arg5[%c0_12, %c0_13] : memref<1x64xf32, #tpu.memory_space<vmem>>, vector<1x64xf32>
      %14 = vector.broadcast %13 : vector<1x64xf32> to vector<16x64xf32>
      %15 = arith.addf %12, %14 : vector<16x64xf32>
      %16 = arith.truncf %15 : vector<16x64xf32> to vector<16x64xbf16>
      %c0_14 = arith.constant 0 : index
      %c0_15 = arith.constant 0 : index
      %17 = vector.load %arg6[%c0_14, %c0_15] : memref<16x64xbf16, #tpu.memory_space<vmem>>, vector<16x64xbf16>
      tpu.vector_store %arg6[%c0_14, %c0_15], %16 {strides = array<i32>} : memref<16x64xbf16, #tpu.memory_space<vmem>>, vector<16x64xbf16>,
    } else {
    }
    return
  }
  func.func @transform_0(%arg0: i32, %arg1: i32, %arg2: i32) -> (i32, i32) {
    %c0_i32 = arith.constant 0 : i32
    return %arg0, %arg2 : i32, i32
  }
  func.func @transform_1(%arg0: i32, %arg1: i32, %arg2: i32) -> (i32, i32) {
    %c0_i32 = arith.constant 0 : i32
    return %arg2, %arg1 : i32, i32
  }
  func.func @transform_2(%arg0: i32, %arg1: i32, %arg2: i32) -> (i32, i32) {
    %c0_i32 = arith.constant 0 : i32
    %c0_i32_0 = arith.constant 0 : i32
    return %c0_i32, %arg1 : i32, i32
  }
  func.func @transform_3(%arg0: i32, %arg1: i32, %arg2: i32) -> (i32, i32) {
    %c0_i32 = arith.constant 0 : i32
    return %arg0, %arg1 : i32, i32
  }
}

module attributes {stable_mosaic.version = 11 : i64} {
  func.func @_cross_attn_kernel(%arg0: i32, %arg1: memref<1x8x32xbf16, #tpu.memory_space<vmem>>, %arg2: memref<1x8x64xbf16, #tpu.memory_space<vmem>>, %arg3: memref<1x8x32xbf16, #tpu.memory_space<vmem>>) attributes {dimension_semantics = [#tpu.dimension_semantics<parallel>], iteration_bounds = array<i64: 2>, scalar_prefetch = 0 : i64, scratch_operands = 0 : i64, tpu.core_type = #tpu.core_type<tc>, window_params = [{transform_indices = @transform_0, window_bounds = array<i64: 1, 8, 32>}, {transform_indices = @transform_1, window_bounds = array<i64: 1, 8, 64>}, {transform_indices = @transform_2, window_bounds = array<i64: 1, 8, 32>}]} {
    %c0 = arith.constant 0 : index
    %c0_0 = arith.constant 0 : index
    %c0_1 = arith.constant 0 : index
    %0 = vector.load %arg1[%c0, %c0_0, %c0_1] : memref<1x8x32xbf16, #tpu.memory_space<vmem>>, vector<1x8x32xbf16>
    %1 = vector.shape_cast %0 : vector<1x8x32xbf16> to vector<8x32xbf16>
    %c0_2 = arith.constant 0 : index
    %c0_3 = arith.constant 0 : index
    %c0_4 = arith.constant 0 : index
    %2 = vector.load %arg2[%c0_2, %c0_3, %c0_4] : memref<1x8x64xbf16, #tpu.memory_space<vmem>>, vector<1x8x64xbf16>
    %3 = vector.shape_cast %2 : vector<1x8x64xbf16> to vector<8x64xbf16>
    %4 = vector.extract_strided_slice %1 {offsets = [0, 0], sizes = [8, 8], strides = [1, 1]} : vector<8x32xbf16> to vector<8x8xbf16>
    %cst = arith.constant 3.535160e-01 : bf16
    %5 = vector.broadcast %cst : bf16 to vector<8x8xbf16>
    %6 = arith.mulf %4, %5 : vector<8x8xbf16>
    %7 = vector.extract_strided_slice %3 {offsets = [0, 0], sizes = [8, 8], strides = [1, 1]} : vector<8x64xbf16> to vector<8x8xbf16>
    %8 = vector.extract_strided_slice %3 {offsets = [0, 32], sizes = [8, 8], strides = [1, 1]} : vector<8x64xbf16> to vector<8x8xbf16>
    %cst_5 = arith.constant dense<0.000000e+00> : vector<8x8xf32>
    %9 = tpu.matmul %6, %7, %cst_5 {dimension_numbers = #tpu.dot_dimension_numbers<[1], [1], [0], [0], [0, 0, 1, 0], [], []>} : vector<8x8xbf16>, vector<8x8xbf16>, vector<8x8xf32> -> vector<8x8xf32>
    %cst_6 = arith.constant dense<0xFF800000> : vector<8xf32>
    %10 = vector.multi_reduction <maximumf>, %9, %cst_6 [1] : vector<8x8xf32> to vector<8xf32>
    %11 = vector.shape_cast %10 : vector<8xf32> to vector<8x1xf32>
    %12 = vector.broadcast %11 : vector<8x1xf32> to vector<8x8xf32>
    %13 = arith.subf %9, %12 : vector<8x8xf32>
    %14 = math.exp %13 : vector<8x8xf32>
    %cst_7 = arith.constant dense<0.000000e+00> : vector<8xf32>
    %15 = vector.multi_reduction <add>, %14, %cst_7 [1] : vector<8x8xf32> to vector<8xf32>
    %16 = vector.shape_cast %15 : vector<8xf32> to vector<8x1xf32>
    %17 = tpu.reciprocal %16 {approx = true} : vector<8x1xf32> -> vector<8x1xf32>
    %18 = vector.broadcast %17 : vector<8x1xf32> to vector<8x8xf32>
    %19 = arith.mulf %14, %18 : vector<8x8xf32>
    %20 = arith.truncf %19 : vector<8x8xf32> to vector<8x8xbf16>
    %cst_8 = arith.constant dense<0.000000e+00> : vector<8x8xf32>
    %21 = tpu.matmul %20, %8, %cst_8 {dimension_numbers = #tpu.dot_dimension_numbers<[1], [0], [0], [1], [0, 0, 1, 1], [], []>} : vector<8x8xbf16>, vector<8x8xbf16>, vector<8x8xf32> -> vector<8x8xf32>
    %22 = vector.extract_strided_slice %1 {offsets = [0, 8], sizes = [8, 8], strides = [1, 1]} : vector<8x32xbf16> to vector<8x8xbf16>
    %cst_9 = arith.constant 3.535160e-01 : bf16
    %23 = vector.broadcast %cst_9 : bf16 to vector<8x8xbf16>
    %24 = arith.mulf %22, %23 : vector<8x8xbf16>
    %25 = vector.extract_strided_slice %3 {offsets = [0, 8], sizes = [8, 8], strides = [1, 1]} : vector<8x64xbf16> to vector<8x8xbf16>
    %26 = vector.extract_strided_slice %3 {offsets = [0, 40], sizes = [8, 8], strides = [1, 1]} : vector<8x64xbf16> to vector<8x8xbf16>
    %cst_10 = arith.constant dense<0.000000e+00> : vector<8x8xf32>
    %27 = tpu.matmul %24, %25, %cst_10 {dimension_numbers = #tpu.dot_dimension_numbers<[1], [1], [0], [0], [0, 0, 1, 0], [], []>} : vector<8x8xbf16>, vector<8x8xbf16>, vector<8x8xf32> -> vector<8x8xf32>
    %cst_11 = arith.constant dense<0xFF800000> : vector<8xf32>
    %28 = vector.multi_reduction <maximumf>, %27, %cst_11 [1] : vector<8x8xf32> to vector<8xf32>
    %29 = vector.shape_cast %28 : vector<8xf32> to vector<8x1xf32>
    %30 = vector.broadcast %29 : vector<8x1xf32> to vector<8x8xf32>
    %31 = arith.subf %27, %30 : vector<8x8xf32>
    %32 = math.exp %31 : vector<8x8xf32>
    %cst_12 = arith.constant dense<0.000000e+00> : vector<8xf32>
    %33 = vector.multi_reduction <add>, %32, %cst_12 [1] : vector<8x8xf32> to vector<8xf32>
    %34 = vector.shape_cast %33 : vector<8xf32> to vector<8x1xf32>
    %35 = tpu.reciprocal %34 {approx = true} : vector<8x1xf32> -> vector<8x1xf32>
    %36 = vector.broadcast %35 : vector<8x1xf32> to vector<8x8xf32>
    %37 = arith.mulf %32, %36 : vector<8x8xf32>
    %38 = arith.truncf %37 : vector<8x8xf32> to vector<8x8xbf16>
    %cst_13 = arith.constant dense<0.000000e+00> : vector<8x8xf32>
    %39 = tpu.matmul %38, %26, %cst_13 {dimension_numbers = #tpu.dot_dimension_numbers<[1], [0], [0], [1], [0, 0, 1, 1], [], []>} : vector<8x8xbf16>, vector<8x8xbf16>, vector<8x8xf32> -> vector<8x8xf32>
    %40 = vector.extract_strided_slice %1 {offsets = [0, 16], sizes = [8, 8], strides = [1, 1]} : vector<8x32xbf16> to vector<8x8xbf16>
    %cst_14 = arith.constant 3.535160e-01 : bf16
    %41 = vector.broadcast %cst_14 : bf16 to vector<8x8xbf16>
    %42 = arith.mulf %40, %41 : vector<8x8xbf16>
    %43 = vector.extract_strided_slice %3 {offsets = [0, 16], sizes = [8, 8], strides = [1, 1]} : vector<8x64xbf16> to vector<8x8xbf16>
    %44 = vector.extract_strided_slice %3 {offsets = [0, 48], sizes = [8, 8], strides = [1, 1]} : vector<8x64xbf16> to vector<8x8xbf16>
    %cst_15 = arith.constant dense<0.000000e+00> : vector<8x8xf32>
    %45 = tpu.matmul %42, %43, %cst_15 {dimension_numbers = #tpu.dot_dimension_numbers<[1], [1], [0], [0], [0, 0, 1, 0], [], []>} : vector<8x8xbf16>, vector<8x8xbf16>, vector<8x8xf32> -> vector<8x8xf32>
    %cst_16 = arith.constant dense<0xFF800000> : vector<8xf32>
    %46 = vector.multi_reduction <maximumf>, %45, %cst_16 [1] : vector<8x8xf32> to vector<8xf32>
    %47 = vector.shape_cast %46 : vector<8xf32> to vector<8x1xf32>
    %48 = vector.broadcast %47 : vector<8x1xf32> to vector<8x8xf32>
    %49 = arith.subf %45, %48 : vector<8x8xf32>
    %50 = math.exp %49 : vector<8x8xf32>
    %cst_17 = arith.constant dense<0.000000e+00> : vector<8xf32>
    %51 = vector.multi_reduction <add>, %50, %cst_17 [1] : vector<8x8xf32> to vector<8xf32>
    %52 = vector.shape_cast %51 : vector<8xf32> to vector<8x1xf32>
    %53 = tpu.reciprocal %52 {approx = true} : vector<8x1xf32> -> vector<8x1xf32>
    %54 = vector.broadcast %53 : vector<8x1xf32> to vector<8x8xf32>
    %55 = arith.mulf %50, %54 : vector<8x8xf32>
    %56 = arith.truncf %55 : vector<8x8xf32> to vector<8x8xbf16>
    %cst_18 = arith.constant dense<0.000000e+00> : vector<8x8xf32>
    %57 = tpu.matmul %56, %44, %cst_18 {dimension_numbers = #tpu.dot_dimension_numbers<[1], [0], [0], [1], [0, 0, 1, 1], [], []>} : vector<8x8xbf16>, vector<8x8xbf16>, vector<8x8xf32> -> vector<8x8xf32>
    %58 = vector.extract_strided_slice %1 {offsets = [0, 24], sizes = [8, 8], strides = [1, 1]} : vector<8x32xbf16> to vector<8x8xbf16>
    %cst_19 = arith.constant 3.535160e-01 : bf16
    %59 = vector.broadcast %cst_19 : bf16 to vector<8x8xbf16>
    %60 = arith.mulf %58, %59 : vector<8x8xbf16>
    %61 = vector.extract_strided_slice %3 {offsets = [0, 24], sizes = [8, 8], strides = [1, 1]} : vector<8x64xbf16> to vector<8x8xbf16>
    %62 = vector.extract_strided_slice %3 {offsets = [0, 56], sizes = [8, 8], strides = [1, 1]} : vector<8x64xbf16> to vector<8x8xbf16>
    %cst_20 = arith.constant dense<0.000000e+00> : vector<8x8xf32>
    %63 = tpu.matmul %60, %61, %cst_20 {dimension_numbers = #tpu.dot_dimension_numbers<[1], [1], [0], [0], [0, 0, 1, 0], [], []>} : vector<8x8xbf16>, vector<8x8xbf16>, vector<8x8xf32> -> vector<8x8xf32>
    %cst_21 = arith.constant dense<0xFF800000> : vector<8xf32>
    %64 = vector.multi_reduction <maximumf>, %63, %cst_21 [1] : vector<8x8xf32> to vector<8xf32>
    %65 = vector.shape_cast %64 : vector<8xf32> to vector<8x1xf32>
    %66 = vector.broadcast %65 : vector<8x1xf32> to vector<8x8xf32>
    %67 = arith.subf %63, %66 : vector<8x8xf32>
    %68 = math.exp %67 : vector<8x8xf32>
    %cst_22 = arith.constant dense<0.000000e+00> : vector<8xf32>
    %69 = vector.multi_reduction <add>, %68, %cst_22 [1] : vector<8x8xf32> to vector<8xf32>
    %70 = vector.shape_cast %69 : vector<8xf32> to vector<8x1xf32>
    %71 = tpu.reciprocal %70 {approx = true} : vector<8x1xf32> -> vector<8x1xf32>
    %72 = vector.broadcast %71 : vector<8x1xf32> to vector<8x8xf32>
    %73 = arith.mulf %68, %72 : vector<8x8xf32>
    %74 = arith.truncf %73 : vector<8x8xf32> to vector<8x8xbf16>
    %cst_23 = arith.constant dense<0.000000e+00> : vector<8x8xf32>
    %75 = tpu.matmul %74, %62, %cst_23 {dimension_numbers = #tpu.dot_dimension_numbers<[1], [0], [0], [1], [0, 0, 1, 1], [], []>} : vector<8x8xbf16>, vector<8x8xbf16>, vector<8x8xf32> -> vector<8x8xf32>
    %76 = tpu.concatenate %21, %39, %57, %75 in 1 : vector<8x8xf32>, vector<8x8xf32>, vector<8x8xf32>, vector<8x8xf32> -> vector<8x32xf32>
    %77 = arith.truncf %76 : vector<8x32xf32> to vector<8x32xbf16>
    %c0_24 = arith.constant 0 : index
    %c0_25 = arith.constant 0 : index
    %c0_26 = arith.constant 0 : index
    %78 = vector.load %arg3[%c0_24, %c0_25, %c0_26] : memref<1x8x32xbf16, #tpu.memory_space<vmem>>, vector<1x8x32xbf16>
    %79 = vector.shape_cast %78 : vector<1x8x32xbf16> to vector<8x32xbf16>
    %80 = vector.shape_cast %77 : vector<8x32xbf16> to vector<1x8x32xbf16>
    tpu.vector_store %arg3[%c0_24, %c0_25, %c0_26], %80 {strides = array<i32>} : memref<1x8x32xbf16, #tpu.memory_space<vmem>>, vector<1x8x32xbf16>,
    return
  }
  func.func @transform_0(%arg0: i32) -> (i32, i32, i32) {
    %c0_i32 = arith.constant 0 : i32
    %c0_i32_0 = arith.constant 0 : i32
    %c0_i32_1 = arith.constant 0 : i32
    return %arg0, %c0_i32, %c0_i32_0 : i32, i32, i32
  }
  func.func @transform_1(%arg0: i32) -> (i32, i32, i32) {
    %c0_i32 = arith.constant 0 : i32
    %c0_i32_0 = arith.constant 0 : i32
    %c0_i32_1 = arith.constant 0 : i32
    return %arg0, %c0_i32, %c0_i32_0 : i32, i32, i32
  }
  func.func @transform_2(%arg0: i32) -> (i32, i32, i32) {
    %c0_i32 = arith.constant 0 : i32
    %c0_i32_0 = arith.constant 0 : i32
    %c0_i32_1 = arith.constant 0 : i32
    return %arg0, %c0_i32, %c0_i32_0 : i32, i32, i32
  }
}

module attributes {stable_mosaic.version = 11 : i64} {
  func.func @_linear_kernel(%arg0: i32, %arg1: i32, %arg2: i32, %arg3: memref<16x32xbf16, #tpu.memory_space<vmem>>, %arg4: memref<32x128xbf16, #tpu.memory_space<vmem>>, %arg5: memref<1x128xf32, #tpu.memory_space<vmem>>, %arg6: memref<16x128xf32, #tpu.memory_space<vmem>>, %arg7: memref<16x128xf32, #tpu.memory_space<vmem>>) attributes {dimension_semantics = [#tpu.dimension_semantics<parallel>, #tpu.dimension_semantics<parallel>, #tpu.dimension_semantics<arbitrary>], iteration_bounds = array<i64: 1, 1, 1>, scalar_prefetch = 0 : i64, scratch_operands = 1 : i64, tpu.core_type = #tpu.core_type<tc>, window_params = [{transform_indices = @transform_0, window_bounds = array<i64: 16, 32>}, {transform_indices = @transform_1, window_bounds = array<i64: 32, 128>}, {transform_indices = @transform_2, window_bounds = array<i64: 1, 128>}, {transform_indices = @transform_3, window_bounds = array<i64: 16, 128>}]} {
    %c0_i32 = arith.constant 0 : i32
    %0 = arith.cmpi eq, %arg2, %c0_i32 : i32
    %1 = arith.extui %0 : i1 to i32
    %c0_i32_0 = arith.constant 0 : i32
    %2 = arith.cmpi ne, %1, %c0_i32_0 : i32
    scf.if %2 {
      %cst_10 = arith.constant 0.000000e+00 : f32
      %12 = vector.broadcast %cst_10 : f32 to vector<16x128xf32>
      %c0_11 = arith.constant 0 : index
      %c0_12 = arith.constant 0 : index
      %13 = vector.load %arg7[%c0_11, %c0_12] : memref<16x128xf32, #tpu.memory_space<vmem>>, vector<16x128xf32>
      tpu.vector_store %arg7[%c0_11, %c0_12], %12 {strides = array<i32>} : memref<16x128xf32, #tpu.memory_space<vmem>>, vector<16x128xf32>,
    } else {
    }
    %c0 = arith.constant 0 : index
    %c0_1 = arith.constant 0 : index
    %3 = vector.load %arg3[%c0, %c0_1] : memref<16x32xbf16, #tpu.memory_space<vmem>>, vector<16x32xbf16>
    %c0_2 = arith.constant 0 : index
    %c0_3 = arith.constant 0 : index
    %4 = vector.load %arg4[%c0_2, %c0_3] : memref<32x128xbf16, #tpu.memory_space<vmem>>, vector<32x128xbf16>
    %c0_4 = arith.constant 0 : index
    %c0_5 = arith.constant 0 : index
    %5 = vector.load %arg7[%c0_4, %c0_5] : memref<16x128xf32, #tpu.memory_space<vmem>>, vector<16x128xf32>
    %cst = arith.constant dense<0.000000e+00> : vector<16x128xf32>
    %6 = tpu.matmul %3, %4, %cst {dimension_numbers = #tpu.dot_dimension_numbers<[1], [0], [0], [1], [0, 0, 1, 1], [], []>} : vector<16x32xbf16>, vector<32x128xbf16>, vector<16x128xf32> -> vector<16x128xf32>
    %7 = arith.addf %5, %6 : vector<16x128xf32>
    %c0_6 = arith.constant 0 : index
    %c0_7 = arith.constant 0 : index
    %8 = vector.load %arg7[%c0_6, %c0_7] : memref<16x128xf32, #tpu.memory_space<vmem>>, vector<16x128xf32>
    tpu.vector_store %arg7[%c0_6, %c0_7], %7 {strides = array<i32>} : memref<16x128xf32, #tpu.memory_space<vmem>>, vector<16x128xf32>,
    %c0_i32_8 = arith.constant 0 : i32
    %9 = arith.cmpi eq, %arg2, %c0_i32_8 : i32
    %10 = arith.extui %9 : i1 to i32
    %c0_i32_9 = arith.constant 0 : i32
    %11 = arith.cmpi ne, %10, %c0_i32_9 : i32
    scf.if %11 {
      %c0_10 = arith.constant 0 : index
      %c0_11 = arith.constant 0 : index
      %12 = vector.load %arg7[%c0_10, %c0_11] : memref<16x128xf32, #tpu.memory_space<vmem>>, vector<16x128xf32>
      %c0_12 = arith.constant 0 : index
      %c0_13 = arith.constant 0 : index
      %13 = vector.load %arg5[%c0_12, %c0_13] : memref<1x128xf32, #tpu.memory_space<vmem>>, vector<1x128xf32>
      %14 = vector.broadcast %13 : vector<1x128xf32> to vector<16x128xf32>
      %15 = arith.addf %12, %14 : vector<16x128xf32>
      %c0_14 = arith.constant 0 : index
      %c0_15 = arith.constant 0 : index
      %16 = vector.load %arg6[%c0_14, %c0_15] : memref<16x128xf32, #tpu.memory_space<vmem>>, vector<16x128xf32>
      tpu.vector_store %arg6[%c0_14, %c0_15], %15 {strides = array<i32>} : memref<16x128xf32, #tpu.memory_space<vmem>>, vector<16x128xf32>,
    } else {
    }
    return
  }
  func.func @transform_0(%arg0: i32, %arg1: i32, %arg2: i32) -> (i32, i32) {
    %c0_i32 = arith.constant 0 : i32
    return %arg0, %arg2 : i32, i32
  }
  func.func @transform_1(%arg0: i32, %arg1: i32, %arg2: i32) -> (i32, i32) {
    %c0_i32 = arith.constant 0 : i32
    return %arg2, %arg1 : i32, i32
  }
  func.func @transform_2(%arg0: i32, %arg1: i32, %arg2: i32) -> (i32, i32) {
    %c0_i32 = arith.constant 0 : i32
    %c0_i32_0 = arith.constant 0 : i32
    return %c0_i32, %arg1 : i32, i32
  }
  func.func @transform_3(%arg0: i32, %arg1: i32, %arg2: i32) -> (i32, i32) {
    %c0_i32 = arith.constant 0 : i32
    return %arg0, %arg1 : i32, i32
  }
}

</mosaic_0001>

<llo_original>
// kernel: _lambda_.33
$region0: #{_lambda_.33}
  #allocation0 [shape = 'u32[]', space=smem, size = 0x4, offset = 0x4, fixed_abs, tag = 'smem constant byte address 0x4 - core index']
  #allocation1 [shape = 'u32[144,128]{1,0:T(1,128)}', space=vmem, size = 0x12000, scoped, tag = 'internal scratch']
  #allocation2 [shape = 'f32[16,32]{1,0:T(8,128)}', space=vmem, size = 0x2000, scoped, tag = 'scratch operand']
  %s0 = inlined_call_operand.hbm [shape: bf16[16,32], index: 0, kind: input, shape index: {}]
  %s1 = inlined_call_operand.hbm [shape: bf16[32,32], index: 1, kind: input, shape index: {}]
  %s2 = inlined_call_operand.hbm [shape: f32[1,32], index: 2, kind: input, shape index: {}]
  %s3 = inlined_call_operand.hbm [shape: bf16[16,32], index: 3, kind: input, shape index: {}]
  %s4 = inlined_call_operand.hbm [shape: f32[1,32], index: 4, kind: input, shape index: {}]
  %s5 = inlined_call_operand.hbm [shape: f32[1,32], index: 5, kind: input, shape index: {}]
  %s6 = inlined_call_operand.hbm [shape: bf16[16,32], index: 6, kind: output, shape index: {}]
  %s7 = sld [smem:[#allocation0]]
  $region66: #{_lambda_.33} parent=0
    _
  %s9 = ssub.s32 1, %s7
  %s10 = scalar_select 0, %s9, %s7
  $region1: #{_lambda_.33} parent=0
    #allocation3 [shape = 'u8[4096]{0}', space=vmem, size = 0x1000, scoped, tag = 'input window, operand 0, single buffered']
    #allocation4 [shape = 's32[1]{0}', space=sflag, size = 0x4, scoped, tag = 'scoped memory for _lambda_.33']
    #allocation5 [shape = 's32[1]{0}', space=sflag, size = 0x4, scoped, tag = 'scoped memory for _lambda_.33']
    #allocation6 [shape = 'u8[8192]{0}', space=vmem, size = 0x2000, scoped, tag = 'input window, operand 1, single buffered']
    #allocation7 [shape = 's32[1]{0}', space=sflag, size = 0x4, scoped, tag = 'scoped memory for _lambda_.33']
    #allocation8 [shape = 'u8[512]{0}', space=vmem, size = 0x400, scoped, tag = 'input window, operand 2, single buffered']
    #allocation9 [shape = 'u8[4096]{0}', space=vmem, size = 0x1000, scoped, tag = 'input window, operand 3, single buffered']
    #allocation10 [shape = 's32[1]{0}', space=sflag, size = 0x4, scoped, tag = 'scoped memory for _lambda_.33']
    #allocation11 [shape = 'u8[512]{0}', space=vmem, size = 0x400, scoped, tag = 'input window, operand 4, single buffered']
    #allocation12 [shape = 'u8[512]{0}', space=vmem, size = 0x400, scoped, tag = 'input window, operand 5, single buffered']
    #allocation13 [shape = 's32[1]{0}', space=sflag, size = 0x4, scoped, tag = 'scoped memory for _lambda_.33']
    #allocation14 [shape = 'u8[4096]{0}', space=vmem, size = 0x1000, scoped, tag = 'output window, operand 0, single buffered']
    %11 = vsyncpa [#allocation4], 0
    %12 = vsyncpa [#allocation7], 0
    %13 = vsyncpa [#allocation10], 0
    %14 = vsyncpa [#allocation13], 0
    %15 = vsyncpa [#allocation5], 0
    // Predicated region
    $region2: #{_lambda_.33} parent=1 // pred_check
      _
    $region3: #{_lambda_.33} parent=1 // pred_check_branch
      %17 = sbr.rel (0) target = $region5
    $region4: #{_lambda_.33} parent=1 // pred_region
      %s19 = ssub.s32 128, 128
      %20 = vsyncadd [#allocation4], %s19
      %s21 = sshll.u32 [#allocation3], 4
      %s22 = int_to_ptr.vmem [resolvable:$true] %s21
      %27 = dma.hbm_to_vmem [thread:$0]  %s0, 128, %s22, [#allocation4], 64, 64, 4
    $region5: #{_lambda_.33} parent=1 // pred_fallthru
      _
    // Predicated region
    $region6: #{_lambda_.33} parent=1 // pred_check
      _
    $region7: #{_lambda_.33} parent=1 // pred_check_branch
      %29 = sbr.rel (0) target = $region9
    $region8: #{_lambda_.33} parent=1 // pred_region
      %s31 = ssub.s32 256, 256
      %32 = vsyncadd [#allocation7], %s31
      %s33 = sshll.u32 [#allocation6], 4
      %s34 = int_to_ptr.vmem [resolvable:$true] %s33
      %39 = dma.hbm_to_vmem [thread:$0]  %s1, 256, %s34, [#allocation7], 64, 64, 4
    $region9: #{_lambda_.33} parent=1 // pred_fallthru
      _
    // Predicated region
    $region10: #{_lambda_.33} parent=1 // pred_check
      _
    $region11: #{_lambda_.33} parent=1 // pred_check_branch
      %41 = sbr.rel (0) target = $region13
    $region12: #{_lambda_.33} parent=1 // pred_region
      %s43 = ssub.s32 16, 16
      %44 = vsyncadd [#allocation7], %s43
      %s46 = sshll.u32 [#allocation8], 4
      %s47 = int_to_ptr.vmem [resolvable:$true] %s46
      %49 = dma.hbm_to_vmem [thread:$0]  %s2, 16, %s47, [#allocation7]
    $region13: #{_lambda_.33} parent=1 // pred_fallthru
      _
    // Predicated region
    $region14: #{_lambda_.33} parent=1 // pred_check
      _
    $region15: #{_lambda_.33} parent=1 // pred_check_branch
      %51 = sbr.rel (0) target = $region17
    $region16: #{_lambda_.33} parent=1 // pred_region
      %s53 = ssub.s32 128, 128
      %54 = vsyncadd [#allocation10], %s53
      %s55 = sshll.u32 [#allocation9], 4
      %s56 = int_to_ptr.vmem [resolvable:$true] %s55
      %61 = dma.hbm_to_vmem [thread:$0]  %s3, 128, %s56, [#allocation10], 64, 64, 4
    $region17: #{_lambda_.33} parent=1 // pred_fallthru
      _
    // Predicated region
    $region18: #{_lambda_.33} parent=1 // pred_check
      _
    $region19: #{_lambda_.33} parent=1 // pred_check_branch
      %63 = sbr.rel (0) target = $region21
    $region20: #{_lambda_.33} parent=1 // pred_region
      %s65 = ssub.s32 16, 16
      %66 = vsyncadd [#allocation10], %s65
      %s68 = sshll.u32 [#allocation11], 4
      %s69 = int_to_ptr.vmem [resolvable:$true] %s68
      %71 = dma.hbm_to_vmem [thread:$0]  %s4, 16, %s69, [#allocation10]
    $region21: #{_lambda_.33} parent=1 // pred_fallthru
      _
    // Predicated region
    $region22: #{_lambda_.33} parent=1 // pred_check
      _
    $region23: #{_lambda_.33} parent=1 // pred_check_branch
      %73 = sbr.rel (0) target = $region25
    $region24: #{_lambda_.33} parent=1 // pred_region
      %s75 = ssub.s32 16, 16
      %76 = vsyncadd [#allocation13], %s75
      %s78 = sshll.u32 [#allocation12], 4
      %s79 = int_to_ptr.vmem [resolvable:$true] %s78
      %81 = dma.hbm_to_vmem [thread:$0]  %s5, 16, %s79, [#allocation13]
    $region25: #{_lambda_.33} parent=1 // pred_fallthru
      _
    // Predicated region
    $region26: #{_lambda_.33} parent=1 // pred_check
      _
    $region27: #{_lambda_.33} parent=1 // pred_check_branch
      %83 = sbr.rel (0) target = $region29
    $region28: #{_lambda_.33} parent=1 // pred_region
      %84 = dma.done [#allocation4], 128
    $region29: #{_lambda_.33} parent=1 // pred_fallthru
      _
    // Predicated region
    $region30: #{_lambda_.33} parent=1 // pred_check
      _
    $region31: #{_lambda_.33} parent=1 // pred_check_branch
      %86 = sbr.rel (0) target = $region33
    $region32: #{_lambda_.33} parent=1 // pred_region
      %87 = dma.done [#allocation7], 256
    $region33: #{_lambda_.33} parent=1 // pred_fallthru
      _
    // Predicated region
    $region34: #{_lambda_.33} parent=1 // pred_check
      _
    $region35: #{_lambda_.33} parent=1 // pred_check_branch
      %89 = sbr.rel (0) target = $region37
    $region36: #{_lambda_.33} parent=1 // pred_region
      %90 = dma.done [#allocation7], 16
    $region37: #{_lambda_.33} parent=1 // pred_fallthru
      _
    // Predicated region
    $region38: #{_lambda_.33} parent=1 // pred_check
      _
    $region39: #{_lambda_.33} parent=1 // pred_check_branch
      %92 = sbr.rel (0) target = $region41
    $region40: #{_lambda_.33} parent=1 // pred_region
      %93 = dma.done [#allocation10], 128
    $region41: #{_lambda_.33} parent=1 // pred_fallthru
      _
    // Predicated region
    $region42: #{_lambda_.33} parent=1 // pred_check
      _
    $region43: #{_lambda_.33} parent=1 // pred_check_branch
      %95 = sbr.rel (0) target = $region45
    $region44: #{_lambda_.33} parent=1 // pred_region
      %96 = dma.done [#allocation10], 16
    $region45: #{_lambda_.33} parent=1 // pred_fallthru
      _
    // Predicated region
    $region46: #{_lambda_.33} parent=1 // pred_check
      _
    $region47: #{_lambda_.33} parent=1 // pred_check_branch
      %98 = sbr.rel (0) target = $region49
    $region48: #{_lambda_.33} parent=1 // pred_region
      %99 = dma.done [#allocation13], 16
    $region49: #{_lambda_.33} parent=1 // pred_fallthru
      _
    %p101 = scmp.eq.s32.totalorder 0, 0
    // Predicated region
    $region50: #{_lambda_.33} parent=1 // pred_check
      %p102 = pneg %p101
    $region51: #{_lambda_.33} parent=1 // pred_check_branch
      %104 = sbr.rel (%p102) target = $region53
    $region52: #{_lambda_.33} parent=1 // pred_region
      %vm105 = vcmask 261120
      %106 = vst.msk [vmem:[#allocation2] sm:$0xff] %vm105, 0.0
      %107 = vst.msk [vmem:[#allocation2 + $0x8] sm:$0xff] %vm105, 0.0
    $region53: #{_lambda_.33} parent=1 // pred_fallthru
      _
    %v108 = vld [vmem:[#allocation3] sm:$0xf]
    %v109 = vld [vmem:[#allocation3 + $0x4] sm:$0xf]
    %v110 = vld [vmem:[#allocation6] sm:$0xf]
    %v111 = vld [vmem:[#allocation6 + $0x4] sm:$0xf]
    %v112 = vld [vmem:[#allocation6 + $0x8] sm:$0xf]
    %v113 = vld [vmem:[#allocation6 + $0xc] sm:$0xf]
    %v114 = vld [vmem:[#allocation2] sm:$0xff]
    %v115 = vld [vmem:[#allocation2 + $0x8] sm:$0xff]
    %v118 = vunpack.c.l.b16 %v108
    %v119 = vunpack.c.l.b16 %v109
    %v120 = vpack.c.b16 %v119, %v118
    %v125 = vunpack.c.l.b16 %v110
    %v126 = vunpack.c.l.b16 %v111
    %v127 = vunpack.c.l.b16 %v112
    %v128 = vunpack.c.l.b16 %v113
    %v129 = vpack.c.b16 %v126, %v125
    %v130 = vpack.c.b16 %v128, %v127
    %vm133 = vcmask 261120
    %v135 = vsel %vm133, %v120, 0
    %137 = vmatprep.subr.bf16.mxu0 0
    %138 = vmatpush1.bf16.msra.mxu0 %v129
    %139 = vmatprep.subr.bf16.mxu0 0
    %140 = vmatpush1.bf16.msra.mxu0 %v130
    %141 = vmatprep.subr.bf16.mxu0 0
    %142 = vmatpush1.bf16.msra.mxu0 0
    %143 = vmatprep.subr.bf16.mxu0 0
    %144 = vmatpush1.bf16.msra.mxu0 0
    %145 = vmatprep.subr.bf16.mxu0 0
    %146 = vmatpush1.bf16.msra.mxu0 0
    %147 = vmatprep.subr.bf16.mxu0 0
    %148 = vmatpush1.bf16.msra.mxu0 0
    %149 = vmatprep.subr.bf16.mxu0 0
    %150 = vmatpush1.bf16.msra.mxu0 0
    %151 = vmatprep.subr.bf16.mxu0 0
    %152 = vmatpush1.bf16.msra.mxu0 0
    %153 = vmatprep.subr.bf16.mxu0 0
    %154 = vmatpush1.bf16.msra.mxu0 0
    %155 = vmatprep.subr.bf16.mxu0 0
    %156 = vmatpush1.bf16.msra.mxu0 0
    %157 = vmatprep.subr.bf16.mxu0 0
    %158 = vmatpush1.bf16.msra.mxu0 0
    %159 = vmatprep.subr.bf16.mxu0 0
    %160 = vmatpush1.bf16.msra.mxu0 0
    %161 = vmatprep.subr.bf16.mxu0 0
    %162 = vmatpush1.bf16.msra.mxu0 0
    %163 = vmatprep.subr.bf16.mxu0 0
    %164 = vmatpush1.bf16.msra.mxu0 0
    %165 = vmatprep.subr.bf16.mxu0 0
    %166 = vmatpush1.bf16.msra.mxu0 0
    %167 = vmatprep.subr.bf16.mxu0 0
    %168 = vmatpush1.bf16.msra.mxu0 0
    %169 = vmatprep.mubr.bf16.mxu0 0
    %170 = vmatmul.mubr.bf16.gmra.mrb[0].mxu0 %v135
    %v171 = vpop.f32.mrb[0].mxu0
    %v172 = vadd.f32 0.0, %v171
    %v173 = vpop.f32.mrb[0].mxu0
    %v174 = vpop.f32.mrb[0].mxu0
    %v175 = vadd.f32 0.0, %v174
    %v176 = vpop.f32.mrb[0].mxu0
    %177 = vdwg.mxu0
    %v178 = vadd.f32 %v114, %v172
    %v179 = vadd.f32 %v115, %v175
    %180 = vst.msk [vmem:[#allocation2] sm:$0xff] %vm133, %v178
    %181 = vst.msk [vmem:[#allocation2 + $0x8] sm:$0xff] %vm133, %v179
    // Predicated region
    $region54: #{_lambda_.33} parent=1 // pred_check
      %p182 = pneg %p101
    $region55: #{_lambda_.33} parent=1 // pred_check_branch
      %184 = sbr.rel (%p182) target = $region57
    $region56: #{_lambda_.33} parent=1 // pred_region
      %v185 = vld [vmem:[#allocation2] sm:$0xff]
      %v186 = vld [vmem:[#allocation2 + $0x8] sm:$0xff]
      %v187 = vld [vmem:[#allocation8] sm:$0x1]
      %v189 = vlaneseq
      %v190 = vshrl.u32 %v189, 7
      %v191 = vsub.s32 0, %v190
      %v192 = vrot.slane %v187, %v191
      %v194 = vadd.f32 %v185, %v192
      %v195 = vadd.f32 %v186, %v192
      %v196 = vld [vmem:[#allocation9] sm:$0xf]
      %v197 = vld [vmem:[#allocation9 + $0x4] sm:$0xf]
      %v198 = vunpack.c.l.bf16 %v196
      %v199 = vunpack.c.l.bf16 %v197
      %v200 = vadd.f32 %v194, %v198
      %v201 = vadd.f32 %v195, %v199
      %v202 = vsel %vm133, %v200, 0.0
      %203 = vadd.xlane.f32.xlu0 %v202
      %v204 = vpop.xlane.xlu0 %203
      %v205 = vsel %vm133, %v201, 0.0
      %206 = vadd.xlane.f32.xlu0 %v205
      %v207 = vpop.xlane.xlu0 %206
      %v208 = vrcp.pop 32.0
      %v209 = vmul.f32 %v204, %v208
      %v210 = vmul.f32 %v207, %v208
      %v211 = vsub.f32 %v200, %v209
      %v212 = vsub.f32 %v201, %v210
      %v213 = vmul.f32 %v211, %v211
      %v214 = vmul.f32 %v212, %v212
      %v215 = vsel %vm133, %v213, 0.0
      %216 = vadd.xlane.f32.xlu0 %v215
      %v217 = vpop.xlane.xlu0 %216
      %v218 = vsel %vm133, %v214, 0.0
      %219 = vadd.xlane.f32.xlu0 %v218
      %v220 = vpop.xlane.xlu0 %219
      %v221 = vmul.f32 %v217, %v208
      %v222 = vmul.f32 %v220, %v208
      %v223 = vadd.f32 %v221, 1e-05
      %v224 = vadd.f32 %v222, 1e-05
      %v225 = vrsqrt.pop %v223
      %v226 = vrsqrt.pop %v224
      %v227 = vmul.f32 %v211, %v225
      %v228 = vmul.f32 %v212, %v226
      %v229 = vld [vmem:[#allocation11] sm:$0x1]
      %v231 = vlaneseq
      %v232 = vshrl.u32 %v231, 7
      %v233 = vsub.s32 0, %v232
      %v234 = vrot.slane %v229, %v233
      %v236 = vmul.f32 %v227, %v234
      %v237 = vmul.f32 %v228, %v234
      %v238 = vld [vmem:[#allocation12] sm:$0x1]
      %v240 = vlaneseq
      %v241 = vshrl.u32 %v240, 7
      %v242 = vsub.s32 0, %v241
      %v243 = vrot.slane %v238, %v242
      %v245 = vadd.f32 %v236, %v243
      %v246 = vadd.f32 %v237, %v243
      %v247 = vpack.c.bf16 %v246, %v245
      %v249 = vunpack.c.l.b16 %v247
      %v250 = vunpack.c.h.b16 %v247
      %v251 = vpack.c.b16 %v249, %v249
      %v252 = vpack.c.b16 %v250, %v250
      %vm255 = vcmask 257024
      %256 = vst.msk [vmem:[#allocation14] sm:$0xf] %vm255, %v251
      %257 = vst.msk [vmem:[#allocation14 + $0x4] sm:$0xf] %vm255, %v252
    $region57: #{_lambda_.33} parent=1 // pred_fallthru
      _
    // Predicated region
    $region58: #{_lambda_.33} parent=1 // pred_check
      _
    $region59: #{_lambda_.33} parent=1 // pred_check_branch
      %259 = sbr.rel (0) target = $region61
    $region60: #{_lambda_.33} parent=1 // pred_region
      %s261 = ssub.s32 128, 128
      %262 = vsyncadd [#allocation5], %s261
      %s263 = sshll.u32 [#allocation14], 4
      %s264 = int_to_ptr.vmem [resolvable:$true] %s263
      %269 = dma.vmem_to_hbm [thread:$0]  %s264, 128, %s6, [#allocation5], 64, 64, 4
    $region61: #{_lambda_.33} parent=1 // pred_fallthru
      _
    // Predicated region
    $region62: #{_lambda_.33} parent=1 // pred_check
      _
    $region63: #{_lambda_.33} parent=1 // pred_check_branch
      %271 = sbr.rel (0) target = $region65
    $region64: #{_lambda_.33} parent=1 // pred_region
      %272 = dma.done [#allocation5], 128
    $region65: #{_lambda_.33} parent=1 // pred_fallthru
      _
    %273 = vsyncpa [#allocation4], 1
    %274 = vsyncpa [#allocation7], 1
    %275 = vsyncpa [#allocation10], 1
    %276 = vsyncpa [#allocation13], 1
    %277 = vsyncpa [#allocation5], 1

// kernel: _lambda_.31
$region0: #{_lambda_.31}
  #allocation0 [shape = 'u32[]', space=smem, size = 0x4, offset = 0x4, fixed_abs, tag = 'smem constant byte address 0x4 - core index']
  #allocation1 [shape = 'u32[144,128]{1,0:T(1,128)}', space=vmem, size = 0x12000, scoped, tag = 'internal scratch']
  #allocation2 [shape = 'f32[16,96]{1,0:T(8,128)}', space=vmem, size = 0x2000, scoped, tag = 'scratch operand']
  %s0 = inlined_call_operand.hbm [shape: bf16[16,32], index: 0, kind: input, shape index: {}]
  %s1 = inlined_call_operand.hbm [shape: bf16[32,96], index: 1, kind: input, shape index: {}]
  %s2 = inlined_call_operand.hbm [shape: f32[1,96], index: 2, kind: input, shape index: {}]
  %s3 = inlined_call_operand.hbm [shape: bf16[16,96], index: 3, kind: output, shape index: {}]
  %s4 = sld [smem:[#allocation0]]
  $region42: #{_lambda_.31} parent=0
    _
  %s6 = ssub.s32 1, %s4
  %s7 = scalar_select 0, %s6, %s4
  $region1: #{_lambda_.31} parent=0
    #allocation3 [shape = 'u8[4096]{0}', space=vmem, size = 0x1000, scoped, tag = 'input window, operand 0, single buffered']
    #allocation4 [shape = 's32[1]{0}', space=sflag, size = 0x4, scoped, tag = 'scoped memory for _lambda_.31']
    #allocation5 [shape = 's32[1]{0}', space=sflag, size = 0x4, scoped, tag = 'scoped memory for _lambda_.31']
    #allocation6 [shape = 'u8[8192]{0}', space=vmem, size = 0x2000, scoped, tag = 'input window, operand 1, single buffered']
    #allocation7 [shape = 's32[1]{0}', space=sflag, size = 0x4, scoped, tag = 'scoped memory for _lambda_.31']
    #allocation8 [shape = 'u8[512]{0}', space=vmem, size = 0x400, scoped, tag = 'input window, operand 2, single buffered']
    #allocation9 [shape = 'u8[4096]{0}', space=vmem, size = 0x1000, scoped, tag = 'output window, operand 0, single buffered']
    %8 = vsyncpa [#allocation4], 0
    %9 = vsyncpa [#allocation7], 0
    %10 = vsyncpa [#allocation5], 0
    // Predicated region
    $region2: #{_lambda_.31} parent=1 // pred_check
      _
    $region3: #{_lambda_.31} parent=1 // pred_check_branch
      %12 = sbr.rel (0) target = $region5
    $region4: #{_lambda_.31} parent=1 // pred_region
      %s14 = ssub.s32 128, 128
      %15 = vsyncadd [#allocation4], %s14
      %s16 = sshll.u32 [#allocation3], 4
      %s17 = int_to_ptr.vmem [resolvable:$true] %s16
      %22 = dma.hbm_to_vmem [thread:$0]  %s0, 128, %s17, [#allocation4], 64, 64, 4
    $region5: #{_lambda_.31} parent=1 // pred_fallthru
      _
    // Predicated region
    $region6: #{_lambda_.31} parent=1 // pred_check
      _
    $region7: #{_lambda_.31} parent=1 // pred_check_branch
      %24 = sbr.rel (0) target = $region9
    $region8: #{_lambda_.31} parent=1 // pred_region
      %s26 = ssub.s32 256, 256
      %27 = vsyncadd [#allocation7], %s26
      %s28 = sshll.u32 [#allocation6], 4
      %s29 = int_to_ptr.vmem [resolvable:$true] %s28
      %34 = dma.hbm_to_vmem [thread:$0]  %s1, 256, %s29, [#allocation7], 64, 64, 4
    $region9: #{_lambda_.31} parent=1 // pred_fallthru
      _
    // Predicated region
    $region10: #{_lambda_.31} parent=1 // pred_check
      _
    $region11: #{_lambda_.31} parent=1 // pred_check_branch
      %36 = sbr.rel (0) target = $region13
    $region12: #{_lambda_.31} parent=1 // pred_region
      %s38 = ssub.s32 16, 16
      %39 = vsyncadd [#allocation7], %s38
      %s41 = sshll.u32 [#allocation8], 4
      %s42 = int_to_ptr.vmem [resolvable:$true] %s41
      %44 = dma.hbm_to_vmem [thread:$0]  %s2, 16, %s42, [#allocation7]
    $region13: #{_lambda_.31} parent=1 // pred_fallthru
      _
    // Predicated region
    $region14: #{_lambda_.31} parent=1 // pred_check
      _
    $region15: #{_lambda_.31} parent=1 // pred_check_branch
      %46 = sbr.rel (0) target = $region17
    $region16: #{_lambda_.31} parent=1 // pred_region
      %47 = dma.done [#allocation4], 128
    $region17: #{_lambda_.31} parent=1 // pred_fallthru
      _
    // Predicated region
    $region18: #{_lambda_.31} parent=1 // pred_check
      _
    $region19: #{_lambda_.31} parent=1 // pred_check_branch
      %49 = sbr.rel (0) target = $region21
    $region20: #{_lambda_.31} parent=1 // pred_region
      %50 = dma.done [#allocation7], 256
    $region21: #{_lambda_.31} parent=1 // pred_fallthru
      _
    // Predicated region
    $region22: #{_lambda_.31} parent=1 // pred_check
      _
    $region23: #{_lambda_.31} parent=1 // pred_check_branch
      %52 = sbr.rel (0) target = $region25
    $region24: #{_lambda_.31} parent=1 // pred_region
      %53 = dma.done [#allocation7], 16
    $region25: #{_lambda_.31} parent=1 // pred_fallthru
      _
    %p55 = scmp.eq.s32.totalorder 0, 0
    // Predicated region
    $region26: #{_lambda_.31} parent=1 // pred_check
      %p56 = pneg %p55
    $region27: #{_lambda_.31} parent=1 // pred_check_branch
      %58 = sbr.rel (%p56) target = $region29
    $region28: #{_lambda_.31} parent=1 // pred_region
      %vm59 = vcmask 785408
      %60 = vst.msk [vmem:[#allocation2] sm:$0xff] %vm59, 0.0
      %61 = vst.msk [vmem:[#allocation2 + $0x8] sm:$0xff] %vm59, 0.0
    $region29: #{_lambda_.31} parent=1 // pred_fallthru
      _
    %v62 = vld [vmem:[#allocation3] sm:$0xf]
    %v63 = vld [vmem:[#allocation3 + $0x4] sm:$0xf]
    %v64 = vld [vmem:[#allocation6] sm:$0xf]
    %v65 = vld [vmem:[#allocation6 + $0x4] sm:$0xf]
    %v66 = vld [vmem:[#allocation6 + $0x8] sm:$0xf]
    %v67 = vld [vmem:[#allocation6 + $0xc] sm:$0xf]
    %v68 = vld [vmem:[#allocation2] sm:$0xff]
    %v69 = vld [vmem:[#allocation2 + $0x8] sm:$0xff]
    %v72 = vunpack.c.l.b16 %v62
    %v73 = vunpack.c.l.b16 %v63
    %v74 = vpack.c.b16 %v73, %v72
    %v79 = vunpack.c.l.b16 %v64
    %v80 = vunpack.c.l.b16 %v65
    %v81 = vunpack.c.l.b16 %v66
    %v82 = vunpack.c.l.b16 %v67
    %v83 = vpack.c.b16 %v80, %v79
    %v84 = vpack.c.b16 %v82, %v81
    %vm87 = vcmask 261120
    %v89 = vsel %vm87, %v74, 0
    %91 = vmatprep.subr.bf16.mxu0 0
    %92 = vmatpush1.bf16.msra.mxu0 %v83
    %93 = vmatprep.subr.bf16.mxu0 0
    %94 = vmatpush1.bf16.msra.mxu0 %v84
    %95 = vmatprep.subr.bf16.mxu0 0
    %96 = vmatpush1.bf16.msra.mxu0 0
    %97 = vmatprep.subr.bf16.mxu0 0
    %98 = vmatpush1.bf16.msra.mxu0 0
    %99 = vmatprep.subr.bf16.mxu0 0
    %100 = vmatpush1.bf16.msra.mxu0 0
    %101 = vmatprep.subr.bf16.mxu0 0
    %102 = vmatpush1.bf16.msra.mxu0 0
    %103 = vmatprep.subr.bf16.mxu0 0
    %104 = vmatpush1.bf16.msra.mxu0 0
    %105 = vmatprep.subr.bf16.mxu0 0
    %106 = vmatpush1.bf16.msra.mxu0 0
    %107 = vmatprep.subr.bf16.mxu0 0
    %108 = vmatpush1.bf16.msra.mxu0 0
    %109 = vmatprep.subr.bf16.mxu0 0
    %110 = vmatpush1.bf16.msra.mxu0 0
    %111 = vmatprep.subr.bf16.mxu0 0
    %112 = vmatpush1.bf16.msra.mxu0 0
    %113 = vmatprep.subr.bf16.mxu0 0
    %114 = vmatpush1.bf16.msra.mxu0 0
    %115 = vmatprep.subr.bf16.mxu0 0
    %116 = vmatpush1.bf16.msra.mxu0 0
    %117 = vmatprep.subr.bf16.mxu0 0
    %118 = vmatpush1.bf16.msra.mxu0 0
    %119 = vmatprep.subr.bf16.mxu0 0
    %120 = vmatpush1.bf16.msra.mxu0 0
    %121 = vmatprep.subr.bf16.mxu0 0
    %122 = vmatpush1.bf16.msra.mxu0 0
    %123 = vmatprep.mubr.bf16.mxu0 0
    %124 = vmatmul.mubr.bf16.gmra.mrb[0].mxu0 %v89
    %v125 = vpop.f32.mrb[0].mxu0
    %v126 = vadd.f32 0.0, %v125
    %v127 = vpop.f32.mrb[0].mxu0
    %v128 = vpop.f32.mrb[0].mxu0
    %v129 = vadd.f32 0.0, %v128
    %v130 = vpop.f32.mrb[0].mxu0
    %131 = vdwg.mxu0
    %v132 = vadd.f32 %v68, %v126
    %v133 = vadd.f32 %v69, %v129
    %vm134 = vcmask 785408
    %135 = vst.msk [vmem:[#allocation2] sm:$0xff] %vm134, %v132
    %136 = vst.msk [vmem:[#allocation2 + $0x8] sm:$0xff] %vm134, %v133
    // Predicated region
    $region30: #{_lambda_.31} parent=1 // pred_check
      %p137 = pneg %p55
    $region31: #{_lambda_.31} parent=1 // pred_check_branch
      %139 = sbr.rel (%p137) target = $region33
    $region32: #{_lambda_.31} parent=1 // pred_region
      %v140 = vld [vmem:[#allocation2] sm:$0xff]
      %v141 = vld [vmem:[#allocation2 + $0x8] sm:$0xff]
      %v142 = vld [vmem:[#allocation8] sm:$0x1]
      %v144 = vlaneseq
      %v145 = vshrl.u32 %v144, 7
      %v146 = vsub.s32 0, %v145
      %v147 = vrot.slane %v142, %v146
      %v149 = vadd.f32 %v140, %v147
      %v150 = vadd.f32 %v141, %v147
      %v151 = vpack.c.bf16 %v150, %v149
      %v153 = vunpack.c.l.b16 %v151
      %v154 = vunpack.c.h.b16 %v151
      %v155 = vpack.c.b16 %v153, %v153
      %v156 = vpack.c.b16 %v154, %v154
      %vm159 = vcmask 781312
      %160 = vst.msk [vmem:[#allocation9] sm:$0xf] %vm159, %v155
      %161 = vst.msk [vmem:[#allocation9 + $0x4] sm:$0xf] %vm159, %v156
    $region33: #{_lambda_.31} parent=1 // pred_fallthru
      _
    // Predicated region
    $region34: #{_lambda_.31} parent=1 // pred_check
      _
    $region35: #{_lambda_.31} parent=1 // pred_check_branch
      %163 = sbr.rel (0) target = $region37
    $region36: #{_lambda_.31} parent=1 // pred_region
      %s165 = ssub.s32 128, 128
      %166 = vsyncadd [#allocation5], %s165
      %s167 = sshll.u32 [#allocation9], 4
      %s168 = int_to_ptr.vmem [resolvable:$true] %s167
      %173 = dma.vmem_to_hbm [thread:$0]  %s168, 128, %s3, [#allocation5], 64, 64, 4
    $region37: #{_lambda_.31} parent=1 // pred_fallthru
      _
    // Predicated region
    $region38: #{_lambda_.31} parent=1 // pred_check
      _
    $region39: #{_lambda_.31} parent=1 // pred_check_branch
      %175 = sbr.rel (0) target = $region41
    $region40: #{_lambda_.31} parent=1 // pred_region
      %176 = dma.done [#allocation5], 128
    $region41: #{_lambda_.31} parent=1 // pred_fallthru
      _
    %177 = vsyncpa [#allocation4], 1
    %178 = vsyncpa [#allocation7], 1
    %179 = vsyncpa [#allocation5], 1

// kernel: _lambda_.32
$region0: #{_lambda_.32}
  #allocation0 [shape = 'u32[]', space=smem, size = 0x4, offset = 0x4, fixed_abs, tag = 'smem constant byte address 0x4 - core index']
  #allocation1 [shape = 'u32[144,128]{1,0:T(1,128)}', space=vmem, size = 0x12000, scoped, tag = 'internal scratch']
  %s0 = inlined_call_operand.hbm [shape: bf16[2,8,96], index: 0, kind: input, shape index: {}]
  %s1 = inlined_call_operand.hbm [shape: bf16[2,8,32], index: 1, kind: output, shape index: {}]
  %s2 = sld [smem:[#allocation0]]
  $region41: #{_lambda_.32} parent=0
    _
  %s4 = ssub.s32 1, %s2
  %s5 = scalar_select 0, %s4, %s2
  $region1: #{_lambda_.32} parent=0
    #allocation2 [shape = 'u8[4096]{0}', space=vmem, size = 0x1000, scoped, tag = 'input window, operand 0']
    #allocation3 [shape = 's32[2]{0}', space=sflag, size = 0x8, scoped, tag = 'scoped memory for _lambda_.32']
    #allocation4 [shape = 's32[2]{0}', space=sflag, size = 0x8, scoped, tag = 'scoped memory for _lambda_.32']
    #allocation5 [shape = 'u8[4096]{0}', space=vmem, size = 0x1000, scoped, tag = 'output window, operand 0']
    %6 = vsyncpa [#allocation3], 0
    %s7 = scalar_lea.sflag [#allocation3], 1
    %8 = vsyncpa %s7, 0
    %9 = vsyncpa [#allocation4], 0
    %s10 = scalar_lea.sflag [#allocation4], 1
    %11 = vsyncpa %s10, 0
    loop: start=0, step=1, limit=4
    $region2: #{_lambda_.32} parent=1 // loop_pre_header
      _
    $region3: #{_lambda_.32} parent=1 // loop_header
      %s13 = sphi 0, %s17
      %p14 = scmp.ge.s32.totalorder %s13, 4
      %s23 = sphi 0, %s25
      %s26 = sphi 0, %s23
      %s27 = sphi 0, %s26
      %s43 = sphi 0, %s27
      %s49 = sphi 0, %s51
      %s52 = sphi 0, %s49
      %s53 = sphi 0, %s52
      %s69 = sphi 0, %s53
    $region4: #{_lambda_.32} parent=1 // loop_header_branch
      %16 = sbr.rel (%p14) target = $region8
    $region5: #{_lambda_.32} parent=1 // loop_body
      %s18 = ssub.s32 %s13, 1
      %s19 = ssub.s32 %s13, 2
      %s20 = sadd.s32 %s13, 1
      %s21 = ssub.s32 %s13, %s20
      %p22 = scmp.eq.s32.totalorder %s21, 0
      %s24 = sadd.s32 %s23, 1
      %s25 = scalar_select %p22, %s23, %s24
      %p28 = pneg %p22
      %p29 = scmp.eq.s32.totalorder %s13, 1
      %p30 = por %p28, %p29
      %p31 = scmp.ne.s32.totalorder %s23, %s26
      %p32 = scmp.eq.s32.totalorder %s13, 0
      %p33 = por %p31, %p32
      %p34 = scmp.ne.s32.totalorder %s23, %s26
      %p35 = scmp.eq.s32.totalorder %s18, 1
      %p36 = por %p34, %p35
      %p37 = scmp.ne.s32.totalorder %s26, %s27
      %p38 = scmp.eq.s32.totalorder %s18, 0
      %p39 = por %p37, %p38
      %p40 = scmp.ne.s32.totalorder %s26, %s27
      %p41 = scmp.eq.s32.totalorder %s19, 1
      %p42 = por %p40, %p41
      %p44 = scmp.ne.s32.totalorder %s27, %s43
      %p45 = scmp.eq.s32.totalorder %s19, 0
      %p46 = por %p44, %p45
      %s47 = ssub.s32 %s13, %s20
      %p48 = scmp.eq.s32.totalorder %s47, 0
      %s50 = sadd.s32 %s49, 1
      %s51 = scalar_select %p48, %s49, %s50
      %p54 = pneg %p48
      %p55 = scmp.eq.s32.totalorder %s13, 1
      %p56 = por %p54, %p55
      %p57 = scmp.ne.s32.totalorder %s49, %s52
      %p58 = scmp.eq.s32.totalorder %s13, 0
      %p59 = por %p57, %p58
      %p60 = scmp.ne.s32.totalorder %s49, %s52
      %p61 = scmp.eq.s32.totalorder %s18, 1
      %p62 = por %p60, %p61
      %p63 = scmp.ne.s32.totalorder %s52, %s53
      %p64 = scmp.eq.s32.totalorder %s18, 0
      %p65 = por %p63, %p64
      %p66 = scmp.ne.s32.totalorder %s52, %s53
      %p67 = scmp.eq.s32.totalorder %s19, 1
      %p68 = por %p66, %p67
      %p70 = scmp.ne.s32.totalorder %s53, %s69
      %p71 = scmp.eq.s32.totalorder %s19, 0
      %p72 = por %p70, %p71
      %p73 = scmp.le.s32.totalorder 1, %s13
      %p74 = scmp.lt.s32.totalorder %s13, 3
      %p75 = pnand %p73, %p74
      %p76 = pneg %p75
      // Predicated region
      $region9: #{_lambda_.32} parent=5 // pred_check
        _
      $region10: #{_lambda_.32} parent=5 // pred_check_branch
        %78 = sbr.rel (%p75) target = $region12
      $region11: #{_lambda_.32} parent=5 // pred_region
        %s79 = ssub.s32 %s13, 1
      $region12: #{_lambda_.32} parent=5 // pred_fallthru
        _
      %p80 = scmp.lt.s32.totalorder %s13, 2
      // Predicated region
      $region13: #{_lambda_.32} parent=5 // pred_check
        %p81 = pneg %p80
      $region14: #{_lambda_.32} parent=5 // pred_check_branch
        %83 = sbr.rel (%p81) target = $region16
      $region15: #{_lambda_.32} parent=5 // pred_region
        // Predicated region
        $region17: #{_lambda_.32} parent=15 // pred_check
          %p84 = pneg %p33
        $region18: #{_lambda_.32} parent=15 // pred_check_branch
          %86 = sbr.rel (%p84) target = $region20
        $region19: #{_lambda_.32} parent=15 // pred_region
          %s87 = sand.u32 %s23, 1
          %s88 = scalar_lea.sflag [#allocation3], %s87
          %s89 = sand.u32 %s23, 1
          %s90 = smul.addr %s89, 4
          %s91 = scalar_lea.vmem [#allocation2], %s90
          %s93 = ssub.s32 64, 64
          %94 = vsyncadd %s88, %s93
          %s95 = smul.addr %s13, 64
          %s96 = scalar_lea.hbm %s0, %s95
          %s98 = sshll.u32 %s91, 4
          %s99 = int_to_ptr.vmem [resolvable:$true] %s98
          %101 = dma.hbm_to_vmem [thread:$0]  %s96, 64, %s99, %s88
        $region20: #{_lambda_.32} parent=15 // pred_fallthru
          _
      $region16: #{_lambda_.32} parent=5 // pred_fallthru
        _
      %p102 = scmp.le.s32.totalorder 1, %s13
      %p103 = scmp.lt.s32.totalorder %s13, 3
      %p104 = pnand %p102, %p103
      %p105 = pneg %p104
      // Predicated region
      $region21: #{_lambda_.32} parent=5 // pred_check
        _
      $region22: #{_lambda_.32} parent=5 // pred_check_branch
        %107 = sbr.rel (%p104) target = $region24
      $region23: #{_lambda_.32} parent=5 // pred_region
        %s108 = ssub.s32 %s13, 1
        %s109 = sand.u32 %s26, 1
        %s110 = scalar_lea.sflag [#allocation3], %s109
        %s111 = sand.u32 %s26, 1
        %s112 = smul.addr %s111, 4
        %s113 = scalar_lea.vmem [#allocation2], %s112
        // Predicated region
        $region25: #{_lambda_.32} parent=23 // pred_check
          %p114 = pneg %p39
        $region26: #{_lambda_.32} parent=23 // pred_check_branch
          %116 = sbr.rel (%p114) target = $region28
        $region27: #{_lambda_.32} parent=23 // pred_region
          %117 = dma.done %s110, 64
        $region28: #{_lambda_.32} parent=23 // pred_fallthru
          _
        %s118 = sand.u32 %s26, 1
        %s119 = scalar_lea.sflag [#allocation3], %s118
        %s120 = sand.u32 %s26, 1
        %s121 = smul.addr %s120, 4
        %s122 = scalar_lea.vmem [#allocation2], %s121
        %p123 = pneg %p39
        %p124 = pneg %p36
        %p125 = pneg %p65
        %p126 = pneg %p62
        %s127 = sand.u32 %s52, 1
        %s128 = scalar_lea.sflag [#allocation4], %s127
        %s129 = sand.u32 %s52, 1
        %s130 = smul.addr %s129, 4
        %s131 = scalar_lea.vmem [#allocation5], %s130
        %v134 = vld [vmem:[%s113] sm:$0xf]
        %v135 = vmul.bf16 %v134, 1052065461
        %v137 = vunpack.c.l.b16 %v134
        %v138 = vpack.c.b16 %v137, %v137
        %139 = vrot.lane.b32.xlu0 %v138, 96
        %v140 = vpop.permute.xlu0 %139
        %vm141 = vcmask 64512
        %v143 = vsel %vm141, %v135, 0
        %v146 = vsel %vm141, %v140, 0
        %148 = vmatprep.subr.bf16.mxu0 0
        %149 = vmatpush1.bf16.xpose.msra.mxu0 %v146
        %150 = vmatprep.subr.bf16.mxu0 0
        %151 = vmatpush1.bf16.xpose.msra.mxu0 0
        %152 = vmatprep.subr.bf16.mxu0 0
        %153 = vmatpush1.bf16.xpose.msra.mxu0 0
        %154 = vmatprep.subr.bf16.mxu0 0
        %155 = vmatpush1.bf16.xpose.msra.mxu0 0
        %156 = vmatprep.subr.bf16.mxu0 0
        %157 = vmatpush1.bf16.xpose.msra.mxu0 0
        %158 = vmatprep.subr.bf16.mxu0 0
        %159 = vmatpush1.bf16.xpose.msra.mxu0 0
        %160 = vmatprep.subr.bf16.mxu0 0
        %161 = vmatpush1.bf16.xpose.msra.mxu0 0
        %162 = vmatprep.subr.bf16.mxu0 0
        %163 = vmatpush1.bf16.xpose.msra.mxu0 0
        %164 = vmatprep.subr.bf16.mxu0 0
        %165 = vmatpush1.bf16.xpose.msra.mxu0 0
        %166 = vmatprep.subr.bf16.mxu0 0
        %167 = vmatpush1.bf16.xpose.msra.mxu0 0
        %168 = vmatprep.subr.bf16.mxu0 0
        %169 = vmatpush1.bf16.xpose.msra.mxu0 0
        %170 = vmatprep.subr.bf16.mxu0 0
        %171 = vmatpush1.bf16.xpose.msra.mxu0 0
        %172 = vmatprep.subr.bf16.mxu0 0
        %173 = vmatpush1.bf16.xpose.msra.mxu0 0
        %174 = vmatprep.subr.bf16.mxu0 0
        %175 = vmatpush1.bf16.xpose.msra.mxu0 0
        %176 = vmatprep.subr.bf16.mxu0 0
        %177 = vmatpush1.bf16.xpose.msra.mxu0 0
        %178 = vmatprep.subr.bf16.mxu0 0
        %179 = vmatpush1.bf16.xpose.msra.mxu0 0
        %180 = vmatprep.mubr.bf16.mxu0 0
        %181 = vmatmul.mubr.bf16.gmra.mrb[0].mxu0 %v143
        %v182 = vpop.f32.mrb[0].mxu0
        %v183 = vadd.f32 0.0, %v182
        %v184 = vpop.f32.mrb[0].mxu0
        %v185 = vpop.f32.mrb[0].mxu0
        %v186 = vpop.f32.mrb[0].mxu0
        %187 = vdwg.mxu0
        %v188 = vsel %vm141, %v183, -inf
        %189 = vmax.xlane.f32.xlu0 %v188
        %v190 = vpop.xlane.xlu0 %189
        %v191 = vsub.f32 %v183, %v190
        %v192 = vmul.f32 %v191, 1.442695
        %v193 = vpow.pop %v192
        %v194 = vsel %vm141, %v193, 0.0
        %195 = vadd.xlane.f32.xlu0 %v194
        %v196 = vpop.xlane.xlu0 %195
        %v197 = vrcp.pop %v196
        %v198 = vmul.f32 %v193, %v197
        %v199 = vpack.c.bf16 %v198, %v198
        %200 = vrot.lane.b32.xlu0 %v138, 64
        %v201 = vpop.permute.xlu0 %200
        %v203 = vsel %vm141, %v199, 0
        %vm205 = vcmask 1043456
        %v207 = vsel %vm205, %v201, 0
        %209 = vmatprep.subr.bf16.mxu0 0
        %210 = vmatpush1.bf16.msra.mxu0 %v207
        %211 = vmatprep.subr.bf16.mxu0 0
        %212 = vmatpush1.bf16.msra.mxu0 0
        %213 = vmatprep.subr.bf16.mxu0 0
        %214 = vmatpush1.bf16.msra.mxu0 0
        %215 = vmatprep.subr.bf16.mxu0 0
        %216 = vmatpush1.bf16.msra.mxu0 0
        %217 = vmatprep.subr.bf16.mxu0 0
        %218 = vmatpush1.bf16.msra.mxu0 0
        %219 = vmatprep.subr.bf16.mxu0 0
        %220 = vmatpush1.bf16.msra.mxu0 0
        %221 = vmatprep.subr.bf16.mxu0 0
        %222 = vmatpush1.bf16.msra.mxu0 0
        %223 = vmatprep.subr.bf16.mxu0 0
        %224 = vmatpush1.bf16.msra.mxu0 0
        %225 = vmatprep.subr.bf16.mxu0 0
        %226 = vmatpush1.bf16.msra.mxu0 0
        %227 = vmatprep.subr.bf16.mxu0 0
        %228 = vmatpush1.bf16.msra.mxu0 0
        %229 = vmatprep.subr.bf16.mxu0 0
        %230 = vmatpush1.bf16.msra.mxu0 0
        %231 = vmatprep.subr.bf16.mxu0 0
        %232 = vmatpush1.bf16.msra.mxu0 0
        %233 = vmatprep.subr.bf16.mxu0 0
        %234 = vmatpush1.bf16.msra.mxu0 0
        %235 = vmatprep.subr.bf16.mxu0 0
        %236 = vmatpush1.bf16.msra.mxu0 0
        %237 = vmatprep.subr.bf16.mxu0 0
        %238 = vmatpush1.bf16.msra.mxu0 0
        %239 = vmatprep.subr.bf16.mxu0 0
        %240 = vmatpush1.bf16.msra.mxu0 0
        %241 = vmatprep.mubr.bf16.mxu0 0
        %242 = vmatmul.mubr.bf16.gmra.mrb[0].mxu0 %v203
        %v243 = vpop.f32.mrb[0].mxu0
        %v244 = vadd.f32 0.0, %v243
        %v245 = vpop.f32.mrb[0].mxu0
        %v246 = vpop.f32.mrb[0].mxu0
        %v247 = vpop.f32.mrb[0].mxu0
        %248 = vdwg.mxu0
        %v250 = vunpack.c.l.b16 %v135
        %v251 = vpack.c.b16 %v250, %v250
        %252 = vrot.lane.b32.xlu0 %v251, 120
        %v253 = vpop.permute.xlu0 %252
        %254 = vrot.lane.b32.xlu0 %v138, 88
        %v255 = vpop.permute.xlu0 %254
        %v257 = vsel %vm141, %v253, 0
        %v260 = vsel %vm141, %v255, 0
        %262 = vmatprep.subr.bf16.mxu0 0
        %263 = vmatpush1.bf16.xpose.msra.mxu0 %v260
        %264 = vmatprep.subr.bf16.mxu0 0
        %265 = vmatpush1.bf16.xpose.msra.mxu0 0
        %266 = vmatprep.subr.bf16.mxu0 0
        %267 = vmatpush1.bf16.xpose.msra.mxu0 0
        %268 = vmatprep.subr.bf16.mxu0 0
        %269 = vmatpush1.bf16.xpose.msra.mxu0 0
        %270 = vmatprep.subr.bf16.mxu0 0
        %271 = vmatpush1.bf16.xpose.msra.mxu0 0
        %272 = vmatprep.subr.bf16.mxu0 0
        %273 = vmatpush1.bf16.xpose.msra.mxu0 0
        %274 = vmatprep.subr.bf16.mxu0 0
        %275 = vmatpush1.bf16.xpose.msra.mxu0 0
        %276 = vmatprep.subr.bf16.mxu0 0
        %277 = vmatpush1.bf16.xpose.msra.mxu0 0
        %278 = vmatprep.subr.bf16.mxu0 0
        %279 = vmatpush1.bf16.xpose.msra.mxu0 0
        %280 = vmatprep.subr.bf16.mxu0 0
        %281 = vmatpush1.bf16.xpose.msra.mxu0 0
        %282 = vmatprep.subr.bf16.mxu0 0
        %283 = vmatpush1.bf16.xpose.msra.mxu0 0
        %284 = vmatprep.subr.bf16.mxu0 0
        %285 = vmatpush1.bf16.xpose.msra.mxu0 0
        %286 = vmatprep.subr.bf16.mxu0 0
        %287 = vmatpush1.bf16.xpose.msra.mxu0 0
        %288 = vmatprep.subr.bf16.mxu0 0
        %289 = vmatpush1.bf16.xpose.msra.mxu0 0
        %290 = vmatprep.subr.bf16.mxu0 0
        %291 = vmatpush1.bf16.xpose.msra.mxu0 0
        %292 = vmatprep.subr.bf16.mxu0 0
        %293 = vmatpush1.bf16.xpose.msra.mxu0 0
        %294 = vmatprep.mubr.bf16.mxu0 0
        %295 = vmatmul.mubr.bf16.gmra.mrb[0].mxu0 %v257
        %v296 = vpop.f32.mrb[0].mxu0
        %v297 = vadd.f32 0.0, %v296
        %v298 = vpop.f32.mrb[0].mxu0
        %v299 = vpop.f32.mrb[0].mxu0
        %v300 = vpop.f32.mrb[0].mxu0
        %301 = vdwg.mxu0
        %v302 = vsel %vm141, %v297, -inf
        %303 = vmax.xlane.f32.xlu0 %v302
        %v304 = vpop.xlane.xlu0 %303
        %v305 = vsub.f32 %v297, %v304
        %v306 = vmul.f32 %v305, 1.442695
        %v307 = vpow.pop %v306
        %v308 = vsel %vm141, %v307, 0.0
        %309 = vadd.xlane.f32.xlu0 %v308
        %v310 = vpop.xlane.xlu0 %309
        %v311 = vrcp.pop %v310
        %v312 = vmul.f32 %v307, %v311
        %v313 = vpack.c.bf16 %v312, %v312
        %314 = vrot.lane.b32.xlu0 %v138, 56
        %v315 = vpop.permute.xlu0 %314
        %v317 = vsel %vm141, %v313, 0
        %v320 = vsel %vm205, %v315, 0
        %322 = vmatprep.subr.bf16.mxu0 0
        %323 = vmatpush1.bf16.msra.mxu0 %v320
        %324 = vmatprep.subr.bf16.mxu0 0
        %325 = vmatpush1.bf16.msra.mxu0 0
        %326 = vmatprep.subr.bf16.mxu0 0
        %327 = vmatpush1.bf16.msra.mxu0 0
        %328 = vmatprep.subr.bf16.mxu0 0
        %329 = vmatpush1.bf16.msra.mxu0 0
        %330 = vmatprep.subr.bf16.mxu0 0
        %331 = vmatpush1.bf16.msra.mxu0 0
        %332 = vmatprep.subr.bf16.mxu0 0
        %333 = vmatpush1.bf16.msra.mxu0 0
        %334 = vmatprep.subr.bf16.mxu0 0
        %335 = vmatpush1.bf16.msra.mxu0 0
        %336 = vmatprep.subr.bf16.mxu0 0
        %337 = vmatpush1.bf16.msra.mxu0 0
        %338 = vmatprep.subr.bf16.mxu0 0
        %339 = vmatpush1.bf16.msra.mxu0 0
        %340 = vmatprep.subr.bf16.mxu0 0
        %341 = vmatpush1.bf16.msra.mxu0 0
        %342 = vmatprep.subr.bf16.mxu0 0
        %343 = vmatpush1.bf16.msra.mxu0 0
        %344 = vmatprep.subr.bf16.mxu0 0
        %345 = vmatpush1.bf16.msra.mxu0 0
        %346 = vmatprep.subr.bf16.mxu0 0
        %347 = vmatpush1.bf16.msra.mxu0 0
        %348 = vmatprep.subr.bf16.mxu0 0
        %349 = vmatpush1.bf16.msra.mxu0 0
        %350 = vmatprep.subr.bf16.mxu0 0
        %351 = vmatpush1.bf16.msra.mxu0 0
        %352 = vmatprep.subr.bf16.mxu0 0
        %353 = vmatpush1.bf16.msra.mxu0 0
        %354 = vmatprep.mubr.bf16.mxu0 0
        %355 = vmatmul.mubr.bf16.gmra.mrb[0].mxu0 %v317
        %v356 = vpop.f32.mrb[0].mxu0
        %v357 = vadd.f32 0.0, %v356
        %v358 = vpop.f32.mrb[0].mxu0
        %v359 = vpop.f32.mrb[0].mxu0
        %v360 = vpop.f32.mrb[0].mxu0
        %361 = vdwg.mxu0
        %362 = vrot.lane.b32.xlu0 %v251, 112
        %v363 = vpop.permute.xlu0 %362
        %364 = vrot.lane.b32.xlu0 %v138, 80
        %v365 = vpop.permute.xlu0 %364
        %v367 = vsel %vm141, %v363, 0
        %v370 = vsel %vm141, %v365, 0
        %372 = vmatprep.subr.bf16.mxu0 0
        %373 = vmatpush1.bf16.xpose.msra.mxu0 %v370
        %374 = vmatprep.subr.bf16.mxu0 0
        %375 = vmatpush1.bf16.xpose.msra.mxu0 0
        %376 = vmatprep.subr.bf16.mxu0 0
        %377 = vmatpush1.bf16.xpose.msra.mxu0 0
        %378 = vmatprep.subr.bf16.mxu0 0
        %379 = vmatpush1.bf16.xpose.msra.mxu0 0
        %380 = vmatprep.subr.bf16.mxu0 0
        %381 = vmatpush1.bf16.xpose.msra.mxu0 0
        %382 = vmatprep.subr.bf16.mxu0 0
        %383 = vmatpush1.bf16.xpose.msra.mxu0 0
        %384 = vmatprep.subr.bf16.mxu0 0
        %385 = vmatpush1.bf16.xpose.msra.mxu0 0
        %386 = vmatprep.subr.bf16.mxu0 0
        %387 = vmatpush1.bf16.xpose.msra.mxu0 0
        %388 = vmatprep.subr.bf16.mxu0 0
        %389 = vmatpush1.bf16.xpose.msra.mxu0 0
        %390 = vmatprep.subr.bf16.mxu0 0
        %391 = vmatpush1.bf16.xpose.msra.mxu0 0
        %392 = vmatprep.subr.bf16.mxu0 0
        %393 = vmatpush1.bf16.xpose.msra.mxu0 0
        %394 = vmatprep.subr.bf16.mxu0 0
        %395 = vmatpush1.bf16.xpose.msra.mxu0 0
        %396 = vmatprep.subr.bf16.mxu0 0
        %397 = vmatpush1.bf16.xpose.msra.mxu0 0
        %398 = vmatprep.subr.bf16.mxu0 0
        %399 = vmatpush1.bf16.xpose.msra.mxu0 0
        %400 = vmatprep.subr.bf16.mxu0 0
        %401 = vmatpush1.bf16.xpose.msra.mxu0 0
        %402 = vmatprep.subr.bf16.mxu0 0
        %403 = vmatpush1.bf16.xpose.msra.mxu0 0
        %404 = vmatprep.mubr.bf16.mxu0 0
        %405 = vmatmul.mubr.bf16.gmra.mrb[0].mxu0 %v367
        %v406 = vpop.f32.mrb[0].mxu0
        %v407 = vadd.f32 0.0, %v406
        %v408 = vpop.f32.mrb[0].mxu0
        %v409 = vpop.f32.mrb[0].mxu0
        %v410 = vpop.f32.mrb[0].mxu0
        %411 = vdwg.mxu0
        %v412 = vsel %vm141, %v407, -inf
        %413 = vmax.xlane.f32.xlu0 %v412
        %v414 = vpop.xlane.xlu0 %413
        %v415 = vsub.f32 %v407, %v414
        %v416 = vmul.f32 %v415, 1.442695
        %v417 = vpow.pop %v416
        %v418 = vsel %vm141, %v417, 0.0
        %419 = vadd.xlane.f32.xlu0 %v418
        %v420 = vpop.xlane.xlu0 %419
        %v421 = vrcp.pop %v420
        %v422 = vmul.f32 %v417, %v421
        %v423 = vpack.c.bf16 %v422, %v422
        %424 = vrot.lane.b32.xlu0 %v138, 48
        %v425 = vpop.permute.xlu0 %424
        %v427 = vsel %vm141, %v423, 0
        %v430 = vsel %vm205, %v425, 0
        %432 = vmatprep.subr.bf16.mxu0 0
        %433 = vmatpush1.bf16.msra.mxu0 %v430
        %434 = vmatprep.subr.bf16.mxu0 0
        %435 = vmatpush1.bf16.msra.mxu0 0
        %436 = vmatprep.subr.bf16.mxu0 0
        %437 = vmatpush1.bf16.msra.mxu0 0
        %438 = vmatprep.subr.bf16.mxu0 0
        %439 = vmatpush1.bf16.msra.mxu0 0
        %440 = vmatprep.subr.bf16.mxu0 0
        %441 = vmatpush1.bf16.msra.mxu0 0
        %442 = vmatprep.subr.bf16.mxu0 0
        %443 = vmatpush1.bf16.msra.mxu0 0
        %444 = vmatprep.subr.bf16.mxu0 0
        %445 = vmatpush1.bf16.msra.mxu0 0
        %446 = vmatprep.subr.bf16.mxu0 0
        %447 = vmatpush1.bf16.msra.mxu0 0
        %448 = vmatprep.subr.bf16.mxu0 0
        %449 = vmatpush1.bf16.msra.mxu0 0
        %450 = vmatprep.subr.bf16.mxu0 0
        %451 = vmatpush1.bf16.msra.mxu0 0
        %452 = vmatprep.subr.bf16.mxu0 0
        %453 = vmatpush1.bf16.msra.mxu0 0
        %454 = vmatprep.subr.bf16.mxu0 0
        %455 = vmatpush1.bf16.msra.mxu0 0
        %456 = vmatprep.subr.bf16.mxu0 0
        %457 = vmatpush1.bf16.msra.mxu0 0
        %458 = vmatprep.subr.bf16.mxu0 0
        %459 = vmatpush1.bf16.msra.mxu0 0
        %460 = vmatprep.subr.bf16.mxu0 0
        %461 = vmatpush1.bf16.msra.mxu0 0
        %462 = vmatprep.subr.bf16.mxu0 0
        %463 = vmatpush1.bf16.msra.mxu0 0
        %464 = vmatprep.mubr.bf16.mxu0 0
        %465 = vmatmul.mubr.bf16.gmra.mrb[0].mxu0 %v427
        %v466 = vpop.f32.mrb[0].mxu0
        %v467 = vadd.f32 0.0, %v466
        %v468 = vpop.f32.mrb[0].mxu0
        %v469 = vpop.f32.mrb[0].mxu0
        %v470 = vpop.f32.mrb[0].mxu0
        %471 = vdwg.mxu0
        %472 = vrot.lane.b32.xlu0 %v251, 104
        %v473 = vpop.permute.xlu0 %472
        %474 = vrot.lane.b32.xlu0 %v138, 72
        %v475 = vpop.permute.xlu0 %474
        %v477 = vsel %vm141, %v473, 0
        %v480 = vsel %vm141, %v475, 0
        %482 = vmatprep.subr.bf16.mxu0 0
        %483 = vmatpush1.bf16.xpose.msra.mxu0 %v480
        %484 = vmatprep.subr.bf16.mxu0 0
        %485 = vmatpush1.bf16.xpose.msra.mxu0 0
        %486 = vmatprep.subr.bf16.mxu0 0
        %487 = vmatpush1.bf16.xpose.msra.mxu0 0
        %488 = vmatprep.subr.bf16.mxu0 0
        %489 = vmatpush1.bf16.xpose.msra.mxu0 0
        %490 = vmatprep.subr.bf16.mxu0 0
        %491 = vmatpush1.bf16.xpose.msra.mxu0 0
        %492 = vmatprep.subr.bf16.mxu0 0
        %493 = vmatpush1.bf16.xpose.msra.mxu0 0
        %494 = vmatprep.subr.bf16.mxu0 0
        %495 = vmatpush1.bf16.xpose.msra.mxu0 0
        %496 = vmatprep.subr.bf16.mxu0 0
        %497 = vmatpush1.bf16.xpose.msra.mxu0 0
        %498 = vmatprep.subr.bf16.mxu0 0
        %499 = vmatpush1.bf16.xpose.msra.mxu0 0
        %500 = vmatprep.subr.bf16.mxu0 0
        %501 = vmatpush1.bf16.xpose.msra.mxu0 0
        %502 = vmatprep.subr.bf16.mxu0 0
        %503 = vmatpush1.bf16.xpose.msra.mxu0 0
        %504 = vmatprep.subr.bf16.mxu0 0
        %505 = vmatpush1.bf16.xpose.msra.mxu0 0
        %506 = vmatprep.subr.bf16.mxu0 0
        %507 = vmatpush1.bf16.xpose.msra.mxu0 0
        %508 = vmatprep.subr.bf16.mxu0 0
        %509 = vmatpush1.bf16.xpose.msra.mxu0 0
        %510 = vmatprep.subr.bf16.mxu0 0
        %511 = vmatpush1.bf16.xpose.msra.mxu0 0
        %512 = vmatprep.subr.bf16.mxu0 0
        %513 = vmatpush1.bf16.xpose.msra.mxu0 0
        %514 = vmatprep.mubr.bf16.mxu0 0
        %515 = vmatmul.mubr.bf16.gmra.mrb[0].mxu0 %v477
        %v516 = vpop.f32.mrb[0].mxu0
        %v517 = vadd.f32 0.0, %v516
        %v518 = vpop.f32.mrb[0].mxu0
        %v519 = vpop.f32.mrb[0].mxu0
        %v520 = vpop.f32.mrb[0].mxu0
        %521 = vdwg.mxu0
        %v522 = vsel %vm141, %v517, -inf
        %523 = vmax.xlane.f32.xlu0 %v522
        %v524 = vpop.xlane.xlu0 %523
        %v525 = vsub.f32 %v517, %v524
        %v526 = vmul.f32 %v525, 1.442695
        %v527 = vpow.pop %v526
        %v528 = vsel %vm141, %v527, 0.0
        %529 = vadd.xlane.f32.xlu0 %v528
        %v530 = vpop.xlane.xlu0 %529
        %v531 = vrcp.pop %v530
        %v532 = vmul.f32 %v527, %v531
        %v533 = vpack.c.bf16 %v532, %v532
        %534 = vrot.lane.b32.xlu0 %v138, 40
        %v535 = vpop.permute.xlu0 %534
        %v537 = vsel %vm141, %v533, 0
        %v540 = vsel %vm205, %v535, 0
        %542 = vmatprep.subr.bf16.mxu0 0
        %543 = vmatpush1.bf16.msra.mxu0 %v540
        %544 = vmatprep.subr.bf16.mxu0 0
        %545 = vmatpush1.bf16.msra.mxu0 0
        %546 = vmatprep.subr.bf16.mxu0 0
        %547 = vmatpush1.bf16.msra.mxu0 0
        %548 = vmatprep.subr.bf16.mxu0 0
        %549 = vmatpush1.bf16.msra.mxu0 0
        %550 = vmatprep.subr.bf16.mxu0 0
        %551 = vmatpush1.bf16.msra.mxu0 0
        %552 = vmatprep.subr.bf16.mxu0 0
        %553 = vmatpush1.bf16.msra.mxu0 0
        %554 = vmatprep.subr.bf16.mxu0 0
        %555 = vmatpush1.bf16.msra.mxu0 0
        %556 = vmatprep.subr.bf16.mxu0 0
        %557 = vmatpush1.bf16.msra.mxu0 0
        %558 = vmatprep.subr.bf16.mxu0 0
        %559 = vmatpush1.bf16.msra.mxu0 0
        %560 = vmatprep.subr.bf16.mxu0 0
        %561 = vmatpush1.bf16.msra.mxu0 0
        %562 = vmatprep.subr.bf16.mxu0 0
        %563 = vmatpush1.bf16.msra.mxu0 0
        %564 = vmatprep.subr.bf16.mxu0 0
        %565 = vmatpush1.bf16.msra.mxu0 0
        %566 = vmatprep.subr.bf16.mxu0 0
        %567 = vmatpush1.bf16.msra.mxu0 0
        %568 = vmatprep.subr.bf16.mxu0 0
        %569 = vmatpush1.bf16.msra.mxu0 0
        %570 = vmatprep.subr.bf16.mxu0 0
        %571 = vmatpush1.bf16.msra.mxu0 0
        %572 = vmatprep.subr.bf16.mxu0 0
        %573 = vmatpush1.bf16.msra.mxu0 0
        %574 = vmatprep.mubr.bf16.mxu0 0
        %575 = vmatmul.mubr.bf16.gmra.mrb[0].mxu0 %v537
        %v576 = vpop.f32.mrb[0].mxu0
        %v577 = vadd.f32 0.0, %v576
        %v578 = vpop.f32.mrb[0].mxu0
        %v579 = vpop.f32.mrb[0].mxu0
        %v580 = vpop.f32.mrb[0].mxu0
        %581 = vdwg.mxu0
        %583 = vrot.lane.b32.xlu0 %v357, 8
        %v584 = vpop.permute.xlu0 %583
        %587 = vrot.lane.b32.xlu0 %v467, 16
        %v588 = vpop.permute.xlu0 %587
        %591 = vrot.lane.b32.xlu0 %v577, 24
        %v592 = vpop.permute.xlu0 %591
        %v594 = vsel %vm141, %v244, %v584
        %vm595 = vcmask 130048
        %v596 = vsel %vm595, %v594, %v588
        %vm597 = vcmask 195584
        %v598 = vsel %vm597, %v596, %v592
        %v599 = vpack.c.bf16 %v598, %v598
        %vm600 = vcmask 257024
        %601 = vst.msk [vmem:[%s131] sm:$0xf] %vm600, %v599
        %s602 = sand.u32 %s52, 1
        %s603 = scalar_lea.sflag [#allocation4], %s602
        %s604 = sand.u32 %s52, 1
        %s605 = smul.addr %s604, 4
        %s606 = scalar_lea.vmem [#allocation5], %s605
        // Predicated region
        $region29: #{_lambda_.32} parent=23 // pred_check
          %p607 = pneg %p62
        $region30: #{_lambda_.32} parent=23 // pred_check_branch
          %609 = sbr.rel (%p607) target = $region32
        $region31: #{_lambda_.32} parent=23 // pred_region
          %s611 = ssub.s32 64, 64
          %612 = vsyncadd %s603, %s611
          %s613 = smul.addr %s18, 64
          %s614 = scalar_lea.hbm %s1, %s613
          %s616 = sshll.u32 %s606, 4
          %s617 = int_to_ptr.vmem [resolvable:$true] %s616
          %619 = dma.vmem_to_hbm [thread:$0]  %s617, 64, %s614, %s603
        $region32: #{_lambda_.32} parent=23 // pred_fallthru
          _
      $region24: #{_lambda_.32} parent=5 // pred_fallthru
        _
      %p620 = scmp.le.s32.totalorder 2, %s13
      // Predicated region
      $region33: #{_lambda_.32} parent=5 // pred_check
        %p621 = pneg %p620
      $region34: #{_lambda_.32} parent=5 // pred_check_branch
        %623 = sbr.rel (%p621) target = $region36
      $region35: #{_lambda_.32} parent=5 // pred_region
        %s624 = ssub.s32 %s13, 2
        // Predicated region
        $region37: #{_lambda_.32} parent=35 // pred_check
          %p625 = pneg %p68
        $region38: #{_lambda_.32} parent=35 // pred_check_branch
          %627 = sbr.rel (%p625) target = $region40
        $region39: #{_lambda_.32} parent=35 // pred_region
          %s628 = sand.u32 %s53, 1
          %s629 = scalar_lea.sflag [#allocation4], %s628
          %s630 = sand.u32 %s53, 1
          %s631 = smul.addr %s630, 4
          %s632 = scalar_lea.vmem [#allocation5], %s631
          %633 = dma.done %s629, 64
        $region40: #{_lambda_.32} parent=35 // pred_fallthru
          _
      $region36: #{_lambda_.32} parent=5 // pred_fallthru
        _
    $region6: #{_lambda_.32} parent=1 // loop_footer
      %s17 = sadd.s32 1, %s13
    $region7: #{_lambda_.32} parent=1 // loop_footer_branch
      %12 = sbr.rel target = $region3
    $region8: #{_lambda_.32} parent=1 // loop_exit
      _
    %634 = vsyncpa [#allocation3], 1
    %s635 = scalar_lea.sflag [#allocation3], 1
    %636 = vsyncpa %s635, 1
    %637 = vsyncpa [#allocation4], 1
    %s638 = scalar_lea.sflag [#allocation4], 1
    %639 = vsyncpa %s638, 1

// kernel: _lambda_.34
$region0: #{_lambda_.34}
  #allocation0 [shape = 'u32[]', space=smem, size = 0x4, offset = 0x4, fixed_abs, tag = 'smem constant byte address 0x4 - core index']
  #allocation1 [shape = 'u32[144,128]{1,0:T(1,128)}', space=vmem, size = 0x12000, scoped, tag = 'internal scratch']
  #allocation2 [shape = 'f32[16,64]{1,0:T(8,128)}', space=vmem, size = 0x2000, scoped, tag = 'scratch operand']
  %s0 = inlined_call_operand.hbm [shape: bf16[16,32], index: 0, kind: input, shape index: {}]
  %s1 = inlined_call_operand.hbm [shape: bf16[32,64], index: 1, kind: input, shape index: {}]
  %s2 = inlined_call_operand.hbm [shape: f32[1,64], index: 2, kind: input, shape index: {}]
  %s3 = inlined_call_operand.hbm [shape: bf16[16,64], index: 3, kind: output, shape index: {}]
  %s4 = sld [smem:[#allocation0]]
  $region42: #{_lambda_.34} parent=0
    _
  %s6 = ssub.s32 1, %s4
  %s7 = scalar_select 0, %s6, %s4
  $region1: #{_lambda_.34} parent=0
    #allocation3 [shape = 'u8[4096]{0}', space=vmem, size = 0x1000, scoped, tag = 'input window, operand 0, single buffered']
    #allocation4 [shape = 's32[1]{0}', space=sflag, size = 0x4, scoped, tag = 'scoped memory for _lambda_.34']
    #allocation5 [shape = 's32[1]{0}', space=sflag, size = 0x4, scoped, tag = 'scoped memory for _lambda_.34']
    #allocation6 [shape = 'u8[8192]{0}', space=vmem, size = 0x2000, scoped, tag = 'input window, operand 1, single buffered']
    #allocation7 [shape = 's32[1]{0}', space=sflag, size = 0x4, scoped, tag = 'scoped memory for _lambda_.34']
    #allocation8 [shape = 'u8[512]{0}', space=vmem, size = 0x400, scoped, tag = 'input window, operand 2, single buffered']
    #allocation9 [shape = 'u8[4096]{0}', space=vmem, size = 0x1000, scoped, tag = 'output window, operand 0, single buffered']
    %8 = vsyncpa [#allocation4], 0
    %9 = vsyncpa [#allocation7], 0
    %10 = vsyncpa [#allocation5], 0
    // Predicated region
    $region2: #{_lambda_.34} parent=1 // pred_check
      _
    $region3: #{_lambda_.34} parent=1 // pred_check_branch
      %12 = sbr.rel (0) target = $region5
    $region4: #{_lambda_.34} parent=1 // pred_region
      %s14 = ssub.s32 128, 128
      %15 = vsyncadd [#allocation4], %s14
      %s16 = sshll.u32 [#allocation3], 4
      %s17 = int_to_ptr.vmem [resolvable:$true] %s16
      %22 = dma.hbm_to_vmem [thread:$0]  %s0, 128, %s17, [#allocation4], 64, 64, 4
    $region5: #{_lambda_.34} parent=1 // pred_fallthru
      _
    // Predicated region
    $region6: #{_lambda_.34} parent=1 // pred_check
      _
    $region7: #{_lambda_.34} parent=1 // pred_check_branch
      %24 = sbr.rel (0) target = $region9
    $region8: #{_lambda_.34} parent=1 // pred_region
      %s26 = ssub.s32 256, 256
      %27 = vsyncadd [#allocation7], %s26
      %s28 = sshll.u32 [#allocation6], 4
      %s29 = int_to_ptr.vmem [resolvable:$true] %s28
      %34 = dma.hbm_to_vmem [thread:$0]  %s1, 256, %s29, [#allocation7], 64, 64, 4
    $region9: #{_lambda_.34} parent=1 // pred_fallthru
      _
    // Predicated region
    $region10: #{_lambda_.34} parent=1 // pred_check
      _
    $region11: #{_lambda_.34} parent=1 // pred_check_branch
      %36 = sbr.rel (0) target = $region13
    $region12: #{_lambda_.34} parent=1 // pred_region
      %s38 = ssub.s32 16, 16
      %39 = vsyncadd [#allocation7], %s38
      %s41 = sshll.u32 [#allocation8], 4
      %s42 = int_to_ptr.vmem [resolvable:$true] %s41
      %44 = dma.hbm_to_vmem [thread:$0]  %s2, 16, %s42, [#allocation7]
    $region13: #{_lambda_.34} parent=1 // pred_fallthru
      _
    // Predicated region
    $region14: #{_lambda_.34} parent=1 // pred_check
      _
    $region15: #{_lambda_.34} parent=1 // pred_check_branch
      %46 = sbr.rel (0) target = $region17
    $region16: #{_lambda_.34} parent=1 // pred_region
      %47 = dma.done [#allocation4], 128
    $region17: #{_lambda_.34} parent=1 // pred_fallthru
      _
    // Predicated region
    $region18: #{_lambda_.34} parent=1 // pred_check
      _
    $region19: #{_lambda_.34} parent=1 // pred_check_branch
      %49 = sbr.rel (0) target = $region21
    $region20: #{_lambda_.34} parent=1 // pred_region
      %50 = dma.done [#allocation7], 256
    $region21: #{_lambda_.34} parent=1 // pred_fallthru
      _
    // Predicated region
    $region22: #{_lambda_.34} parent=1 // pred_check
      _
    $region23: #{_lambda_.34} parent=1 // pred_check_branch
      %52 = sbr.rel (0) target = $region25
    $region24: #{_lambda_.34} parent=1 // pred_region
      %53 = dma.done [#allocation7], 16
    $region25: #{_lambda_.34} parent=1 // pred_fallthru
      _
    %p55 = scmp.eq.s32.totalorder 0, 0
    // Predicated region
    $region26: #{_lambda_.34} parent=1 // pred_check
      %p56 = pneg %p55
    $region27: #{_lambda_.34} parent=1 // pred_check_branch
      %58 = sbr.rel (%p56) target = $region29
    $region28: #{_lambda_.34} parent=1 // pred_region
      %vm59 = vcmask 523264
      %60 = vst.msk [vmem:[#allocation2] sm:$0xff] %vm59, 0.0
      %61 = vst.msk [vmem:[#allocation2 + $0x8] sm:$0xff] %vm59, 0.0
    $region29: #{_lambda_.34} parent=1 // pred_fallthru
      _
    %v62 = vld [vmem:[#allocation3] sm:$0xf]
    %v63 = vld [vmem:[#allocation3 + $0x4] sm:$0xf]
    %v64 = vld [vmem:[#allocation6] sm:$0xf]
    %v65 = vld [vmem:[#allocation6 + $0x4] sm:$0xf]
    %v66 = vld [vmem:[#allocation6 + $0x8] sm:$0xf]
    %v67 = vld [vmem:[#allocation6 + $0xc] sm:$0xf]
    %v68 = vld [vmem:[#allocation2] sm:$0xff]
    %v69 = vld [vmem:[#allocation2 + $0x8] sm:$0xff]
    %v72 = vunpack.c.l.b16 %v62
    %v73 = vunpack.c.l.b16 %v63
    %v74 = vpack.c.b16 %v73, %v72
    %v79 = vunpack.c.l.b16 %v64
    %v80 = vunpack.c.l.b16 %v65
    %v81 = vunpack.c.l.b16 %v66
    %v82 = vunpack.c.l.b16 %v67
    %v83 = vpack.c.b16 %v80, %v79
    %v84 = vpack.c.b16 %v82, %v81
    %vm87 = vcmask 261120
    %v89 = vsel %vm87, %v74, 0
    %91 = vmatprep.subr.bf16.mxu0 0
    %92 = vmatpush1.bf16.msra.mxu0 %v83
    %93 = vmatprep.subr.bf16.mxu0 0
    %94 = vmatpush1.bf16.msra.mxu0 %v84
    %95 = vmatprep.subr.bf16.mxu0 0
    %96 = vmatpush1.bf16.msra.mxu0 0
    %97 = vmatprep.subr.bf16.mxu0 0
    %98 = vmatpush1.bf16.msra.mxu0 0
    %99 = vmatprep.subr.bf16.mxu0 0
    %100 = vmatpush1.bf16.msra.mxu0 0
    %101 = vmatprep.subr.bf16.mxu0 0
    %102 = vmatpush1.bf16.msra.mxu0 0
    %103 = vmatprep.subr.bf16.mxu0 0
    %104 = vmatpush1.bf16.msra.mxu0 0
    %105 = vmatprep.subr.bf16.mxu0 0
    %106 = vmatpush1.bf16.msra.mxu0 0
    %107 = vmatprep.subr.bf16.mxu0 0
    %108 = vmatpush1.bf16.msra.mxu0 0
    %109 = vmatprep.subr.bf16.mxu0 0
    %110 = vmatpush1.bf16.msra.mxu0 0
    %111 = vmatprep.subr.bf16.mxu0 0
    %112 = vmatpush1.bf16.msra.mxu0 0
    %113 = vmatprep.subr.bf16.mxu0 0
    %114 = vmatpush1.bf16.msra.mxu0 0
    %115 = vmatprep.subr.bf16.mxu0 0
    %116 = vmatpush1.bf16.msra.mxu0 0
    %117 = vmatprep.subr.bf16.mxu0 0
    %118 = vmatpush1.bf16.msra.mxu0 0
    %119 = vmatprep.subr.bf16.mxu0 0
    %120 = vmatpush1.bf16.msra.mxu0 0
    %121 = vmatprep.subr.bf16.mxu0 0
    %122 = vmatpush1.bf16.msra.mxu0 0
    %123 = vmatprep.mubr.bf16.mxu0 0
    %124 = vmatmul.mubr.bf16.gmra.mrb[0].mxu0 %v89
    %v125 = vpop.f32.mrb[0].mxu0
    %v126 = vadd.f32 0.0, %v125
    %v127 = vpop.f32.mrb[0].mxu0
    %v128 = vpop.f32.mrb[0].mxu0
    %v129 = vadd.f32 0.0, %v128
    %v130 = vpop.f32.mrb[0].mxu0
    %131 = vdwg.mxu0
    %v132 = vadd.f32 %v68, %v126
    %v133 = vadd.f32 %v69, %v129
    %vm134 = vcmask 523264
    %135 = vst.msk [vmem:[#allocation2] sm:$0xff] %vm134, %v132
    %136 = vst.msk [vmem:[#allocation2 + $0x8] sm:$0xff] %vm134, %v133
    // Predicated region
    $region30: #{_lambda_.34} parent=1 // pred_check
      %p137 = pneg %p55
    $region31: #{_lambda_.34} parent=1 // pred_check_branch
      %139 = sbr.rel (%p137) target = $region33
    $region32: #{_lambda_.34} parent=1 // pred_region
      %v140 = vld [vmem:[#allocation2] sm:$0xff]
      %v141 = vld [vmem:[#allocation2 + $0x8] sm:$0xff]
      %v142 = vld [vmem:[#allocation8] sm:$0x1]
      %v144 = vlaneseq
      %v145 = vshrl.u32 %v144, 7
      %v146 = vsub.s32 0, %v145
      %v147 = vrot.slane %v142, %v146
      %v149 = vadd.f32 %v140, %v147
      %v150 = vadd.f32 %v141, %v147
      %v151 = vmax.f32 %v149, 0.0
      %v152 = vmax.f32 %v150, 0.0
      %v153 = vpack.c.bf16 %v152, %v151
      %v155 = vunpack.c.l.b16 %v153
      %v156 = vunpack.c.h.b16 %v153
      %v157 = vpack.c.b16 %v155, %v155
      %v158 = vpack.c.b16 %v156, %v156
      %vm161 = vcmask 519168
      %162 = vst.msk [vmem:[#allocation9] sm:$0xf] %vm161, %v157
      %163 = vst.msk [vmem:[#allocation9 + $0x4] sm:$0xf] %vm161, %v158
    $region33: #{_lambda_.34} parent=1 // pred_fallthru
      _
    // Predicated region
    $region34: #{_lambda_.34} parent=1 // pred_check
      _
    $region35: #{_lambda_.34} parent=1 // pred_check_branch
      %165 = sbr.rel (0) target = $region37
    $region36: #{_lambda_.34} parent=1 // pred_region
      %s167 = ssub.s32 128, 128
      %168 = vsyncadd [#allocation5], %s167
      %s169 = sshll.u32 [#allocation9], 4
      %s170 = int_to_ptr.vmem [resolvable:$true] %s169
      %175 = dma.vmem_to_hbm [thread:$0]  %s170, 128, %s3, [#allocation5], 64, 64, 4
    $region37: #{_lambda_.34} parent=1 // pred_fallthru
      _
    // Predicated region
    $region38: #{_lambda_.34} parent=1 // pred_check
      _
    $region39: #{_lambda_.34} parent=1 // pred_check_branch
      %177 = sbr.rel (0) target = $region41
    $region40: #{_lambda_.34} parent=1 // pred_region
      %178 = dma.done [#allocation5], 128
    $region41: #{_lambda_.34} parent=1 // pred_fallthru
      _
    %179 = vsyncpa [#allocation4], 1
    %180 = vsyncpa [#allocation7], 1
    %181 = vsyncpa [#allocation5], 1

// kernel: _lambda_.45
$region0: #{_lambda_.45}
  #allocation0 [shape = 'u32[]', space=smem, size = 0x4, offset = 0x4, fixed_abs, tag = 'smem constant byte address 0x4 - core index']
  #allocation1 [shape = 'u32[144,128]{1,0:T(1,128)}', space=vmem, size = 0x12000, scoped, tag = 'internal scratch']
  #allocation2 [shape = 'f32[16,32]{1,0:T(8,128)}', space=vmem, size = 0x2000, scoped, tag = 'scratch operand']
  %s0 = inlined_call_operand.hbm [shape: bf16[16,32], index: 0, kind: input, shape index: {}]
  %s1 = inlined_call_operand.hbm [shape: bf16[32,32], index: 1, kind: input, shape index: {}]
  %s2 = inlined_call_operand.hbm [shape: f32[1,32], index: 2, kind: input, shape index: {}]
  %s3 = inlined_call_operand.hbm [shape: bf16[16,32], index: 3, kind: output, shape index: {}]
  %s4 = sld [smem:[#allocation0]]
  $region42: #{_lambda_.45} parent=0
    _
  %s6 = ssub.s32 1, %s4
  %s7 = scalar_select 0, %s6, %s4
  $region1: #{_lambda_.45} parent=0
    #allocation3 [shape = 'u8[4096]{0}', space=vmem, size = 0x1000, scoped, tag = 'input window, operand 0, single buffered']
    #allocation4 [shape = 's32[1]{0}', space=sflag, size = 0x4, scoped, tag = 'scoped memory for _lambda_.45']
    #allocation5 [shape = 's32[1]{0}', space=sflag, size = 0x4, scoped, tag = 'scoped memory for _lambda_.45']
    #allocation6 [shape = 'u8[8192]{0}', space=vmem, size = 0x2000, scoped, tag = 'input window, operand 1, single buffered']
    #allocation7 [shape = 's32[1]{0}', space=sflag, size = 0x4, scoped, tag = 'scoped memory for _lambda_.45']
    #allocation8 [shape = 'u8[512]{0}', space=vmem, size = 0x400, scoped, tag = 'input window, operand 2, single buffered']
    #allocation9 [shape = 'u8[4096]{0}', space=vmem, size = 0x1000, scoped, tag = 'output window, operand 0, single buffered']
    %8 = vsyncpa [#allocation4], 0
    %9 = vsyncpa [#allocation7], 0
    %10 = vsyncpa [#allocation5], 0
    // Predicated region
    $region2: #{_lambda_.45} parent=1 // pred_check
      _
    $region3: #{_lambda_.45} parent=1 // pred_check_branch
      %12 = sbr.rel (0) target = $region5
    $region4: #{_lambda_.45} parent=1 // pred_region
      %s14 = ssub.s32 128, 128
      %15 = vsyncadd [#allocation4], %s14
      %s16 = sshll.u32 [#allocation3], 4
      %s17 = int_to_ptr.vmem [resolvable:$true] %s16
      %22 = dma.hbm_to_vmem [thread:$0]  %s0, 128, %s17, [#allocation4], 64, 64, 4
    $region5: #{_lambda_.45} parent=1 // pred_fallthru
      _
    // Predicated region
    $region6: #{_lambda_.45} parent=1 // pred_check
      _
    $region7: #{_lambda_.45} parent=1 // pred_check_branch
      %24 = sbr.rel (0) target = $region9
    $region8: #{_lambda_.45} parent=1 // pred_region
      %s26 = ssub.s32 256, 256
      %27 = vsyncadd [#allocation7], %s26
      %s28 = sshll.u32 [#allocation6], 4
      %s29 = int_to_ptr.vmem [resolvable:$true] %s28
      %34 = dma.hbm_to_vmem [thread:$0]  %s1, 256, %s29, [#allocation7], 64, 64, 4
    $region9: #{_lambda_.45} parent=1 // pred_fallthru
      _
    // Predicated region
    $region10: #{_lambda_.45} parent=1 // pred_check
      _
    $region11: #{_lambda_.45} parent=1 // pred_check_branch
      %36 = sbr.rel (0) target = $region13
    $region12: #{_lambda_.45} parent=1 // pred_region
      %s38 = ssub.s32 16, 16
      %39 = vsyncadd [#allocation7], %s38
      %s41 = sshll.u32 [#allocation8], 4
      %s42 = int_to_ptr.vmem [resolvable:$true] %s41
      %44 = dma.hbm_to_vmem [thread:$0]  %s2, 16, %s42, [#allocation7]
    $region13: #{_lambda_.45} parent=1 // pred_fallthru
      _
    // Predicated region
    $region14: #{_lambda_.45} parent=1 // pred_check
      _
    $region15: #{_lambda_.45} parent=1 // pred_check_branch
      %46 = sbr.rel (0) target = $region17
    $region16: #{_lambda_.45} parent=1 // pred_region
      %47 = dma.done [#allocation4], 128
    $region17: #{_lambda_.45} parent=1 // pred_fallthru
      _
    // Predicated region
    $region18: #{_lambda_.45} parent=1 // pred_check
      _
    $region19: #{_lambda_.45} parent=1 // pred_check_branch
      %49 = sbr.rel (0) target = $region21
    $region20: #{_lambda_.45} parent=1 // pred_region
      %50 = dma.done [#allocation7], 256
    $region21: #{_lambda_.45} parent=1 // pred_fallthru
      _
    // Predicated region
    $region22: #{_lambda_.45} parent=1 // pred_check
      _
    $region23: #{_lambda_.45} parent=1 // pred_check_branch
      %52 = sbr.rel (0) target = $region25
    $region24: #{_lambda_.45} parent=1 // pred_region
      %53 = dma.done [#allocation7], 16
    $region25: #{_lambda_.45} parent=1 // pred_fallthru
      _
    %p55 = scmp.eq.s32.totalorder 0, 0
    // Predicated region
    $region26: #{_lambda_.45} parent=1 // pred_check
      %p56 = pneg %p55
    $region27: #{_lambda_.45} parent=1 // pred_check_branch
      %58 = sbr.rel (%p56) target = $region29
    $region28: #{_lambda_.45} parent=1 // pred_region
      %vm59 = vcmask 261120
      %60 = vst.msk [vmem:[#allocation2] sm:$0xff] %vm59, 0.0
      %61 = vst.msk [vmem:[#allocation2 + $0x8] sm:$0xff] %vm59, 0.0
    $region29: #{_lambda_.45} parent=1 // pred_fallthru
      _
    %v62 = vld [vmem:[#allocation3] sm:$0xf]
    %v63 = vld [vmem:[#allocation3 + $0x4] sm:$0xf]
    %v64 = vld [vmem:[#allocation6] sm:$0xf]
    %v65 = vld [vmem:[#allocation6 + $0x4] sm:$0xf]
    %v66 = vld [vmem:[#allocation6 + $0x8] sm:$0xf]
    %v67 = vld [vmem:[#allocation6 + $0xc] sm:$0xf]
    %v68 = vld [vmem:[#allocation2] sm:$0xff]
    %v69 = vld [vmem:[#allocation2 + $0x8] sm:$0xff]
    %v72 = vunpack.c.l.b16 %v62
    %v73 = vunpack.c.l.b16 %v63
    %v74 = vpack.c.b16 %v73, %v72
    %v79 = vunpack.c.l.b16 %v64
    %v80 = vunpack.c.l.b16 %v65
    %v81 = vunpack.c.l.b16 %v66
    %v82 = vunpack.c.l.b16 %v67
    %v83 = vpack.c.b16 %v80, %v79
    %v84 = vpack.c.b16 %v82, %v81
    %vm87 = vcmask 261120
    %v89 = vsel %vm87, %v74, 0
    %91 = vmatprep.subr.bf16.mxu0 0
    %92 = vmatpush1.bf16.msra.mxu0 %v83
    %93 = vmatprep.subr.bf16.mxu0 0
    %94 = vmatpush1.bf16.msra.mxu0 %v84
    %95 = vmatprep.subr.bf16.mxu0 0
    %96 = vmatpush1.bf16.msra.mxu0 0
    %97 = vmatprep.subr.bf16.mxu0 0
    %98 = vmatpush1.bf16.msra.mxu0 0
    %99 = vmatprep.subr.bf16.mxu0 0
    %100 = vmatpush1.bf16.msra.mxu0 0
    %101 = vmatprep.subr.bf16.mxu0 0
    %102 = vmatpush1.bf16.msra.mxu0 0
    %103 = vmatprep.subr.bf16.mxu0 0
    %104 = vmatpush1.bf16.msra.mxu0 0
    %105 = vmatprep.subr.bf16.mxu0 0
    %106 = vmatpush1.bf16.msra.mxu0 0
    %107 = vmatprep.subr.bf16.mxu0 0
    %108 = vmatpush1.bf16.msra.mxu0 0
    %109 = vmatprep.subr.bf16.mxu0 0
    %110 = vmatpush1.bf16.msra.mxu0 0
    %111 = vmatprep.subr.bf16.mxu0 0
    %112 = vmatpush1.bf16.msra.mxu0 0
    %113 = vmatprep.subr.bf16.mxu0 0
    %114 = vmatpush1.bf16.msra.mxu0 0
    %115 = vmatprep.subr.bf16.mxu0 0
    %116 = vmatpush1.bf16.msra.mxu0 0
    %117 = vmatprep.subr.bf16.mxu0 0
    %118 = vmatpush1.bf16.msra.mxu0 0
    %119 = vmatprep.subr.bf16.mxu0 0
    %120 = vmatpush1.bf16.msra.mxu0 0
    %121 = vmatprep.subr.bf16.mxu0 0
    %122 = vmatpush1.bf16.msra.mxu0 0
    %123 = vmatprep.mubr.bf16.mxu0 0
    %124 = vmatmul.mubr.bf16.gmra.mrb[0].mxu0 %v89
    %v125 = vpop.f32.mrb[0].mxu0
    %v126 = vadd.f32 0.0, %v125
    %v127 = vpop.f32.mrb[0].mxu0
    %v128 = vpop.f32.mrb[0].mxu0
    %v129 = vadd.f32 0.0, %v128
    %v130 = vpop.f32.mrb[0].mxu0
    %131 = vdwg.mxu0
    %v132 = vadd.f32 %v68, %v126
    %v133 = vadd.f32 %v69, %v129
    %134 = vst.msk [vmem:[#allocation2] sm:$0xff] %vm87, %v132
    %135 = vst.msk [vmem:[#allocation2 + $0x8] sm:$0xff] %vm87, %v133
    // Predicated region
    $region30: #{_lambda_.45} parent=1 // pred_check
      %p136 = pneg %p55
    $region31: #{_lambda_.45} parent=1 // pred_check_branch
      %138 = sbr.rel (%p136) target = $region33
    $region32: #{_lambda_.45} parent=1 // pred_region
      %v139 = vld [vmem:[#allocation2] sm:$0xff]
      %v140 = vld [vmem:[#allocation2 + $0x8] sm:$0xff]
      %v141 = vld [vmem:[#allocation8] sm:$0x1]
      %v143 = vlaneseq
      %v144 = vshrl.u32 %v143, 7
      %v145 = vsub.s32 0, %v144
      %v146 = vrot.slane %v141, %v145
      %v148 = vadd.f32 %v139, %v146
      %v149 = vadd.f32 %v140, %v146
      %v150 = vpack.c.bf16 %v149, %v148
      %v152 = vunpack.c.l.b16 %v150
      %v153 = vunpack.c.h.b16 %v150
      %v154 = vpack.c.b16 %v152, %v152
      %v155 = vpack.c.b16 %v153, %v153
      %vm158 = vcmask 257024
      %159 = vst.msk [vmem:[#allocation9] sm:$0xf] %vm158, %v154
      %160 = vst.msk [vmem:[#allocation9 + $0x4] sm:$0xf] %vm158, %v155
    $region33: #{_lambda_.45} parent=1 // pred_fallthru
      _
    // Predicated region
    $region34: #{_lambda_.45} parent=1 // pred_check
      _
    $region35: #{_lambda_.45} parent=1 // pred_check_branch
      %162 = sbr.rel (0) target = $region37
    $region36: #{_lambda_.45} parent=1 // pred_region
      %s164 = ssub.s32 128, 128
      %165 = vsyncadd [#allocation5], %s164
      %s166 = sshll.u32 [#allocation9], 4
      %s167 = int_to_ptr.vmem [resolvable:$true] %s166
      %172 = dma.vmem_to_hbm [thread:$0]  %s167, 128, %s3, [#allocation5], 64, 64, 4
    $region37: #{_lambda_.45} parent=1 // pred_fallthru
      _
    // Predicated region
    $region38: #{_lambda_.45} parent=1 // pred_check
      _
    $region39: #{_lambda_.45} parent=1 // pred_check_branch
      %174 = sbr.rel (0) target = $region41
    $region40: #{_lambda_.45} parent=1 // pred_region
      %175 = dma.done [#allocation5], 128
    $region41: #{_lambda_.45} parent=1 // pred_fallthru
      _
    %176 = vsyncpa [#allocation4], 1
    %177 = vsyncpa [#allocation7], 1
    %178 = vsyncpa [#allocation5], 1

// kernel: _lambda_.46
$region0: #{_lambda_.46}
  #allocation0 [shape = 'u32[]', space=smem, size = 0x4, offset = 0x4, fixed_abs, tag = 'smem constant byte address 0x4 - core index']
  #allocation1 [shape = 'u32[144,128]{1,0:T(1,128)}', space=vmem, size = 0x12000, scoped, tag = 'internal scratch']
  #allocation2 [shape = 'f32[16,64]{1,0:T(8,128)}', space=vmem, size = 0x2000, scoped, tag = 'scratch operand']
  %s0 = inlined_call_operand.hbm [shape: bf16[16,32], index: 0, kind: input, shape index: {}]
  %s1 = inlined_call_operand.hbm [shape: bf16[32,64], index: 1, kind: input, shape index: {}]
  %s2 = inlined_call_operand.hbm [shape: f32[1,64], index: 2, kind: input, shape index: {}]
  %s3 = inlined_call_operand.hbm [shape: bf16[16,64], index: 3, kind: output, shape index: {}]
  %s4 = sld [smem:[#allocation0]]
  $region42: #{_lambda_.46} parent=0
    _
  %s6 = ssub.s32 1, %s4
  %s7 = scalar_select 0, %s6, %s4
  $region1: #{_lambda_.46} parent=0
    #allocation3 [shape = 'u8[4096]{0}', space=vmem, size = 0x1000, scoped, tag = 'input window, operand 0, single buffered']
    #allocation4 [shape = 's32[1]{0}', space=sflag, size = 0x4, scoped, tag = 'scoped memory for _lambda_.46']
    #allocation5 [shape = 's32[1]{0}', space=sflag, size = 0x4, scoped, tag = 'scoped memory for _lambda_.46']
    #allocation6 [shape = 'u8[8192]{0}', space=vmem, size = 0x2000, scoped, tag = 'input window, operand 1, single buffered']
    #allocation7 [shape = 's32[1]{0}', space=sflag, size = 0x4, scoped, tag = 'scoped memory for _lambda_.46']
    #allocation8 [shape = 'u8[512]{0}', space=vmem, size = 0x400, scoped, tag = 'input window, operand 2, single buffered']
    #allocation9 [shape = 'u8[4096]{0}', space=vmem, size = 0x1000, scoped, tag = 'output window, operand 0, single buffered']
    %8 = vsyncpa [#allocation4], 0
    %9 = vsyncpa [#allocation7], 0
    %10 = vsyncpa [#allocation5], 0
    // Predicated region
    $region2: #{_lambda_.46} parent=1 // pred_check
      _
    $region3: #{_lambda_.46} parent=1 // pred_check_branch
      %12 = sbr.rel (0) target = $region5
    $region4: #{_lambda_.46} parent=1 // pred_region
      %s14 = ssub.s32 128, 128
      %15 = vsyncadd [#allocation4], %s14
      %s16 = sshll.u32 [#allocation3], 4
      %s17 = int_to_ptr.vmem [resolvable:$true] %s16
      %22 = dma.hbm_to_vmem [thread:$0]  %s0, 128, %s17, [#allocation4], 64, 64, 4
    $region5: #{_lambda_.46} parent=1 // pred_fallthru
      _
    // Predicated region
    $region6: #{_lambda_.46} parent=1 // pred_check
      _
    $region7: #{_lambda_.46} parent=1 // pred_check_branch
      %24 = sbr.rel (0) target = $region9
    $region8: #{_lambda_.46} parent=1 // pred_region
      %s26 = ssub.s32 256, 256
      %27 = vsyncadd [#allocation7], %s26
      %s28 = sshll.u32 [#allocation6], 4
      %s29 = int_to_ptr.vmem [resolvable:$true] %s28
      %34 = dma.hbm_to_vmem [thread:$0]  %s1, 256, %s29, [#allocation7], 64, 64, 4
    $region9: #{_lambda_.46} parent=1 // pred_fallthru
      _
    // Predicated region
    $region10: #{_lambda_.46} parent=1 // pred_check
      _
    $region11: #{_lambda_.46} parent=1 // pred_check_branch
      %36 = sbr.rel (0) target = $region13
    $region12: #{_lambda_.46} parent=1 // pred_region
      %s38 = ssub.s32 16, 16
      %39 = vsyncadd [#allocation7], %s38
      %s41 = sshll.u32 [#allocation8], 4
      %s42 = int_to_ptr.vmem [resolvable:$true] %s41
      %44 = dma.hbm_to_vmem [thread:$0]  %s2, 16, %s42, [#allocation7]
    $region13: #{_lambda_.46} parent=1 // pred_fallthru
      _
    // Predicated region
    $region14: #{_lambda_.46} parent=1 // pred_check
      _
    $region15: #{_lambda_.46} parent=1 // pred_check_branch
      %46 = sbr.rel (0) target = $region17
    $region16: #{_lambda_.46} parent=1 // pred_region
      %47 = dma.done [#allocation4], 128
    $region17: #{_lambda_.46} parent=1 // pred_fallthru
      _
    // Predicated region
    $region18: #{_lambda_.46} parent=1 // pred_check
      _
    $region19: #{_lambda_.46} parent=1 // pred_check_branch
      %49 = sbr.rel (0) target = $region21
    $region20: #{_lambda_.46} parent=1 // pred_region
      %50 = dma.done [#allocation7], 256
    $region21: #{_lambda_.46} parent=1 // pred_fallthru
      _
    // Predicated region
    $region22: #{_lambda_.46} parent=1 // pred_check
      _
    $region23: #{_lambda_.46} parent=1 // pred_check_branch
      %52 = sbr.rel (0) target = $region25
    $region24: #{_lambda_.46} parent=1 // pred_region
      %53 = dma.done [#allocation7], 16
    $region25: #{_lambda_.46} parent=1 // pred_fallthru
      _
    %p55 = scmp.eq.s32.totalorder 0, 0
    // Predicated region
    $region26: #{_lambda_.46} parent=1 // pred_check
      %p56 = pneg %p55
    $region27: #{_lambda_.46} parent=1 // pred_check_branch
      %58 = sbr.rel (%p56) target = $region29
    $region28: #{_lambda_.46} parent=1 // pred_region
      %vm59 = vcmask 523264
      %60 = vst.msk [vmem:[#allocation2] sm:$0xff] %vm59, 0.0
      %61 = vst.msk [vmem:[#allocation2 + $0x8] sm:$0xff] %vm59, 0.0
    $region29: #{_lambda_.46} parent=1 // pred_fallthru
      _
    %v62 = vld [vmem:[#allocation3] sm:$0xf]
    %v63 = vld [vmem:[#allocation3 + $0x4] sm:$0xf]
    %v64 = vld [vmem:[#allocation6] sm:$0xf]
    %v65 = vld [vmem:[#allocation6 + $0x4] sm:$0xf]
    %v66 = vld [vmem:[#allocation6 + $0x8] sm:$0xf]
    %v67 = vld [vmem:[#allocation6 + $0xc] sm:$0xf]
    %v68 = vld [vmem:[#allocation2] sm:$0xff]
    %v69 = vld [vmem:[#allocation2 + $0x8] sm:$0xff]
    %v72 = vunpack.c.l.b16 %v62
    %v73 = vunpack.c.l.b16 %v63
    %v74 = vpack.c.b16 %v73, %v72
    %v79 = vunpack.c.l.b16 %v64
    %v80 = vunpack.c.l.b16 %v65
    %v81 = vunpack.c.l.b16 %v66
    %v82 = vunpack.c.l.b16 %v67
    %v83 = vpack.c.b16 %v80, %v79
    %v84 = vpack.c.b16 %v82, %v81
    %vm87 = vcmask 261120
    %v89 = vsel %vm87, %v74, 0
    %91 = vmatprep.subr.bf16.mxu0 0
    %92 = vmatpush1.bf16.msra.mxu0 %v83
    %93 = vmatprep.subr.bf16.mxu0 0
    %94 = vmatpush1.bf16.msra.mxu0 %v84
    %95 = vmatprep.subr.bf16.mxu0 0
    %96 = vmatpush1.bf16.msra.mxu0 0
    %97 = vmatprep.subr.bf16.mxu0 0
    %98 = vmatpush1.bf16.msra.mxu0 0
    %99 = vmatprep.subr.bf16.mxu0 0
    %100 = vmatpush1.bf16.msra.mxu0 0
    %101 = vmatprep.subr.bf16.mxu0 0
    %102 = vmatpush1.bf16.msra.mxu0 0
    %103 = vmatprep.subr.bf16.mxu0 0
    %104 = vmatpush1.bf16.msra.mxu0 0
    %105 = vmatprep.subr.bf16.mxu0 0
    %106 = vmatpush1.bf16.msra.mxu0 0
    %107 = vmatprep.subr.bf16.mxu0 0
    %108 = vmatpush1.bf16.msra.mxu0 0
    %109 = vmatprep.subr.bf16.mxu0 0
    %110 = vmatpush1.bf16.msra.mxu0 0
    %111 = vmatprep.subr.bf16.mxu0 0
    %112 = vmatpush1.bf16.msra.mxu0 0
    %113 = vmatprep.subr.bf16.mxu0 0
    %114 = vmatpush1.bf16.msra.mxu0 0
    %115 = vmatprep.subr.bf16.mxu0 0
    %116 = vmatpush1.bf16.msra.mxu0 0
    %117 = vmatprep.subr.bf16.mxu0 0
    %118 = vmatpush1.bf16.msra.mxu0 0
    %119 = vmatprep.subr.bf16.mxu0 0
    %120 = vmatpush1.bf16.msra.mxu0 0
    %121 = vmatprep.subr.bf16.mxu0 0
    %122 = vmatpush1.bf16.msra.mxu0 0
    %123 = vmatprep.mubr.bf16.mxu0 0
    %124 = vmatmul.mubr.bf16.gmra.mrb[0].mxu0 %v89
    %v125 = vpop.f32.mrb[0].mxu0
    %v126 = vadd.f32 0.0, %v125
    %v127 = vpop.f32.mrb[0].mxu0
    %v128 = vpop.f32.mrb[0].mxu0
    %v129 = vadd.f32 0.0, %v128
    %v130 = vpop.f32.mrb[0].mxu0
    %131 = vdwg.mxu0
    %v132 = vadd.f32 %v68, %v126
    %v133 = vadd.f32 %v69, %v129
    %vm134 = vcmask 523264
    %135 = vst.msk [vmem:[#allocation2] sm:$0xff] %vm134, %v132
    %136 = vst.msk [vmem:[#allocation2 + $0x8] sm:$0xff] %vm134, %v133
    // Predicated region
    $region30: #{_lambda_.46} parent=1 // pred_check
      %p137 = pneg %p55
    $region31: #{_lambda_.46} parent=1 // pred_check_branch
      %139 = sbr.rel (%p137) target = $region33
    $region32: #{_lambda_.46} parent=1 // pred_region
      %v140 = vld [vmem:[#allocation2] sm:$0xff]
      %v141 = vld [vmem:[#allocation2 + $0x8] sm:$0xff]
      %v142 = vld [vmem:[#allocation8] sm:$0x1]
      %v144 = vlaneseq
      %v145 = vshrl.u32 %v144, 7
      %v146 = vsub.s32 0, %v145
      %v147 = vrot.slane %v142, %v146
      %v149 = vadd.f32 %v140, %v147
      %v150 = vadd.f32 %v141, %v147
      %v151 = vpack.c.bf16 %v150, %v149
      %v153 = vunpack.c.l.b16 %v151
      %v154 = vunpack.c.h.b16 %v151
      %v155 = vpack.c.b16 %v153, %v153
      %v156 = vpack.c.b16 %v154, %v154
      %vm159 = vcmask 519168
      %160 = vst.msk [vmem:[#allocation9] sm:$0xf] %vm159, %v155
      %161 = vst.msk [vmem:[#allocation9 + $0x4] sm:$0xf] %vm159, %v156
    $region33: #{_lambda_.46} parent=1 // pred_fallthru
      _
    // Predicated region
    $region34: #{_lambda_.46} parent=1 // pred_check
      _
    $region35: #{_lambda_.46} parent=1 // pred_check_branch
      %163 = sbr.rel (0) target = $region37
    $region36: #{_lambda_.46} parent=1 // pred_region
      %s165 = ssub.s32 128, 128
      %166 = vsyncadd [#allocation5], %s165
      %s167 = sshll.u32 [#allocation9], 4
      %s168 = int_to_ptr.vmem [resolvable:$true] %s167
      %173 = dma.vmem_to_hbm [thread:$0]  %s168, 128, %s3, [#allocation5], 64, 64, 4
    $region37: #{_lambda_.46} parent=1 // pred_fallthru
      _
    // Predicated region
    $region38: #{_lambda_.46} parent=1 // pred_check
      _
    $region39: #{_lambda_.46} parent=1 // pred_check_branch
      %175 = sbr.rel (0) target = $region41
    $region40: #{_lambda_.46} parent=1 // pred_region
      %176 = dma.done [#allocation5], 128
    $region41: #{_lambda_.46} parent=1 // pred_fallthru
      _
    %177 = vsyncpa [#allocation4], 1
    %178 = vsyncpa [#allocation7], 1
    %179 = vsyncpa [#allocation5], 1

// kernel: _lambda_.41
$region0: #{_lambda_.41}
  #allocation0 [shape = 'u32[]', space=smem, size = 0x4, offset = 0x4, fixed_abs, tag = 'smem constant byte address 0x4 - core index']
  #allocation1 [shape = 'u32[144,128]{1,0:T(1,128)}', space=vmem, size = 0x12000, scoped, tag = 'internal scratch']
  %s0 = inlined_call_operand.hbm [shape: bf16[16,32], index: 0, kind: input, shape index: {}]
  %s1 = inlined_call_operand.hbm [shape: f32[1,32], index: 1, kind: input, shape index: {}]
  %s2 = inlined_call_operand.hbm [shape: f32[1,32], index: 2, kind: input, shape index: {}]
  %s3 = inlined_call_operand.hbm [shape: bf16[16,32], index: 3, kind: output, shape index: {}]
  %s4 = sld [smem:[#allocation0]]
  $region34: #{_lambda_.41} parent=0
    _
  %s6 = ssub.s32 1, %s4
  %s7 = scalar_select 0, %s6, %s4
  $region1: #{_lambda_.41} parent=0
    #allocation2 [shape = 'u8[4096]{0}', space=vmem, size = 0x1000, scoped, tag = 'input window, operand 0, single buffered']
    #allocation3 [shape = 's32[1]{0}', space=sflag, size = 0x4, scoped, tag = 'scoped memory for _lambda_.41']
    #allocation4 [shape = 's32[1]{0}', space=sflag, size = 0x4, scoped, tag = 'scoped memory for _lambda_.41']
    #allocation5 [shape = 'u8[512]{0}', space=vmem, size = 0x400, scoped, tag = 'input window, operand 1, single buffered']
    #allocation6 [shape = 's32[1]{0}', space=sflag, size = 0x4, scoped, tag = 'scoped memory for _lambda_.41']
    #allocation7 [shape = 'u8[512]{0}', space=vmem, size = 0x400, scoped, tag = 'input window, operand 2, single buffered']
    #allocation8 [shape = 'u8[4096]{0}', space=vmem, size = 0x1000, scoped, tag = 'output window, operand 0, single buffered']
    %8 = vsyncpa [#allocation3], 0
    %9 = vsyncpa [#allocation6], 0
    %10 = vsyncpa [#allocation4], 0
    // Predicated region
    $region2: #{_lambda_.41} parent=1 // pred_check
      _
    $region3: #{_lambda_.41} parent=1 // pred_check_branch
      %12 = sbr.rel (0) target = $region5
    $region4: #{_lambda_.41} parent=1 // pred_region
      %s14 = ssub.s32 128, 128
      %15 = vsyncadd [#allocation3], %s14
      %s16 = sshll.u32 [#allocation2], 4
      %s17 = int_to_ptr.vmem [resolvable:$true] %s16
      %22 = dma.hbm_to_vmem [thread:$0]  %s0, 128, %s17, [#allocation3], 64, 64, 4
    $region5: #{_lambda_.41} parent=1 // pred_fallthru
      _
    // Predicated region
    $region6: #{_lambda_.41} parent=1 // pred_check
      _
    $region7: #{_lambda_.41} parent=1 // pred_check_branch
      %24 = sbr.rel (0) target = $region9
    $region8: #{_lambda_.41} parent=1 // pred_region
      %s26 = ssub.s32 16, 16
      %27 = vsyncadd [#allocation6], %s26
      %s29 = sshll.u32 [#allocation5], 4
      %s30 = int_to_ptr.vmem [resolvable:$true] %s29
      %32 = dma.hbm_to_vmem [thread:$0]  %s1, 16, %s30, [#allocation6]
    $region9: #{_lambda_.41} parent=1 // pred_fallthru
      _
    // Predicated region
    $region10: #{_lambda_.41} parent=1 // pred_check
      _
    $region11: #{_lambda_.41} parent=1 // pred_check_branch
      %34 = sbr.rel (0) target = $region13
    $region12: #{_lambda_.41} parent=1 // pred_region
      %s36 = ssub.s32 16, 16
      %37 = vsyncadd [#allocation6], %s36
      %s39 = sshll.u32 [#allocation7], 4
      %s40 = int_to_ptr.vmem [resolvable:$true] %s39
      %42 = dma.hbm_to_vmem [thread:$0]  %s2, 16, %s40, [#allocation6]
    $region13: #{_lambda_.41} parent=1 // pred_fallthru
      _
    // Predicated region
    $region14: #{_lambda_.41} parent=1 // pred_check
      _
    $region15: #{_lambda_.41} parent=1 // pred_check_branch
      %44 = sbr.rel (0) target = $region17
    $region16: #{_lambda_.41} parent=1 // pred_region
      %45 = dma.done [#allocation3], 128
    $region17: #{_lambda_.41} parent=1 // pred_fallthru
      _
    // Predicated region
    $region18: #{_lambda_.41} parent=1 // pred_check
      _
    $region19: #{_lambda_.41} parent=1 // pred_check_branch
      %47 = sbr.rel (0) target = $region21
    $region20: #{_lambda_.41} parent=1 // pred_region
      %48 = dma.done [#allocation6], 16
    $region21: #{_lambda_.41} parent=1 // pred_fallthru
      _
    // Predicated region
    $region22: #{_lambda_.41} parent=1 // pred_check
      _
    $region23: #{_lambda_.41} parent=1 // pred_check_branch
      %50 = sbr.rel (0) target = $region25
    $region24: #{_lambda_.41} parent=1 // pred_region
      %51 = dma.done [#allocation6], 16
    $region25: #{_lambda_.41} parent=1 // pred_fallthru
      _
    %v52 = vld [vmem:[#allocation2] sm:$0xf]
    %v53 = vld [vmem:[#allocation2 + $0x4] sm:$0xf]
    %v54 = vunpack.c.l.bf16 %v52
    %v55 = vunpack.c.l.bf16 %v53
    %vm56 = vcmask 261120
    %v57 = vsel %vm56, %v54, 0.0
    %58 = vadd.xlane.f32.xlu0 %v57
    %v59 = vpop.xlane.xlu0 %58
    %v60 = vsel %vm56, %v55, 0.0
    %61 = vadd.xlane.f32.xlu0 %v60
    %v62 = vpop.xlane.xlu0 %61
    %v63 = vrcp.pop 32.0
    %v64 = vmul.f32 %v59, %v63
    %v65 = vmul.f32 %v62, %v63
    %v66 = vsub.f32 %v54, %v64
    %v67 = vsub.f32 %v55, %v65
    %v68 = vmul.f32 %v66, %v66
    %v69 = vmul.f32 %v67, %v67
    %v70 = vsel %vm56, %v68, 0.0
    %71 = vadd.xlane.f32.xlu0 %v70
    %v72 = vpop.xlane.xlu0 %71
    %v73 = vsel %vm56, %v69, 0.0
    %74 = vadd.xlane.f32.xlu0 %v73
    %v75 = vpop.xlane.xlu0 %74
    %v76 = vmul.f32 %v72, %v63
    %v77 = vmul.f32 %v75, %v63
    %v78 = vadd.f32 %v76, 1e-05
    %v79 = vadd.f32 %v77, 1e-05
    %v80 = vrsqrt.pop %v78
    %v81 = vrsqrt.pop %v79
    %v82 = vmul.f32 %v66, %v80
    %v83 = vmul.f32 %v67, %v81
    %v84 = vld [vmem:[#allocation5] sm:$0x1]
    %v86 = vlaneseq
    %v87 = vshrl.u32 %v86, 7
    %v88 = vsub.s32 0, %v87
    %v89 = vrot.slane %v84, %v88
    %v91 = vmul.f32 %v82, %v89
    %v92 = vmul.f32 %v83, %v89
    %v93 = vld [vmem:[#allocation7] sm:$0x1]
    %v95 = vlaneseq
    %v96 = vshrl.u32 %v95, 7
    %v97 = vsub.s32 0, %v96
    %v98 = vrot.slane %v93, %v97
    %v100 = vadd.f32 %v91, %v98
    %v101 = vadd.f32 %v92, %v98
    %v102 = vpack.c.bf16 %v101, %v100
    %v104 = vunpack.c.l.b16 %v102
    %v105 = vunpack.c.h.b16 %v102
    %v106 = vpack.c.b16 %v104, %v104
    %v107 = vpack.c.b16 %v105, %v105
    %vm110 = vcmask 257024
    %111 = vst.msk [vmem:[#allocation8] sm:$0xf] %vm110, %v106
    %112 = vst.msk [vmem:[#allocation8 + $0x4] sm:$0xf] %vm110, %v107
    // Predicated region
    $region26: #{_lambda_.41} parent=1 // pred_check
      _
    $region27: #{_lambda_.41} parent=1 // pred_check_branch
      %114 = sbr.rel (0) target = $region29
    $region28: #{_lambda_.41} parent=1 // pred_region
      %s116 = ssub.s32 128, 128
      %117 = vsyncadd [#allocation4], %s116
      %s118 = sshll.u32 [#allocation8], 4
      %s119 = int_to_ptr.vmem [resolvable:$true] %s118
      %124 = dma.vmem_to_hbm [thread:$0]  %s119, 128, %s3, [#allocation4], 64, 64, 4
    $region29: #{_lambda_.41} parent=1 // pred_fallthru
      _
    // Predicated region
    $region30: #{_lambda_.41} parent=1 // pred_check
      _
    $region31: #{_lambda_.41} parent=1 // pred_check_branch
      %126 = sbr.rel (0) target = $region33
    $region32: #{_lambda_.41} parent=1 // pred_region
      %127 = dma.done [#allocation4], 128
    $region33: #{_lambda_.41} parent=1 // pred_fallthru
      _
    %128 = vsyncpa [#allocation3], 1
    %129 = vsyncpa [#allocation6], 1
    %130 = vsyncpa [#allocation4], 1

// kernel: _lambda_.35
$region0: #{_lambda_.35}
  #allocation0 [shape = 'u32[]', space=smem, size = 0x4, offset = 0x4, fixed_abs, tag = 'smem constant byte address 0x4 - core index']
  #allocation1 [shape = 'u32[144,128]{1,0:T(1,128)}', space=vmem, size = 0x12000, scoped, tag = 'internal scratch']
  #allocation2 [shape = 'f32[16,32]{1,0:T(8,128)}', space=vmem, size = 0x2000, scoped, tag = 'scratch operand']
  %s0 = inlined_call_operand.hbm [shape: bf16[16,64], index: 0, kind: input, shape index: {}]
  %s1 = inlined_call_operand.hbm [shape: bf16[64,32], index: 1, kind: input, shape index: {}]
  %s2 = inlined_call_operand.hbm [shape: f32[1,32], index: 2, kind: input, shape index: {}]
  %s3 = inlined_call_operand.hbm [shape: bf16[16,32], index: 3, kind: input, shape index: {}]
  %s4 = inlined_call_operand.hbm [shape: f32[1,32], index: 4, kind: input, shape index: {}]
  %s5 = inlined_call_operand.hbm [shape: f32[1,32], index: 5, kind: input, shape index: {}]
  %s6 = inlined_call_operand.hbm [shape: bf16[16,32], index: 6, kind: output, shape index: {}]
  %s7 = sld [smem:[#allocation0]]
  $region66: #{_lambda_.35} parent=0
    _
  %s9 = ssub.s32 1, %s7
  %s10 = scalar_select 0, %s9, %s7
  $region1: #{_lambda_.35} parent=0
    #allocation3 [shape = 'u8[4096]{0}', space=vmem, size = 0x1000, scoped, tag = 'input window, operand 0, single buffered']
    #allocation4 [shape = 's32[1]{0}', space=sflag, size = 0x4, scoped, tag = 'scoped memory for _lambda_.35']
    #allocation5 [shape = 's32[1]{0}', space=sflag, size = 0x4, scoped, tag = 'scoped memory for _lambda_.35']
    #allocation6 [shape = 'u8[16384]{0}', space=vmem, size = 0x4000, scoped, tag = 'input window, operand 1, single buffered']
    #allocation7 [shape = 's32[1]{0}', space=sflag, size = 0x4, scoped, tag = 'scoped memory for _lambda_.35']
    #allocation8 [shape = 'u8[512]{0}', space=vmem, size = 0x400, scoped, tag = 'input window, operand 2, single buffered']
    #allocation9 [shape = 'u8[4096]{0}', space=vmem, size = 0x1000, scoped, tag = 'input window, operand 3, single buffered']
    #allocation10 [shape = 's32[1]{0}', space=sflag, size = 0x4, scoped, tag = 'scoped memory for _lambda_.35']
    #allocation11 [shape = 'u8[512]{0}', space=vmem, size = 0x400, scoped, tag = 'input window, operand 4, single buffered']
    #allocation12 [shape = 'u8[512]{0}', space=vmem, size = 0x400, scoped, tag = 'input window, operand 5, single buffered']
    #allocation13 [shape = 's32[1]{0}', space=sflag, size = 0x4, scoped, tag = 'scoped memory for _lambda_.35']
    #allocation14 [shape = 'u8[4096]{0}', space=vmem, size = 0x1000, scoped, tag = 'output window, operand 0, single buffered']
    %11 = vsyncpa [#allocation4], 0
    %12 = vsyncpa [#allocation7], 0
    %13 = vsyncpa [#allocation10], 0
    %14 = vsyncpa [#allocation13], 0
    %15 = vsyncpa [#allocation5], 0
    // Predicated region
    $region2: #{_lambda_.35} parent=1 // pred_check
      _
    $region3: #{_lambda_.35} parent=1 // pred_check_branch
      %17 = sbr.rel (0) target = $region5
    $region4: #{_lambda_.35} parent=1 // pred_region
      %s19 = ssub.s32 128, 128
      %20 = vsyncadd [#allocation4], %s19
      %s21 = sshll.u32 [#allocation3], 4
      %s22 = int_to_ptr.vmem [resolvable:$true] %s21
      %27 = dma.hbm_to_vmem [thread:$0]  %s0, 128, %s22, [#allocation4], 64, 64, 4
    $region5: #{_lambda_.35} parent=1 // pred_fallthru
      _
    // Predicated region
    $region6: #{_lambda_.35} parent=1 // pred_check
      _
    $region7: #{_lambda_.35} parent=1 // pred_check_branch
      %29 = sbr.rel (0) target = $region9
    $region8: #{_lambda_.35} parent=1 // pred_region
      %s31 = ssub.s32 512, 512
      %32 = vsyncadd [#allocation7], %s31
      %s33 = sshll.u32 [#allocation6], 4
      %s34 = int_to_ptr.vmem [resolvable:$true] %s33
      %39 = dma.hbm_to_vmem [thread:$0]  %s1, 512, %s34, [#allocation7], 64, 64, 4
    $region9: #{_lambda_.35} parent=1 // pred_fallthru
      _
    // Predicated region
    $region10: #{_lambda_.35} parent=1 // pred_check
      _
    $region11: #{_lambda_.35} parent=1 // pred_check_branch
      %41 = sbr.rel (0) target = $region13
    $region12: #{_lambda_.35} parent=1 // pred_region
      %s43 = ssub.s32 16, 16
      %44 = vsyncadd [#allocation7], %s43
      %s46 = sshll.u32 [#allocation8], 4
      %s47 = int_to_ptr.vmem [resolvable:$true] %s46
      %49 = dma.hbm_to_vmem [thread:$0]  %s2, 16, %s47, [#allocation7]
    $region13: #{_lambda_.35} parent=1 // pred_fallthru
      _
    // Predicated region
    $region14: #{_lambda_.35} parent=1 // pred_check
      _
    $region15: #{_lambda_.35} parent=1 // pred_check_branch
      %51 = sbr.rel (0) target = $region17
    $region16: #{_lambda_.35} parent=1 // pred_region
      %s53 = ssub.s32 128, 128
      %54 = vsyncadd [#allocation10], %s53
      %s55 = sshll.u32 [#allocation9], 4
      %s56 = int_to_ptr.vmem [resolvable:$true] %s55
      %61 = dma.hbm_to_vmem [thread:$0]  %s3, 128, %s56, [#allocation10], 64, 64, 4
    $region17: #{_lambda_.35} parent=1 // pred_fallthru
      _
    // Predicated region
    $region18: #{_lambda_.35} parent=1 // pred_check
      _
    $region19: #{_lambda_.35} parent=1 // pred_check_branch
      %63 = sbr.rel (0) target = $region21
    $region20: #{_lambda_.35} parent=1 // pred_region
      %s65 = ssub.s32 16, 16
      %66 = vsyncadd [#allocation10], %s65
      %s68 = sshll.u32 [#allocation11], 4
      %s69 = int_to_ptr.vmem [resolvable:$true] %s68
      %71 = dma.hbm_to_vmem [thread:$0]  %s4, 16, %s69, [#allocation10]
    $region21: #{_lambda_.35} parent=1 // pred_fallthru
      _
    // Predicated region
    $region22: #{_lambda_.35} parent=1 // pred_check
      _
    $region23: #{_lambda_.35} parent=1 // pred_check_branch
      %73 = sbr.rel (0) target = $region25
    $region24: #{_lambda_.35} parent=1 // pred_region
      %s75 = ssub.s32 16, 16
      %76 = vsyncadd [#allocation13], %s75
      %s78 = sshll.u32 [#allocation12], 4
      %s79 = int_to_ptr.vmem [resolvable:$true] %s78
      %81 = dma.hbm_to_vmem [thread:$0]  %s5, 16, %s79, [#allocation13]
    $region25: #{_lambda_.35} parent=1 // pred_fallthru
      _
    // Predicated region
    $region26: #{_lambda_.35} parent=1 // pred_check
      _
    $region27: #{_lambda_.35} parent=1 // pred_check_branch
      %83 = sbr.rel (0) target = $region29
    $region28: #{_lambda_.35} parent=1 // pred_region
      %84 = dma.done [#allocation4], 128
    $region29: #{_lambda_.35} parent=1 // pred_fallthru
      _
    // Predicated region
    $region30: #{_lambda_.35} parent=1 // pred_check
      _
    $region31: #{_lambda_.35} parent=1 // pred_check_branch
      %86 = sbr.rel (0) target = $region33
    $region32: #{_lambda_.35} parent=1 // pred_region
      %87 = dma.done [#allocation7], 512
    $region33: #{_lambda_.35} parent=1 // pred_fallthru
      _
    // Predicated region
    $region34: #{_lambda_.35} parent=1 // pred_check
      _
    $region35: #{_lambda_.35} parent=1 // pred_check_branch
      %89 = sbr.rel (0) target = $region37
    $region36: #{_lambda_.35} parent=1 // pred_region
      %90 = dma.done [#allocation7], 16
    $region37: #{_lambda_.35} parent=1 // pred_fallthru
      _
    // Predicated region
    $region38: #{_lambda_.35} parent=1 // pred_check
      _
    $region39: #{_lambda_.35} parent=1 // pred_check_branch
      %92 = sbr.rel (0) target = $region41
    $region40: #{_lambda_.35} parent=1 // pred_region
      %93 = dma.done [#allocation10], 128
    $region41: #{_lambda_.35} parent=1 // pred_fallthru
      _
    // Predicated region
    $region42: #{_lambda_.35} parent=1 // pred_check
      _
    $region43: #{_lambda_.35} parent=1 // pred_check_branch
      %95 = sbr.rel (0) target = $region45
    $region44: #{_lambda_.35} parent=1 // pred_region
      %96 = dma.done [#allocation10], 16
    $region45: #{_lambda_.35} parent=1 // pred_fallthru
      _
    // Predicated region
    $region46: #{_lambda_.35} parent=1 // pred_check
      _
    $region47: #{_lambda_.35} parent=1 // pred_check_branch
      %98 = sbr.rel (0) target = $region49
    $region48: #{_lambda_.35} parent=1 // pred_region
      %99 = dma.done [#allocation13], 16
    $region49: #{_lambda_.35} parent=1 // pred_fallthru
      _
    %p101 = scmp.eq.s32.totalorder 0, 0
    // Predicated region
    $region50: #{_lambda_.35} parent=1 // pred_check
      %p102 = pneg %p101
    $region51: #{_lambda_.35} parent=1 // pred_check_branch
      %104 = sbr.rel (%p102) target = $region53
    $region52: #{_lambda_.35} parent=1 // pred_region
      %vm105 = vcmask 261120
      %106 = vst.msk [vmem:[#allocation2] sm:$0xff] %vm105, 0.0
      %107 = vst.msk [vmem:[#allocation2 + $0x8] sm:$0xff] %vm105, 0.0
    $region53: #{_lambda_.35} parent=1 // pred_fallthru
      _
    %v108 = vld [vmem:[#allocation3] sm:$0xf]
    %v109 = vld [vmem:[#allocation3 + $0x4] sm:$0xf]
    %v110 = vld [vmem:[#allocation6] sm:$0xf]
    %v111 = vld [vmem:[#allocation6 + $0x4] sm:$0xf]
    %v112 = vld [vmem:[#allocation6 + $0x8] sm:$0xf]
    %v113 = vld [vmem:[#allocation6 + $0xc] sm:$0xf]
    %v114 = vld [vmem:[#allocation6 + $0x10] sm:$0xf]
    %v115 = vld [vmem:[#allocation6 + $0x14] sm:$0xf]
    %v116 = vld [vmem:[#allocation6 + $0x18] sm:$0xf]
    %v117 = vld [vmem:[#allocation6 + $0x1c] sm:$0xf]
    %v118 = vld [vmem:[#allocation2] sm:$0xff]
    %v119 = vld [vmem:[#allocation2 + $0x8] sm:$0xff]
    %v122 = vunpack.c.l.b16 %v108
    %v123 = vunpack.c.l.b16 %v109
    %v124 = vpack.c.b16 %v123, %v122
    %v133 = vunpack.c.l.b16 %v110
    %v134 = vunpack.c.l.b16 %v111
    %v135 = vunpack.c.l.b16 %v112
    %v136 = vunpack.c.l.b16 %v113
    %v137 = vunpack.c.l.b16 %v114
    %v138 = vunpack.c.l.b16 %v115
    %v139 = vunpack.c.l.b16 %v116
    %v140 = vunpack.c.l.b16 %v117
    %v141 = vpack.c.b16 %v134, %v133
    %v142 = vpack.c.b16 %v136, %v135
    %v143 = vpack.c.b16 %v138, %v137
    %v144 = vpack.c.b16 %v140, %v139
    %vm149 = vcmask 523264
    %v151 = vsel %vm149, %v124, 0
    %153 = vmatprep.subr.bf16.mxu0 0
    %154 = vmatpush1.bf16.msra.mxu0 %v141
    %155 = vmatprep.subr.bf16.mxu0 0
    %156 = vmatpush1.bf16.msra.mxu0 %v142
    %157 = vmatprep.subr.bf16.mxu0 0
    %158 = vmatpush1.bf16.msra.mxu0 %v143
    %159 = vmatprep.subr.bf16.mxu0 0
    %160 = vmatpush1.bf16.msra.mxu0 %v144
    %161 = vmatprep.subr.bf16.mxu0 0
    %162 = vmatpush1.bf16.msra.mxu0 0
    %163 = vmatprep.subr.bf16.mxu0 0
    %164 = vmatpush1.bf16.msra.mxu0 0
    %165 = vmatprep.subr.bf16.mxu0 0
    %166 = vmatpush1.bf16.msra.mxu0 0
    %167 = vmatprep.subr.bf16.mxu0 0
    %168 = vmatpush1.bf16.msra.mxu0 0
    %169 = vmatprep.subr.bf16.mxu0 0
    %170 = vmatpush1.bf16.msra.mxu0 0
    %171 = vmatprep.subr.bf16.mxu0 0
    %172 = vmatpush1.bf16.msra.mxu0 0
    %173 = vmatprep.subr.bf16.mxu0 0
    %174 = vmatpush1.bf16.msra.mxu0 0
    %175 = vmatprep.subr.bf16.mxu0 0
    %176 = vmatpush1.bf16.msra.mxu0 0
    %177 = vmatprep.subr.bf16.mxu0 0
    %178 = vmatpush1.bf16.msra.mxu0 0
    %179 = vmatprep.subr.bf16.mxu0 0
    %180 = vmatpush1.bf16.msra.mxu0 0
    %181 = vmatprep.subr.bf16.mxu0 0
    %182 = vmatpush1.bf16.msra.mxu0 0
    %183 = vmatprep.subr.bf16.mxu0 0
    %184 = vmatpush1.bf16.msra.mxu0 0
    %185 = vmatprep.mubr.bf16.mxu0 0
    %186 = vmatmul.mubr.bf16.gmra.mrb[0].mxu0 %v151
    %v187 = vpop.f32.mrb[0].mxu0
    %v188 = vadd.f32 0.0, %v187
    %v189 = vpop.f32.mrb[0].mxu0
    %v190 = vpop.f32.mrb[0].mxu0
    %v191 = vadd.f32 0.0, %v190
    %v192 = vpop.f32.mrb[0].mxu0
    %193 = vdwg.mxu0
    %v194 = vadd.f32 %v118, %v188
    %v195 = vadd.f32 %v119, %v191
    %vm196 = vcmask 261120
    %197 = vst.msk [vmem:[#allocation2] sm:$0xff] %vm196, %v194
    %198 = vst.msk [vmem:[#allocation2 + $0x8] sm:$0xff] %vm196, %v195
    // Predicated region
    $region54: #{_lambda_.35} parent=1 // pred_check
      %p199 = pneg %p101
    $region55: #{_lambda_.35} parent=1 // pred_check_branch
      %201 = sbr.rel (%p199) target = $region57
    $region56: #{_lambda_.35} parent=1 // pred_region
      %v202 = vld [vmem:[#allocation2] sm:$0xff]
      %v203 = vld [vmem:[#allocation2 + $0x8] sm:$0xff]
      %v204 = vld [vmem:[#allocation8] sm:$0x1]
      %v206 = vlaneseq
      %v207 = vshrl.u32 %v206, 7
      %v208 = vsub.s32 0, %v207
      %v209 = vrot.slane %v204, %v208
      %v211 = vadd.f32 %v202, %v209
      %v212 = vadd.f32 %v203, %v209
      %v213 = vld [vmem:[#allocation9] sm:$0xf]
      %v214 = vld [vmem:[#allocation9 + $0x4] sm:$0xf]
      %v215 = vunpack.c.l.bf16 %v213
      %v216 = vunpack.c.l.bf16 %v214
      %v217 = vadd.f32 %v211, %v215
      %v218 = vadd.f32 %v212, %v216
      %v219 = vsel %vm196, %v217, 0.0
      %220 = vadd.xlane.f32.xlu0 %v219
      %v221 = vpop.xlane.xlu0 %220
      %v222 = vsel %vm196, %v218, 0.0
      %223 = vadd.xlane.f32.xlu0 %v222
      %v224 = vpop.xlane.xlu0 %223
      %v225 = vrcp.pop 32.0
      %v226 = vmul.f32 %v221, %v225
      %v227 = vmul.f32 %v224, %v225
      %v228 = vsub.f32 %v217, %v226
      %v229 = vsub.f32 %v218, %v227
      %v230 = vmul.f32 %v228, %v228
      %v231 = vmul.f32 %v229, %v229
      %v232 = vsel %vm196, %v230, 0.0
      %233 = vadd.xlane.f32.xlu0 %v232
      %v234 = vpop.xlane.xlu0 %233
      %v235 = vsel %vm196, %v231, 0.0
      %236 = vadd.xlane.f32.xlu0 %v235
      %v237 = vpop.xlane.xlu0 %236
      %v238 = vmul.f32 %v234, %v225
      %v239 = vmul.f32 %v237, %v225
      %v240 = vadd.f32 %v238, 1e-05
      %v241 = vadd.f32 %v239, 1e-05
      %v242 = vrsqrt.pop %v240
      %v243 = vrsqrt.pop %v241
      %v244 = vmul.f32 %v228, %v242
      %v245 = vmul.f32 %v229, %v243
      %v246 = vld [vmem:[#allocation11] sm:$0x1]
      %v248 = vlaneseq
      %v249 = vshrl.u32 %v248, 7
      %v250 = vsub.s32 0, %v249
      %v251 = vrot.slane %v246, %v250
      %v253 = vmul.f32 %v244, %v251
      %v254 = vmul.f32 %v245, %v251
      %v255 = vld [vmem:[#allocation12] sm:$0x1]
      %v257 = vlaneseq
      %v258 = vshrl.u32 %v257, 7
      %v259 = vsub.s32 0, %v258
      %v260 = vrot.slane %v255, %v259
      %v262 = vadd.f32 %v253, %v260
      %v263 = vadd.f32 %v254, %v260
      %v264 = vpack.c.bf16 %v263, %v262
      %v266 = vunpack.c.l.b16 %v264
      %v267 = vunpack.c.h.b16 %v264
      %v268 = vpack.c.b16 %v266, %v266
      %v269 = vpack.c.b16 %v267, %v267
      %vm272 = vcmask 257024
      %273 = vst.msk [vmem:[#allocation14] sm:$0xf] %vm272, %v268
      %274 = vst.msk [vmem:[#allocation14 + $0x4] sm:$0xf] %vm272, %v269
    $region57: #{_lambda_.35} parent=1 // pred_fallthru
      _
    // Predicated region
    $region58: #{_lambda_.35} parent=1 // pred_check
      _
    $region59: #{_lambda_.35} parent=1 // pred_check_branch
      %276 = sbr.rel (0) target = $region61
    $region60: #{_lambda_.35} parent=1 // pred_region
      %s278 = ssub.s32 128, 128
      %279 = vsyncadd [#allocation5], %s278
      %s280 = sshll.u32 [#allocation14], 4
      %s281 = int_to_ptr.vmem [resolvable:$true] %s280
      %286 = dma.vmem_to_hbm [thread:$0]  %s281, 128, %s6, [#allocation5], 64, 64, 4
    $region61: #{_lambda_.35} parent=1 // pred_fallthru
      _
    // Predicated region
    $region62: #{_lambda_.35} parent=1 // pred_check
      _
    $region63: #{_lambda_.35} parent=1 // pred_check_branch
      %288 = sbr.rel (0) target = $region65
    $region64: #{_lambda_.35} parent=1 // pred_region
      %289 = dma.done [#allocation5], 128
    $region65: #{_lambda_.35} parent=1 // pred_fallthru
      _
    %290 = vsyncpa [#allocation4], 1
    %291 = vsyncpa [#allocation7], 1
    %292 = vsyncpa [#allocation10], 1
    %293 = vsyncpa [#allocation13], 1
    %294 = vsyncpa [#allocation5], 1

// kernel: _lambda_.61
$region0: #{_lambda_.61}
  #allocation0 [shape = 'u32[]', space=smem, size = 0x4, offset = 0x4, fixed_abs, tag = 'smem constant byte address 0x4 - core index']
  #allocation1 [shape = 'u32[144,128]{1,0:T(1,128)}', space=vmem, size = 0x12000, scoped, tag = 'internal scratch']
  #allocation2 [shape = 'f32[16,128]{1,0:T(8,128)}', space=vmem, size = 0x2000, scoped, tag = 'scratch operand']
  %s0 = inlined_call_operand.hbm [shape: bf16[16,32], index: 0, kind: input, shape index: {}]
  %s1 = inlined_call_operand.hbm [shape: bf16[32,128], index: 1, kind: input, shape index: {}]
  %s2 = inlined_call_operand.hbm [shape: f32[1,128], index: 2, kind: input, shape index: {}]
  %s3 = inlined_call_operand.hbm [shape: f32[16,128], index: 3, kind: output, shape index: {}]
  %s4 = sld [smem:[#allocation0]]
  $region42: #{_lambda_.61} parent=0
    _
  %s6 = ssub.s32 1, %s4
  %s7 = scalar_select 0, %s6, %s4
  $region1: #{_lambda_.61} parent=0
    #allocation3 [shape = 'u8[4096]{0}', space=vmem, size = 0x1000, scoped, tag = 'input window, operand 0, single buffered']
    #allocation4 [shape = 's32[1]{0}', space=sflag, size = 0x4, scoped, tag = 'scoped memory for _lambda_.61']
    #allocation5 [shape = 's32[1]{0}', space=sflag, size = 0x4, scoped, tag = 'scoped memory for _lambda_.61']
    #allocation6 [shape = 'u8[8192]{0}', space=vmem, size = 0x2000, scoped, tag = 'input window, operand 1, single buffered']
    #allocation7 [shape = 's32[1]{0}', space=sflag, size = 0x4, scoped, tag = 'scoped memory for _lambda_.61']
    #allocation8 [shape = 'u8[512]{0}', space=vmem, size = 0x400, scoped, tag = 'input window, operand 2, single buffered']
    #allocation9 [shape = 'u8[8192]{0}', space=vmem, size = 0x2000, scoped, tag = 'output window, operand 0, single buffered']
    %8 = vsyncpa [#allocation4], 0
    %9 = vsyncpa [#allocation7], 0
    %10 = vsyncpa [#allocation5], 0
    // Predicated region
    $region2: #{_lambda_.61} parent=1 // pred_check
      _
    $region3: #{_lambda_.61} parent=1 // pred_check_branch
      %12 = sbr.rel (0) target = $region5
    $region4: #{_lambda_.61} parent=1 // pred_region
      %s14 = ssub.s32 128, 128
      %15 = vsyncadd [#allocation4], %s14
      %s16 = sshll.u32 [#allocation3], 4
      %s17 = int_to_ptr.vmem [resolvable:$true] %s16
      %22 = dma.hbm_to_vmem [thread:$0]  %s0, 128, %s17, [#allocation4], 64, 64, 4
    $region5: #{_lambda_.61} parent=1 // pred_fallthru
      _
    // Predicated region
    $region6: #{_lambda_.61} parent=1 // pred_check
      _
    $region7: #{_lambda_.61} parent=1 // pred_check_branch
      %24 = sbr.rel (0) target = $region9
    $region8: #{_lambda_.61} parent=1 // pred_region
      %s26 = ssub.s32 256, 256
      %27 = vsyncadd [#allocation7], %s26
      %s28 = sshll.u32 [#allocation6], 4
      %s29 = int_to_ptr.vmem [resolvable:$true] %s28
      %34 = dma.hbm_to_vmem [thread:$0]  %s1, 256, %s29, [#allocation7], 64, 64, 4
    $region9: #{_lambda_.61} parent=1 // pred_fallthru
      _
    // Predicated region
    $region10: #{_lambda_.61} parent=1 // pred_check
      _
    $region11: #{_lambda_.61} parent=1 // pred_check_branch
      %36 = sbr.rel (0) target = $region13
    $region12: #{_lambda_.61} parent=1 // pred_region
      %s38 = ssub.s32 16, 16
      %39 = vsyncadd [#allocation7], %s38
      %s41 = sshll.u32 [#allocation8], 4
      %s42 = int_to_ptr.vmem [resolvable:$true] %s41
      %44 = dma.hbm_to_vmem [thread:$0]  %s2, 16, %s42, [#allocation7]
    $region13: #{_lambda_.61} parent=1 // pred_fallthru
      _
    // Predicated region
    $region14: #{_lambda_.61} parent=1 // pred_check
      _
    $region15: #{_lambda_.61} parent=1 // pred_check_branch
      %46 = sbr.rel (0) target = $region17
    $region16: #{_lambda_.61} parent=1 // pred_region
      %47 = dma.done [#allocation4], 128
    $region17: #{_lambda_.61} parent=1 // pred_fallthru
      _
    // Predicated region
    $region18: #{_lambda_.61} parent=1 // pred_check
      _
    $region19: #{_lambda_.61} parent=1 // pred_check_branch
      %49 = sbr.rel (0) target = $region21
    $region20: #{_lambda_.61} parent=1 // pred_region
      %50 = dma.done [#allocation7], 256
    $region21: #{_lambda_.61} parent=1 // pred_fallthru
      _
    // Predicated region
    $region22: #{_lambda_.61} parent=1 // pred_check
      _
    $region23: #{_lambda_.61} parent=1 // pred_check_branch
      %52 = sbr.rel (0) target = $region25
    $region24: #{_lambda_.61} parent=1 // pred_region
      %53 = dma.done [#allocation7], 16
    $region25: #{_lambda_.61} parent=1 // pred_fallthru
      _
    %p55 = scmp.eq.s32.totalorder 0, 0
    // Predicated region
    $region26: #{_lambda_.61} parent=1 // pred_check
      %p56 = pneg %p55
    $region27: #{_lambda_.61} parent=1 // pred_check_branch
      %58 = sbr.rel (%p56) target = $region29
    $region28: #{_lambda_.61} parent=1 // pred_region
      %59 = vst [vmem:[#allocation2] sm:$0xff] 0.0
      %60 = vst [vmem:[#allocation2 + $0x8] sm:$0xff] 0.0
    $region29: #{_lambda_.61} parent=1 // pred_fallthru
      _
    %v61 = vld [vmem:[#allocation3] sm:$0xf]
    %v62 = vld [vmem:[#allocation3 + $0x4] sm:$0xf]
    %v63 = vld [vmem:[#allocation6] sm:$0xf]
    %v64 = vld [vmem:[#allocation6 + $0x4] sm:$0xf]
    %v65 = vld [vmem:[#allocation6 + $0x8] sm:$0xf]
    %v66 = vld [vmem:[#allocation6 + $0xc] sm:$0xf]
    %v67 = vld [vmem:[#allocation2] sm:$0xff]
    %v68 = vld [vmem:[#allocation2 + $0x8] sm:$0xff]
    %v71 = vunpack.c.l.b16 %v61
    %v72 = vunpack.c.l.b16 %v62
    %v73 = vpack.c.b16 %v72, %v71
    %v78 = vunpack.c.l.b16 %v63
    %v79 = vunpack.c.l.b16 %v64
    %v80 = vunpack.c.l.b16 %v65
    %v81 = vunpack.c.l.b16 %v66
    %v82 = vpack.c.b16 %v79, %v78
    %v83 = vpack.c.b16 %v81, %v80
    %vm86 = vcmask 261120
    %v88 = vsel %vm86, %v73, 0
    %90 = vmatprep.subr.bf16.mxu0 0
    %91 = vmatpush1.bf16.msra.mxu0 %v82
    %92 = vmatprep.subr.bf16.mxu0 0
    %93 = vmatpush1.bf16.msra.mxu0 %v83
    %94 = vmatprep.subr.bf16.mxu0 0
    %95 = vmatpush1.bf16.msra.mxu0 0
    %96 = vmatprep.subr.bf16.mxu0 0
    %97 = vmatpush1.bf16.msra.mxu0 0
    %98 = vmatprep.subr.bf16.mxu0 0
    %99 = vmatpush1.bf16.msra.mxu0 0
    %100 = vmatprep.subr.bf16.mxu0 0
    %101 = vmatpush1.bf16.msra.mxu0 0
    %102 = vmatprep.subr.bf16.mxu0 0
    %103 = vmatpush1.bf16.msra.mxu0 0
    %104 = vmatprep.subr.bf16.mxu0 0
    %105 = vmatpush1.bf16.msra.mxu0 0
    %106 = vmatprep.subr.bf16.mxu0 0
    %107 = vmatpush1.bf16.msra.mxu0 0
    %108 = vmatprep.subr.bf16.mxu0 0
    %109 = vmatpush1.bf16.msra.mxu0 0
    %110 = vmatprep.subr.bf16.mxu0 0
    %111 = vmatpush1.bf16.msra.mxu0 0
    %112 = vmatprep.subr.bf16.mxu0 0
    %113 = vmatpush1.bf16.msra.mxu0 0
    %114 = vmatprep.subr.bf16.mxu0 0
    %115 = vmatpush1.bf16.msra.mxu0 0
    %116 = vmatprep.subr.bf16.mxu0 0
    %117 = vmatpush1.bf16.msra.mxu0 0
    %118 = vmatprep.subr.bf16.mxu0 0
    %119 = vmatpush1.bf16.msra.mxu0 0
    %120 = vmatprep.subr.bf16.mxu0 0
    %121 = vmatpush1.bf16.msra.mxu0 0
    %122 = vmatprep.mubr.bf16.mxu0 0
    %123 = vmatmul.mubr.bf16.gmra.mrb[0].mxu0 %v88
    %v124 = vpop.f32.mrb[0].mxu0
    %v125 = vadd.f32 0.0, %v124
    %v126 = vpop.f32.mrb[0].mxu0
    %v127 = vpop.f32.mrb[0].mxu0
    %v128 = vadd.f32 0.0, %v127
    %v129 = vpop.f32.mrb[0].mxu0
    %130 = vdwg.mxu0
    %v131 = vadd.f32 %v67, %v125
    %v132 = vadd.f32 %v68, %v128
    %133 = vst [vmem:[#allocation2] sm:$0xff] %v131
    %134 = vst [vmem:[#allocation2 + $0x8] sm:$0xff] %v132
    // Predicated region
    $region30: #{_lambda_.61} parent=1 // pred_check
      %p135 = pneg %p55
    $region31: #{_lambda_.61} parent=1 // pred_check_branch
      %137 = sbr.rel (%p135) target = $region33
    $region32: #{_lambda_.61} parent=1 // pred_region
      %v138 = vld [vmem:[#allocation2] sm:$0xff]
      %v139 = vld [vmem:[#allocation2 + $0x8] sm:$0xff]
      %v140 = vld [vmem:[#allocation8] sm:$0x1]
      %v142 = vlaneseq
      %v143 = vshrl.u32 %v142, 7
      %v144 = vsub.s32 0, %v143
      %v145 = vrot.slane %v140, %v144
      %v147 = vadd.f32 %v138, %v145
      %v148 = vadd.f32 %v139, %v145
      %149 = vst [vmem:[#allocation9] sm:$0xff] %v147
      %150 = vst [vmem:[#allocation9 + $0x8] sm:$0xff] %v148
    $region33: #{_lambda_.61} parent=1 // pred_fallthru
      _
    // Predicated region
    $region34: #{_lambda_.61} parent=1 // pred_check
      _
    $region35: #{_lambda_.61} parent=1 // pred_check_branch
      %152 = sbr.rel (0) target = $region37
    $region36: #{_lambda_.61} parent=1 // pred_region
      %s154 = ssub.s32 256, 256
      %155 = vsyncadd [#allocation5], %s154
      %s156 = sshll.u32 [#allocation9], 4
      %s157 = int_to_ptr.vmem [resolvable:$true] %s156
      %162 = dma.vmem_to_hbm [thread:$0]  %s157, 256, %s3, [#allocation5], 128, 128, 8
    $region37: #{_lambda_.61} parent=1 // pred_fallthru
      _
    // Predicated region
    $region38: #{_lambda_.61} parent=1 // pred_check
      _
    $region39: #{_lambda_.61} parent=1 // pred_check_branch
      %164 = sbr.rel (0) target = $region41
    $region40: #{_lambda_.61} parent=1 // pred_region
      %165 = dma.done [#allocation5], 256
    $region41: #{_lambda_.61} parent=1 // pred_fallthru
      _
    %166 = vsyncpa [#allocation4], 1
    %167 = vsyncpa [#allocation7], 1
    %168 = vsyncpa [#allocation5], 1

// kernel: _lambda_.47
$region0: #{_lambda_.47}
  #allocation0 [shape = 'u32[]', space=smem, size = 0x4, offset = 0x4, fixed_abs, tag = 'smem constant byte address 0x4 - core index']
  #allocation1 [shape = 'u32[144,128]{1,0:T(1,128)}', space=vmem, size = 0x12000, scoped, tag = 'internal scratch']
  %s0 = inlined_call_operand.hbm [shape: bf16[2,8,32], index: 0, kind: input, shape index: {}]
  %s1 = inlined_call_operand.hbm [shape: bf16[2,8,64], index: 1, kind: input, shape index: {}]
  %s2 = inlined_call_operand.hbm [shape: bf16[2,8,32], index: 2, kind: output, shape index: {}]
  %s3 = sld [smem:[#allocation0]]
  $region49: #{_lambda_.47} parent=0
    _
  %s5 = ssub.s32 1, %s3
  %s6 = scalar_select 0, %s5, %s3
  $region1: #{_lambda_.47} parent=0
    #allocation2 [shape = 'u8[4096]{0}', space=vmem, size = 0x1000, scoped, tag = 'input window, operand 0']
    #allocation3 [shape = 's32[2]{0}', space=sflag, size = 0x8, scoped, tag = 'scoped memory for _lambda_.47']
    #allocation4 [shape = 's32[2]{0}', space=sflag, size = 0x8, scoped, tag = 'scoped memory for _lambda_.47']
    #allocation5 [shape = 'u8[4096]{0}', space=vmem, size = 0x1000, scoped, tag = 'input window, operand 1']
    #allocation6 [shape = 's32[2]{0}', space=sflag, size = 0x8, scoped, tag = 'scoped memory for _lambda_.47']
    #allocation7 [shape = 'u8[4096]{0}', space=vmem, size = 0x1000, scoped, tag = 'output window, operand 0']
    %7 = vsyncpa [#allocation3], 0
    %s8 = scalar_lea.sflag [#allocation3], 1
    %9 = vsyncpa %s8, 0
    %10 = vsyncpa [#allocation6], 0
    %s11 = scalar_lea.sflag [#allocation6], 1
    %12 = vsyncpa %s11, 0
    %13 = vsyncpa [#allocation4], 0
    %s14 = scalar_lea.sflag [#allocation4], 1
    %15 = vsyncpa %s14, 0
    loop: start=0, step=1, limit=4
    $region2: #{_lambda_.47} parent=1 // loop_pre_header
      _
    $region3: #{_lambda_.47} parent=1 // loop_header
      %s17 = sphi 0, %s21
      %p18 = scmp.ge.s32.totalorder %s17, 4
      %s27 = sphi 0, %s29
      %s30 = sphi 0, %s27
      %s31 = sphi 0, %s30
      %s47 = sphi 0, %s31
      %s53 = sphi 0, %s55
      %s56 = sphi 0, %s53
      %s57 = sphi 0, %s56
      %s73 = sphi 0, %s57
      %s79 = sphi 0, %s81
      %s82 = sphi 0, %s79
      %s83 = sphi 0, %s82
      %s99 = sphi 0, %s83
    $region4: #{_lambda_.47} parent=1 // loop_header_branch
      %20 = sbr.rel (%p18) target = $region8
    $region5: #{_lambda_.47} parent=1 // loop_body
      %s22 = ssub.s32 %s17, 1
      %s23 = ssub.s32 %s17, 2
      %s24 = sadd.s32 %s17, 1
      %s25 = ssub.s32 %s17, %s24
      %p26 = scmp.eq.s32.totalorder %s25, 0
      %s28 = sadd.s32 %s27, 1
      %s29 = scalar_select %p26, %s27, %s28
      %p32 = pneg %p26
      %p33 = scmp.eq.s32.totalorder %s17, 1
      %p34 = por %p32, %p33
      %p35 = scmp.ne.s32.totalorder %s27, %s30
      %p36 = scmp.eq.s32.totalorder %s17, 0
      %p37 = por %p35, %p36
      %p38 = scmp.ne.s32.totalorder %s27, %s30
      %p39 = scmp.eq.s32.totalorder %s22, 1
      %p40 = por %p38, %p39
      %p41 = scmp.ne.s32.totalorder %s30, %s31
      %p42 = scmp.eq.s32.totalorder %s22, 0
      %p43 = por %p41, %p42
      %p44 = scmp.ne.s32.totalorder %s30, %s31
      %p45 = scmp.eq.s32.totalorder %s23, 1
      %p46 = por %p44, %p45
      %p48 = scmp.ne.s32.totalorder %s31, %s47
      %p49 = scmp.eq.s32.totalorder %s23, 0
      %p50 = por %p48, %p49
      %s51 = ssub.s32 %s17, %s24
      %p52 = scmp.eq.s32.totalorder %s51, 0
      %s54 = sadd.s32 %s53, 1
      %s55 = scalar_select %p52, %s53, %s54
      %p58 = pneg %p52
      %p59 = scmp.eq.s32.totalorder %s17, 1
      %p60 = por %p58, %p59
      %p61 = scmp.ne.s32.totalorder %s53, %s56
      %p62 = scmp.eq.s32.totalorder %s17, 0
      %p63 = por %p61, %p62
      %p64 = scmp.ne.s32.totalorder %s53, %s56
      %p65 = scmp.eq.s32.totalorder %s22, 1
      %p66 = por %p64, %p65
      %p67 = scmp.ne.s32.totalorder %s56, %s57
      %p68 = scmp.eq.s32.totalorder %s22, 0
      %p69 = por %p67, %p68
      %p70 = scmp.ne.s32.totalorder %s56, %s57
      %p71 = scmp.eq.s32.totalorder %s23, 1
      %p72 = por %p70, %p71
      %p74 = scmp.ne.s32.totalorder %s57, %s73
      %p75 = scmp.eq.s32.totalorder %s23, 0
      %p76 = por %p74, %p75
      %s77 = ssub.s32 %s17, %s24
      %p78 = scmp.eq.s32.totalorder %s77, 0
      %s80 = sadd.s32 %s79, 1
      %s81 = scalar_select %p78, %s79, %s80
      %p84 = pneg %p78
      %p85 = scmp.eq.s32.totalorder %s17, 1
      %p86 = por %p84, %p85
      %p87 = scmp.ne.s32.totalorder %s79, %s82
      %p88 = scmp.eq.s32.totalorder %s17, 0
      %p89 = por %p87, %p88
      %p90 = scmp.ne.s32.totalorder %s79, %s82
      %p91 = scmp.eq.s32.totalorder %s22, 1
      %p92 = por %p90, %p91
      %p93 = scmp.ne.s32.totalorder %s82, %s83
      %p94 = scmp.eq.s32.totalorder %s22, 0
      %p95 = por %p93, %p94
      %p96 = scmp.ne.s32.totalorder %s82, %s83
      %p97 = scmp.eq.s32.totalorder %s23, 1
      %p98 = por %p96, %p97
      %p100 = scmp.ne.s32.totalorder %s83, %s99
      %p101 = scmp.eq.s32.totalorder %s23, 0
      %p102 = por %p100, %p101
      %p103 = scmp.le.s32.totalorder 1, %s17
      %p104 = scmp.lt.s32.totalorder %s17, 3
      %p105 = pnand %p103, %p104
      %p106 = pneg %p105
      // Predicated region
      $region9: #{_lambda_.47} parent=5 // pred_check
        _
      $region10: #{_lambda_.47} parent=5 // pred_check_branch
        %108 = sbr.rel (%p105) target = $region12
      $region11: #{_lambda_.47} parent=5 // pred_region
        %s109 = ssub.s32 %s17, 1
      $region12: #{_lambda_.47} parent=5 // pred_fallthru
        _
      %p110 = scmp.lt.s32.totalorder %s17, 2
      // Predicated region
      $region13: #{_lambda_.47} parent=5 // pred_check
        %p111 = pneg %p110
      $region14: #{_lambda_.47} parent=5 // pred_check_branch
        %113 = sbr.rel (%p111) target = $region16
      $region15: #{_lambda_.47} parent=5 // pred_region
        // Predicated region
        $region17: #{_lambda_.47} parent=15 // pred_check
          %p114 = pneg %p37
        $region18: #{_lambda_.47} parent=15 // pred_check_branch
          %116 = sbr.rel (%p114) target = $region20
        $region19: #{_lambda_.47} parent=15 // pred_region
          %s117 = sand.u32 %s27, 1
          %s118 = scalar_lea.sflag [#allocation3], %s117
          %s119 = sand.u32 %s27, 1
          %s120 = smul.addr %s119, 4
          %s121 = scalar_lea.vmem [#allocation2], %s120
          %s123 = ssub.s32 64, 64
          %124 = vsyncadd %s118, %s123
          %s125 = smul.addr %s17, 64
          %s126 = scalar_lea.hbm %s0, %s125
          %s128 = sshll.u32 %s121, 4
          %s129 = int_to_ptr.vmem [resolvable:$true] %s128
          %131 = dma.hbm_to_vmem [thread:$0]  %s126, 64, %s129, %s118
        $region20: #{_lambda_.47} parent=15 // pred_fallthru
          _
        // Predicated region
        $region21: #{_lambda_.47} parent=15 // pred_check
          %p132 = pneg %p63
        $region22: #{_lambda_.47} parent=15 // pred_check_branch
          %134 = sbr.rel (%p132) target = $region24
        $region23: #{_lambda_.47} parent=15 // pred_region
          %s135 = sand.u32 %s53, 1
          %s136 = scalar_lea.sflag [#allocation6], %s135
          %s137 = sand.u32 %s53, 1
          %s138 = smul.addr %s137, 4
          %s139 = scalar_lea.vmem [#allocation5], %s138
          %s141 = ssub.s32 64, 64
          %142 = vsyncadd %s136, %s141
          %s143 = smul.addr %s17, 64
          %s144 = scalar_lea.hbm %s1, %s143
          %s146 = sshll.u32 %s139, 4
          %s147 = int_to_ptr.vmem [resolvable:$true] %s146
          %149 = dma.hbm_to_vmem [thread:$0]  %s144, 64, %s147, %s136
        $region24: #{_lambda_.47} parent=15 // pred_fallthru
          _
      $region16: #{_lambda_.47} parent=5 // pred_fallthru
        _
      %p150 = scmp.le.s32.totalorder 1, %s17
      %p151 = scmp.lt.s32.totalorder %s17, 3
      %p152 = pnand %p150, %p151
      %p153 = pneg %p152
      // Predicated region
      $region25: #{_lambda_.47} parent=5 // pred_check
        _
      $region26: #{_lambda_.47} parent=5 // pred_check_branch
        %155 = sbr.rel (%p152) target = $region28
      $region27: #{_lambda_.47} parent=5 // pred_region
        %s156 = ssub.s32 %s17, 1
        %s157 = sand.u32 %s30, 1
        %s158 = scalar_lea.sflag [#allocation3], %s157
        %s159 = sand.u32 %s30, 1
        %s160 = smul.addr %s159, 4
        %s161 = scalar_lea.vmem [#allocation2], %s160
        // Predicated region
        $region29: #{_lambda_.47} parent=27 // pred_check
          %p162 = pneg %p43
        $region30: #{_lambda_.47} parent=27 // pred_check_branch
          %164 = sbr.rel (%p162) target = $region32
        $region31: #{_lambda_.47} parent=27 // pred_region
          %165 = dma.done %s158, 64
        $region32: #{_lambda_.47} parent=27 // pred_fallthru
          _
        %s166 = sand.u32 %s56, 1
        %s167 = scalar_lea.sflag [#allocation6], %s166
        %s168 = sand.u32 %s56, 1
        %s169 = smul.addr %s168, 4
        %s170 = scalar_lea.vmem [#allocation5], %s169
        // Predicated region
        $region33: #{_lambda_.47} parent=27 // pred_check
          %p171 = pneg %p69
        $region34: #{_lambda_.47} parent=27 // pred_check_branch
          %173 = sbr.rel (%p171) target = $region36
        $region35: #{_lambda_.47} parent=27 // pred_region
          %174 = dma.done %s167, 64
        $region36: #{_lambda_.47} parent=27 // pred_fallthru
          _
        %s175 = sand.u32 %s30, 1
        %s176 = scalar_lea.sflag [#allocation3], %s175
        %s177 = sand.u32 %s30, 1
        %s178 = smul.addr %s177, 4
        %s179 = scalar_lea.vmem [#allocation2], %s178
        %p180 = pneg %p43
        %p181 = pneg %p40
        %s182 = sand.u32 %s56, 1
        %s183 = scalar_lea.sflag [#allocation6], %s182
        %s184 = sand.u32 %s56, 1
        %s185 = smul.addr %s184, 4
        %s186 = scalar_lea.vmem [#allocation5], %s185
        %p187 = pneg %p69
        %p188 = pneg %p66
        %p189 = pneg %p95
        %p190 = pneg %p92
        %s191 = sand.u32 %s82, 1
        %s192 = scalar_lea.sflag [#allocation4], %s191
        %s193 = sand.u32 %s82, 1
        %s194 = smul.addr %s193, 4
        %s195 = scalar_lea.vmem [#allocation7], %s194
        %v198 = vld [vmem:[%s161] sm:$0xf]
        %v199 = vld [vmem:[%s170] sm:$0xf]
        %v200 = vmul.bf16 %v198, 1052065461
        %vm201 = vcmask 64512
        %v203 = vsel %vm201, %v200, 0
        %v206 = vsel %vm201, %v199, 0
        %208 = vmatprep.subr.bf16.mxu0 0
        %209 = vmatpush1.bf16.xpose.msra.mxu0 %v206
        %210 = vmatprep.subr.bf16.mxu0 0
        %211 = vmatpush1.bf16.xpose.msra.mxu0 0
        %212 = vmatprep.subr.bf16.mxu0 0
        %213 = vmatpush1.bf16.xpose.msra.mxu0 0
        %214 = vmatprep.subr.bf16.mxu0 0
        %215 = vmatpush1.bf16.xpose.msra.mxu0 0
        %216 = vmatprep.subr.bf16.mxu0 0
        %217 = vmatpush1.bf16.xpose.msra.mxu0 0
        %218 = vmatprep.subr.bf16.mxu0 0
        %219 = vmatpush1.bf16.xpose.msra.mxu0 0
        %220 = vmatprep.subr.bf16.mxu0 0
        %221 = vmatpush1.bf16.xpose.msra.mxu0 0
        %222 = vmatprep.subr.bf16.mxu0 0
        %223 = vmatpush1.bf16.xpose.msra.mxu0 0
        %224 = vmatprep.subr.bf16.mxu0 0
        %225 = vmatpush1.bf16.xpose.msra.mxu0 0
        %226 = vmatprep.subr.bf16.mxu0 0
        %227 = vmatpush1.bf16.xpose.msra.mxu0 0
        %228 = vmatprep.subr.bf16.mxu0 0
        %229 = vmatpush1.bf16.xpose.msra.mxu0 0
        %230 = vmatprep.subr.bf16.mxu0 0
        %231 = vmatpush1.bf16.xpose.msra.mxu0 0
        %232 = vmatprep.subr.bf16.mxu0 0
        %233 = vmatpush1.bf16.xpose.msra.mxu0 0
        %234 = vmatprep.subr.bf16.mxu0 0
        %235 = vmatpush1.bf16.xpose.msra.mxu0 0
        %236 = vmatprep.subr.bf16.mxu0 0
        %237 = vmatpush1.bf16.xpose.msra.mxu0 0
        %238 = vmatprep.subr.bf16.mxu0 0
        %239 = vmatpush1.bf16.xpose.msra.mxu0 0
        %240 = vmatprep.mubr.bf16.mxu0 0
        %241 = vmatmul.mubr.bf16.gmra.mrb[0].mxu0 %v203
        %v242 = vpop.f32.mrb[0].mxu0
        %v243 = vadd.f32 0.0, %v242
        %v244 = vpop.f32.mrb[0].mxu0
        %v245 = vpop.f32.mrb[0].mxu0
        %v246 = vpop.f32.mrb[0].mxu0
        %247 = vdwg.mxu0
        %v248 = vsel %vm201, %v243, -inf
        %249 = vmax.xlane.f32.xlu0 %v248
        %v250 = vpop.xlane.xlu0 %249
        %v251 = vsub.f32 %v243, %v250
        %v252 = vmul.f32 %v251, 1.442695
        %v253 = vpow.pop %v252
        %v254 = vsel %vm201, %v253, 0.0
        %255 = vadd.xlane.f32.xlu0 %v254
        %v256 = vpop.xlane.xlu0 %255
        %v257 = vrcp.pop %v256
        %v258 = vmul.f32 %v253, %v257
        %v259 = vpack.c.bf16 %v258, %v258
        %v261 = vunpack.c.l.b16 %v199
        %v262 = vpack.c.b16 %v261, %v261
        %263 = vrot.lane.b32.xlu0 %v262, 96
        %v264 = vpop.permute.xlu0 %263
        %v266 = vsel %vm201, %v259, 0
        %vm268 = vcmask 1043456
        %v270 = vsel %vm268, %v264, 0
        %272 = vmatprep.subr.bf16.mxu0 0
        %273 = vmatpush1.bf16.msra.mxu0 %v270
        %274 = vmatprep.subr.bf16.mxu0 0
        %275 = vmatpush1.bf16.msra.mxu0 0
        %276 = vmatprep.subr.bf16.mxu0 0
        %277 = vmatpush1.bf16.msra.mxu0 0
        %278 = vmatprep.subr.bf16.mxu0 0
        %279 = vmatpush1.bf16.msra.mxu0 0
        %280 = vmatprep.subr.bf16.mxu0 0
        %281 = vmatpush1.bf16.msra.mxu0 0
        %282 = vmatprep.subr.bf16.mxu0 0
        %283 = vmatpush1.bf16.msra.mxu0 0
        %284 = vmatprep.subr.bf16.mxu0 0
        %285 = vmatpush1.bf16.msra.mxu0 0
        %286 = vmatprep.subr.bf16.mxu0 0
        %287 = vmatpush1.bf16.msra.mxu0 0
        %288 = vmatprep.subr.bf16.mxu0 0
        %289 = vmatpush1.bf16.msra.mxu0 0
        %290 = vmatprep.subr.bf16.mxu0 0
        %291 = vmatpush1.bf16.msra.mxu0 0
        %292 = vmatprep.subr.bf16.mxu0 0
        %293 = vmatpush1.bf16.msra.mxu0 0
        %294 = vmatprep.subr.bf16.mxu0 0
        %295 = vmatpush1.bf16.msra.mxu0 0
        %296 = vmatprep.subr.bf16.mxu0 0
        %297 = vmatpush1.bf16.msra.mxu0 0
        %298 = vmatprep.subr.bf16.mxu0 0
        %299 = vmatpush1.bf16.msra.mxu0 0
        %300 = vmatprep.subr.bf16.mxu0 0
        %301 = vmatpush1.bf16.msra.mxu0 0
        %302 = vmatprep.subr.bf16.mxu0 0
        %303 = vmatpush1.bf16.msra.mxu0 0
        %304 = vmatprep.mubr.bf16.mxu0 0
        %305 = vmatmul.mubr.bf16.gmra.mrb[0].mxu0 %v266
        %v306 = vpop.f32.mrb[0].mxu0
        %v307 = vadd.f32 0.0, %v306
        %v308 = vpop.f32.mrb[0].mxu0
        %v309 = vpop.f32.mrb[0].mxu0
        %v310 = vpop.f32.mrb[0].mxu0
        %311 = vdwg.mxu0
        %v313 = vunpack.c.l.b16 %v200
        %v314 = vpack.c.b16 %v313, %v313
        %315 = vrot.lane.b32.xlu0 %v314, 120
        %v316 = vpop.permute.xlu0 %315
        %317 = vrot.lane.b32.xlu0 %v262, 120
        %v318 = vpop.permute.xlu0 %317
        %v320 = vsel %vm201, %v316, 0
        %v323 = vsel %vm201, %v318, 0
        %325 = vmatprep.subr.bf16.mxu0 0
        %326 = vmatpush1.bf16.xpose.msra.mxu0 %v323
        %327 = vmatprep.subr.bf16.mxu0 0
        %328 = vmatpush1.bf16.xpose.msra.mxu0 0
        %329 = vmatprep.subr.bf16.mxu0 0
        %330 = vmatpush1.bf16.xpose.msra.mxu0 0
        %331 = vmatprep.subr.bf16.mxu0 0
        %332 = vmatpush1.bf16.xpose.msra.mxu0 0
        %333 = vmatprep.subr.bf16.mxu0 0
        %334 = vmatpush1.bf16.xpose.msra.mxu0 0
        %335 = vmatprep.subr.bf16.mxu0 0
        %336 = vmatpush1.bf16.xpose.msra.mxu0 0
        %337 = vmatprep.subr.bf16.mxu0 0
        %338 = vmatpush1.bf16.xpose.msra.mxu0 0
        %339 = vmatprep.subr.bf16.mxu0 0
        %340 = vmatpush1.bf16.xpose.msra.mxu0 0
        %341 = vmatprep.subr.bf16.mxu0 0
        %342 = vmatpush1.bf16.xpose.msra.mxu0 0
        %343 = vmatprep.subr.bf16.mxu0 0
        %344 = vmatpush1.bf16.xpose.msra.mxu0 0
        %345 = vmatprep.subr.bf16.mxu0 0
        %346 = vmatpush1.bf16.xpose.msra.mxu0 0
        %347 = vmatprep.subr.bf16.mxu0 0
        %348 = vmatpush1.bf16.xpose.msra.mxu0 0
        %349 = vmatprep.subr.bf16.mxu0 0
        %350 = vmatpush1.bf16.xpose.msra.mxu0 0
        %351 = vmatprep.subr.bf16.mxu0 0
        %352 = vmatpush1.bf16.xpose.msra.mxu0 0
        %353 = vmatprep.subr.bf16.mxu0 0
        %354 = vmatpush1.bf16.xpose.msra.mxu0 0
        %355 = vmatprep.subr.bf16.mxu0 0
        %356 = vmatpush1.bf16.xpose.msra.mxu0 0
        %357 = vmatprep.mubr.bf16.mxu0 0
        %358 = vmatmul.mubr.bf16.gmra.mrb[0].mxu0 %v320
        %v359 = vpop.f32.mrb[0].mxu0
        %v360 = vadd.f32 0.0, %v359
        %v361 = vpop.f32.mrb[0].mxu0
        %v362 = vpop.f32.mrb[0].mxu0
        %v363 = vpop.f32.mrb[0].mxu0
        %364 = vdwg.mxu0
        %v365 = vsel %vm201, %v360, -inf
        %366 = vmax.xlane.f32.xlu0 %v365
        %v367 = vpop.xlane.xlu0 %366
        %v368 = vsub.f32 %v360, %v367
        %v369 = vmul.f32 %v368, 1.442695
        %v370 = vpow.pop %v369
        %v371 = vsel %vm201, %v370, 0.0
        %372 = vadd.xlane.f32.xlu0 %v371
        %v373 = vpop.xlane.xlu0 %372
        %v374 = vrcp.pop %v373
        %v375 = vmul.f32 %v370, %v374
        %v376 = vpack.c.bf16 %v375, %v375
        %377 = vrot.lane.b32.xlu0 %v262, 88
        %v378 = vpop.permute.xlu0 %377
        %v380 = vsel %vm201, %v376, 0
        %v383 = vsel %vm268, %v378, 0
        %385 = vmatprep.subr.bf16.mxu0 0
        %386 = vmatpush1.bf16.msra.mxu0 %v383
        %387 = vmatprep.subr.bf16.mxu0 0
        %388 = vmatpush1.bf16.msra.mxu0 0
        %389 = vmatprep.subr.bf16.mxu0 0
        %390 = vmatpush1.bf16.msra.mxu0 0
        %391 = vmatprep.subr.bf16.mxu0 0
        %392 = vmatpush1.bf16.msra.mxu0 0
        %393 = vmatprep.subr.bf16.mxu0 0
        %394 = vmatpush1.bf16.msra.mxu0 0
        %395 = vmatprep.subr.bf16.mxu0 0
        %396 = vmatpush1.bf16.msra.mxu0 0
        %397 = vmatprep.subr.bf16.mxu0 0
        %398 = vmatpush1.bf16.msra.mxu0 0
        %399 = vmatprep.subr.bf16.mxu0 0
        %400 = vmatpush1.bf16.msra.mxu0 0
        %401 = vmatprep.subr.bf16.mxu0 0
        %402 = vmatpush1.bf16.msra.mxu0 0
        %403 = vmatprep.subr.bf16.mxu0 0
        %404 = vmatpush1.bf16.msra.mxu0 0
        %405 = vmatprep.subr.bf16.mxu0 0
        %406 = vmatpush1.bf16.msra.mxu0 0
        %407 = vmatprep.subr.bf16.mxu0 0
        %408 = vmatpush1.bf16.msra.mxu0 0
        %409 = vmatprep.subr.bf16.mxu0 0
        %410 = vmatpush1.bf16.msra.mxu0 0
        %411 = vmatprep.subr.bf16.mxu0 0
        %412 = vmatpush1.bf16.msra.mxu0 0
        %413 = vmatprep.subr.bf16.mxu0 0
        %414 = vmatpush1.bf16.msra.mxu0 0
        %415 = vmatprep.subr.bf16.mxu0 0
        %416 = vmatpush1.bf16.msra.mxu0 0
        %417 = vmatprep.mubr.bf16.mxu0 0
        %418 = vmatmul.mubr.bf16.gmra.mrb[0].mxu0 %v380
        %v419 = vpop.f32.mrb[0].mxu0
        %v420 = vadd.f32 0.0, %v419
        %v421 = vpop.f32.mrb[0].mxu0
        %v422 = vpop.f32.mrb[0].mxu0
        %v423 = vpop.f32.mrb[0].mxu0
        %424 = vdwg.mxu0
        %425 = vrot.lane.b32.xlu0 %v314, 112
        %v426 = vpop.permute.xlu0 %425
        %427 = vrot.lane.b32.xlu0 %v262, 112
        %v428 = vpop.permute.xlu0 %427
        %v430 = vsel %vm201, %v426, 0
        %v433 = vsel %vm201, %v428, 0
        %435 = vmatprep.subr.bf16.mxu0 0
        %436 = vmatpush1.bf16.xpose.msra.mxu0 %v433
        %437 = vmatprep.subr.bf16.mxu0 0
        %438 = vmatpush1.bf16.xpose.msra.mxu0 0
        %439 = vmatprep.subr.bf16.mxu0 0
        %440 = vmatpush1.bf16.xpose.msra.mxu0 0
        %441 = vmatprep.subr.bf16.mxu0 0
        %442 = vmatpush1.bf16.xpose.msra.mxu0 0
        %443 = vmatprep.subr.bf16.mxu0 0
        %444 = vmatpush1.bf16.xpose.msra.mxu0 0
        %445 = vmatprep.subr.bf16.mxu0 0
        %446 = vmatpush1.bf16.xpose.msra.mxu0 0
        %447 = vmatprep.subr.bf16.mxu0 0
        %448 = vmatpush1.bf16.xpose.msra.mxu0 0
        %449 = vmatprep.subr.bf16.mxu0 0
        %450 = vmatpush1.bf16.xpose.msra.mxu0 0
        %451 = vmatprep.subr.bf16.mxu0 0
        %452 = vmatpush1.bf16.xpose.msra.mxu0 0
        %453 = vmatprep.subr.bf16.mxu0 0
        %454 = vmatpush1.bf16.xpose.msra.mxu0 0
        %455 = vmatprep.subr.bf16.mxu0 0
        %456 = vmatpush1.bf16.xpose.msra.mxu0 0
        %457 = vmatprep.subr.bf16.mxu0 0
        %458 = vmatpush1.bf16.xpose.msra.mxu0 0
        %459 = vmatprep.subr.bf16.mxu0 0
        %460 = vmatpush1.bf16.xpose.msra.mxu0 0
        %461 = vmatprep.subr.bf16.mxu0 0
        %462 = vmatpush1.bf16.xpose.msra.mxu0 0
        %463 = vmatprep.subr.bf16.mxu0 0
        %464 = vmatpush1.bf16.xpose.msra.mxu0 0
        %465 = vmatprep.subr.bf16.mxu0 0
        %466 = vmatpush1.bf16.xpose.msra.mxu0 0
        %467 = vmatprep.mubr.bf16.mxu0 0
        %468 = vmatmul.mubr.bf16.gmra.mrb[0].mxu0 %v430
        %v469 = vpop.f32.mrb[0].mxu0
        %v470 = vadd.f32 0.0, %v469
        %v471 = vpop.f32.mrb[0].mxu0
        %v472 = vpop.f32.mrb[0].mxu0
        %v473 = vpop.f32.mrb[0].mxu0
        %474 = vdwg.mxu0
        %v475 = vsel %vm201, %v470, -inf
        %476 = vmax.xlane.f32.xlu0 %v475
        %v477 = vpop.xlane.xlu0 %476
        %v478 = vsub.f32 %v470, %v477
        %v479 = vmul.f32 %v478, 1.442695
        %v480 = vpow.pop %v479
        %v481 = vsel %vm201, %v480, 0.0
        %482 = vadd.xlane.f32.xlu0 %v481
        %v483 = vpop.xlane.xlu0 %482
        %v484 = vrcp.pop %v483
        %v485 = vmul.f32 %v480, %v484
        %v486 = vpack.c.bf16 %v485, %v485
        %487 = vrot.lane.b32.xlu0 %v262, 80
        %v488 = vpop.permute.xlu0 %487
        %v490 = vsel %vm201, %v486, 0
        %v493 = vsel %vm268, %v488, 0
        %495 = vmatprep.subr.bf16.mxu0 0
        %496 = vmatpush1.bf16.msra.mxu0 %v493
        %497 = vmatprep.subr.bf16.mxu0 0
        %498 = vmatpush1.bf16.msra.mxu0 0
        %499 = vmatprep.subr.bf16.mxu0 0
        %500 = vmatpush1.bf16.msra.mxu0 0
        %501 = vmatprep.subr.bf16.mxu0 0
        %502 = vmatpush1.bf16.msra.mxu0 0
        %503 = vmatprep.subr.bf16.mxu0 0
        %504 = vmatpush1.bf16.msra.mxu0 0
        %505 = vmatprep.subr.bf16.mxu0 0
        %506 = vmatpush1.bf16.msra.mxu0 0
        %507 = vmatprep.subr.bf16.mxu0 0
        %508 = vmatpush1.bf16.msra.mxu0 0
        %509 = vmatprep.subr.bf16.mxu0 0
        %510 = vmatpush1.bf16.msra.mxu0 0
        %511 = vmatprep.subr.bf16.mxu0 0
        %512 = vmatpush1.bf16.msra.mxu0 0
        %513 = vmatprep.subr.bf16.mxu0 0
        %514 = vmatpush1.bf16.msra.mxu0 0
        %515 = vmatprep.subr.bf16.mxu0 0
        %516 = vmatpush1.bf16.msra.mxu0 0
        %517 = vmatprep.subr.bf16.mxu0 0
        %518 = vmatpush1.bf16.msra.mxu0 0
        %519 = vmatprep.subr.bf16.mxu0 0
        %520 = vmatpush1.bf16.msra.mxu0 0
        %521 = vmatprep.subr.bf16.mxu0 0
        %522 = vmatpush1.bf16.msra.mxu0 0
        %523 = vmatprep.subr.bf16.mxu0 0
        %524 = vmatpush1.bf16.msra.mxu0 0
        %525 = vmatprep.subr.bf16.mxu0 0
        %526 = vmatpush1.bf16.msra.mxu0 0
        %527 = vmatprep.mubr.bf16.mxu0 0
        %528 = vmatmul.mubr.bf16.gmra.mrb[0].mxu0 %v490
        %v529 = vpop.f32.mrb[0].mxu0
        %v530 = vadd.f32 0.0, %v529
        %v531 = vpop.f32.mrb[0].mxu0
        %v532 = vpop.f32.mrb[0].mxu0
        %v533 = vpop.f32.mrb[0].mxu0
        %534 = vdwg.mxu0
        %535 = vrot.lane.b32.xlu0 %v314, 104
        %v536 = vpop.permute.xlu0 %535
        %537 = vrot.lane.b32.xlu0 %v262, 104
        %v538 = vpop.permute.xlu0 %537
        %v540 = vsel %vm201, %v536, 0
        %v543 = vsel %vm201, %v538, 0
        %545 = vmatprep.subr.bf16.mxu0 0
        %546 = vmatpush1.bf16.xpose.msra.mxu0 %v543
        %547 = vmatprep.subr.bf16.mxu0 0
        %548 = vmatpush1.bf16.xpose.msra.mxu0 0
        %549 = vmatprep.subr.bf16.mxu0 0
        %550 = vmatpush1.bf16.xpose.msra.mxu0 0
        %551 = vmatprep.subr.bf16.mxu0 0
        %552 = vmatpush1.bf16.xpose.msra.mxu0 0
        %553 = vmatprep.subr.bf16.mxu0 0
        %554 = vmatpush1.bf16.xpose.msra.mxu0 0
        %555 = vmatprep.subr.bf16.mxu0 0
        %556 = vmatpush1.bf16.xpose.msra.mxu0 0
        %557 = vmatprep.subr.bf16.mxu0 0
        %558 = vmatpush1.bf16.xpose.msra.mxu0 0
        %559 = vmatprep.subr.bf16.mxu0 0
        %560 = vmatpush1.bf16.xpose.msra.mxu0 0
        %561 = vmatprep.subr.bf16.mxu0 0
        %562 = vmatpush1.bf16.xpose.msra.mxu0 0
        %563 = vmatprep.subr.bf16.mxu0 0
        %564 = vmatpush1.bf16.xpose.msra.mxu0 0
        %565 = vmatprep.subr.bf16.mxu0 0
        %566 = vmatpush1.bf16.xpose.msra.mxu0 0
        %567 = vmatprep.subr.bf16.mxu0 0
        %568 = vmatpush1.bf16.xpose.msra.mxu0 0
        %569 = vmatprep.subr.bf16.mxu0 0
        %570 = vmatpush1.bf16.xpose.msra.mxu0 0
        %571 = vmatprep.subr.bf16.mxu0 0
        %572 = vmatpush1.bf16.xpose.msra.mxu0 0
        %573 = vmatprep.subr.bf16.mxu0 0
        %574 = vmatpush1.bf16.xpose.msra.mxu0 0
        %575 = vmatprep.subr.bf16.mxu0 0
        %576 = vmatpush1.bf16.xpose.msra.mxu0 0
        %577 = vmatprep.mubr.bf16.mxu0 0
        %578 = vmatmul.mubr.bf16.gmra.mrb[0].mxu0 %v540
        %v579 = vpop.f32.mrb[0].mxu0
        %v580 = vadd.f32 0.0, %v579
        %v581 = vpop.f32.mrb[0].mxu0
        %v582 = vpop.f32.mrb[0].mxu0
        %v583 = vpop.f32.mrb[0].mxu0
        %584 = vdwg.mxu0
        %v585 = vsel %vm201, %v580, -inf
        %586 = vmax.xlane.f32.xlu0 %v585
        %v587 = vpop.xlane.xlu0 %586
        %v588 = vsub.f32 %v580, %v587
        %v589 = vmul.f32 %v588, 1.442695
        %v590 = vpow.pop %v589
        %v591 = vsel %vm201, %v590, 0.0
        %592 = vadd.xlane.f32.xlu0 %v591
        %v593 = vpop.xlane.xlu0 %592
        %v594 = vrcp.pop %v593
        %v595 = vmul.f32 %v590, %v594
        %v596 = vpack.c.bf16 %v595, %v595
        %597 = vrot.lane.b32.xlu0 %v262, 72
        %v598 = vpop.permute.xlu0 %597
        %v600 = vsel %vm201, %v596, 0
        %v603 = vsel %vm268, %v598, 0
        %605 = vmatprep.subr.bf16.mxu0 0
        %606 = vmatpush1.bf16.msra.mxu0 %v603
        %607 = vmatprep.subr.bf16.mxu0 0
        %608 = vmatpush1.bf16.msra.mxu0 0
        %609 = vmatprep.subr.bf16.mxu0 0
        %610 = vmatpush1.bf16.msra.mxu0 0
        %611 = vmatprep.subr.bf16.mxu0 0
        %612 = vmatpush1.bf16.msra.mxu0 0
        %613 = vmatprep.subr.bf16.mxu0 0
        %614 = vmatpush1.bf16.msra.mxu0 0
        %615 = vmatprep.subr.bf16.mxu0 0
        %616 = vmatpush1.bf16.msra.mxu0 0
        %617 = vmatprep.subr.bf16.mxu0 0
        %618 = vmatpush1.bf16.msra.mxu0 0
        %619 = vmatprep.subr.bf16.mxu0 0
        %620 = vmatpush1.bf16.msra.mxu0 0
        %621 = vmatprep.subr.bf16.mxu0 0
        %622 = vmatpush1.bf16.msra.mxu0 0
        %623 = vmatprep.subr.bf16.mxu0 0
        %624 = vmatpush1.bf16.msra.mxu0 0
        %625 = vmatprep.subr.bf16.mxu0 0
        %626 = vmatpush1.bf16.msra.mxu0 0
        %627 = vmatprep.subr.bf16.mxu0 0
        %628 = vmatpush1.bf16.msra.mxu0 0
        %629 = vmatprep.subr.bf16.mxu0 0
        %630 = vmatpush1.bf16.msra.mxu0 0
        %631 = vmatprep.subr.bf16.mxu0 0
        %632 = vmatpush1.bf16.msra.mxu0 0
        %633 = vmatprep.subr.bf16.mxu0 0
        %634 = vmatpush1.bf16.msra.mxu0 0
        %635 = vmatprep.subr.bf16.mxu0 0
        %636 = vmatpush1.bf16.msra.mxu0 0
        %637 = vmatprep.mubr.bf16.mxu0 0
        %638 = vmatmul.mubr.bf16.gmra.mrb[0].mxu0 %v600
        %v639 = vpop.f32.mrb[0].mxu0
        %v640 = vadd.f32 0.0, %v639
        %v641 = vpop.f32.mrb[0].mxu0
        %v642 = vpop.f32.mrb[0].mxu0
        %v643 = vpop.f32.mrb[0].mxu0
        %644 = vdwg.mxu0
        %646 = vrot.lane.b32.xlu0 %v420, 8
        %v647 = vpop.permute.xlu0 %646
        %650 = vrot.lane.b32.xlu0 %v530, 16
        %v651 = vpop.permute.xlu0 %650
        %654 = vrot.lane.b32.xlu0 %v640, 24
        %v655 = vpop.permute.xlu0 %654
        %v657 = vsel %vm201, %v307, %v647
        %vm658 = vcmask 130048
        %v659 = vsel %vm658, %v657, %v651
        %vm660 = vcmask 195584
        %v661 = vsel %vm660, %v659, %v655
        %v662 = vpack.c.bf16 %v661, %v661
        %vm663 = vcmask 257024
        %664 = vst.msk [vmem:[%s195] sm:$0xf] %vm663, %v662
        %s665 = sand.u32 %s82, 1
        %s666 = scalar_lea.sflag [#allocation4], %s665
        %s667 = sand.u32 %s82, 1
        %s668 = smul.addr %s667, 4
        %s669 = scalar_lea.vmem [#allocation7], %s668
        // Predicated region
        $region37: #{_lambda_.47} parent=27 // pred_check
          %p670 = pneg %p92
        $region38: #{_lambda_.47} parent=27 // pred_check_branch
          %672 = sbr.rel (%p670) target = $region40
        $region39: #{_lambda_.47} parent=27 // pred_region
          %s674 = ssub.s32 64, 64
          %675 = vsyncadd %s666, %s674
          %s676 = smul.addr %s22, 64
          %s677 = scalar_lea.hbm %s2, %s676
          %s679 = sshll.u32 %s669, 4
          %s680 = int_to_ptr.vmem [resolvable:$true] %s679
          %682 = dma.vmem_to_hbm [thread:$0]  %s680, 64, %s677, %s666
        $region40: #{_lambda_.47} parent=27 // pred_fallthru
          _
      $region28: #{_lambda_.47} parent=5 // pred_fallthru
        _
      %p683 = scmp.le.s32.totalorder 2, %s17
      // Predicated region
      $region41: #{_lambda_.47} parent=5 // pred_check
        %p684 = pneg %p683
      $region42: #{_lambda_.47} parent=5 // pred_check_branch
        %686 = sbr.rel (%p684) target = $region44
      $region43: #{_lambda_.47} parent=5 // pred_region
        %s687 = ssub.s32 %s17, 2
        // Predicated region
        $region45: #{_lambda_.47} parent=43 // pred_check
          %p688 = pneg %p98
        $region46: #{_lambda_.47} parent=43 // pred_check_branch
          %690 = sbr.rel (%p688) target = $region48
        $region47: #{_lambda_.47} parent=43 // pred_region
          %s691 = sand.u32 %s83, 1
          %s692 = scalar_lea.sflag [#allocation4], %s691
          %s693 = sand.u32 %s83, 1
          %s694 = smul.addr %s693, 4
          %s695 = scalar_lea.vmem [#allocation7], %s694
          %696 = dma.done %s692, 64
        $region48: #{_lambda_.47} parent=43 // pred_fallthru
          _
      $region44: #{_lambda_.47} parent=5 // pred_fallthru
        _
    $region6: #{_lambda_.47} parent=1 // loop_footer
      %s21 = sadd.s32 1, %s17
    $region7: #{_lambda_.47} parent=1 // loop_footer_branch
      %16 = sbr.rel target = $region3
    $region8: #{_lambda_.47} parent=1 // loop_exit
      _
    %697 = vsyncpa [#allocation3], 1
    %s698 = scalar_lea.sflag [#allocation3], 1
    %699 = vsyncpa %s698, 1
    %700 = vsyncpa [#allocation6], 1
    %s701 = scalar_lea.sflag [#allocation6], 1
    %702 = vsyncpa %s701, 1
    %703 = vsyncpa [#allocation4], 1
    %s704 = scalar_lea.sflag [#allocation4], 1
    %705 = vsyncpa %s704, 1

</llo_original>
